<compile_context>
chip_gen: v7x
topology: tpu7x:2x2x1
jax: 0.10.0
libtpu: 0.0.40
codegen_flags: <defaults>
</compile_context>

<pallas_src>
import jax
import jax.numpy as jnp
from jax.experimental import pallas as pl
from jax.experimental.pallas import tpu as pltpu

F32 = jnp.float32


# ----------------------------------------------------------------------------
# Fused Pallas kernel: conv blocks -> pool -> LSTM -> BN/LeakyReLU -> Linear
# ----------------------------------------------------------------------------
def make_fused_kernel(n_blocks, kw, batch):
    """Build the fused forward kernel.

    Ref layout (all f32, fully VMEM-resident, single invocation, no grid):
      x_ref      : (1, Win, R)       input, R = Hc*T*B on the lane axis
      per block  : w_ref (Cout, KW*Cin)  conv weights with BN scale folded in
                   s_ref (Cout, 1)       folded BN shift
      pool_ref   : (R, T*B)          adaptive_avg_pool2d as a matmul
      wihT_ref   : (4H, C_last)      LSTM input projection (transposed)
      whhT_ref   : (4H, H)           LSTM recurrent projection (transposed)
      bT_ref     : (4H, 1)           LSTM bias (b_ih + b_hh)
      bnsc_ref   : (H, 1)            BatchNorm1d eval scale
      bnsh_ref   : (H, 1)            BatchNorm1d eval shift
      woT_ref    : (n_class, H)      output Linear weight (transposed)
      boT_ref    : (n_class, 1)      output Linear bias
      o_ref      : (n_class, B)      logits (transposed; wrapper transposes back)
    """

    def kernel(*refs):
        it = iter(refs)
        x_ref = next(it)
        conv_refs = [(next(it), next(it)) for _ in range(n_blocks)]
        pool_ref = next(it)
        wihT_ref = next(it)
        whhT_ref = next(it)
        bT_ref = next(it)
        bnsc_ref = next(it)
        bnsh_ref = next(it)
        woT_ref = next(it)
        boT_ref = next(it)
        o_ref = next(it)

        # ---- Conv blocks (lane-dense: R on lanes), BN folded, LeakyReLU(0.1) ----
        x = x_ref[...]                                     # (1, Win, R)
        win = x_ref.shape[1]
        rows = [x[:, w, :] for w in range(win)]            # list of (Cin, R)
        for (w_ref, s_ref) in conv_refs:
            wmat = w_ref[...]                              # (Cout, KW*Cin), BN scale folded
            shift = s_ref[...]                             # (Cout, 1) -> lane-broadcast
            wout = len(rows) - kw + 1
            new_rows = []
            for p in range(wout):
                patch = jnp.concatenate([rows[p + k] for k in range(kw)], axis=0)
                y = jnp.dot(wmat, patch, preferred_element_type=F32) + shift
                new_rows.append(jnp.where(y > 0.0, y, 0.1 * y))
            rows = new_rows                                # list of (Cout, R)

        # ---- adaptive_avg_pool2d fused: mean over (Hc, Wout_last) via one matmul ----
        featsum = rows[0]
        for row in rows[1:]:
            featsum = featsum + row                        # (C_last, R), sum over w
        pooled = jnp.dot(featsum, pool_ref[...],
                         preferred_element_type=F32)       # (C_last, T*B)

        # ---- LSTM (PyTorch i|f|g|o gate order, zero initial state) ----
        hdim = whhT_ref.shape[1]
        whhT = whhT_ref[...]                               # (4H, H)
        # Hoisted input projection for all time steps + bias (lane-dense 4H rows).
        gates_x = (jnp.dot(wihT_ref[...], pooled, preferred_element_type=F32)
                   + bT_ref[...])                          # (4H, T*B)
        hT = jnp.zeros((hdim, batch), F32)
        cT = jnp.zeros((hdim, batch), F32)
        # The module consumes lstm_output[2] only -> run just 3 steps (T>=3 asserted
        # in the wrapper so the output is always written).
        for t in range(3):
            g = (gates_x[:, t * batch:(t + 1) * batch]
                 + jnp.dot(whhT, hT, preferred_element_type=F32))   # (4H, B)
            i_g = jax.nn.sigmoid(g[0 * hdim:1 * hdim])
            f_g = jax.nn.sigmoid(g[1 * hdim:2 * hdim])
            g_g = jnp.tanh(g[2 * hdim:3 * hdim])
            o_g = jax.nn.sigmoid(g[3 * hdim:4 * hdim])
            cT = f_g * cT + i_g * g_g
            hT = o_g * jnp.tanh(cT)

        # ---- BatchNorm1d(eval) + LeakyReLU(0.1) + Dropout(identity) + Linear ----
        # TODO(synk): Dropout/Dropout2d are inference-mode identity (no RNG masking).
        y = hT * bnsc_ref[...] + bnsh_ref[...]             # (H, B)
        y = jnp.where(y > 0.0, y, 0.1 * y)
        o_ref[...] = (jnp.dot(woT_ref[...], y, preferred_element_type=F32)
                      + boT_ref[...])                      # (n_class, B)

    return kernel


# ----------------------------------------------------------------------------
# Forward pass: wrapper-side relayout + one fused pallas_call
# ----------------------------------------------------------------------------
@jax.jit
def forward(x, params):
    """x: (B, 1, T, Hc, W) -- the PyTorch layout of the module's input."""
    B, cx, T, Hc, W = x.shape
    assert cx == 1
    assert T >= 3, "module hard-codes lstm_output[2]; need T >= 3"
    TB = T * B
    R = Hc * TB

    blocks = params["blocks"]
    n_blocks = len(blocks)
    KW = blocks[0][0].shape[0]
    wout_last = W - n_blocks * (KW - 1)
    c_last = blocks[-1][0].shape[2]
    hdim = params["lstm_whh"].shape[0]
    n_class = params["out_w"].shape[1]

    # Wrapper-side relayout (plain XLA, outside the kernel):
    # (B,1,T,Hc,W) -> (1, W, R) with r = (h*T + t)*B + b  (R on the lane axis).
    xr = jnp.transpose(x[:, 0], (2, 1, 0, 3)).reshape(R, W).T[None].astype(F32)

    args = [xr]
    for (w, scale, shift) in blocks:
        kw_, cin, cout = w.shape
        # Fold BN scale into the conv weights; keep the shift separate.
        wm = (w * scale.reshape(1, 1, cout)).transpose(2, 0, 1).reshape(cout, kw_ * cin)
        args += [wm.astype(F32), shift.reshape(cout, 1).astype(F32)]

    # Constant pooling matrix: adaptive_avg_pool2d over (Hc, Wout_last) as one matmul.
    r_idx = jnp.arange(R, dtype=jnp.int32)[:, None]
    tb_idx = jnp.arange(TB, dtype=jnp.int32)[None, :]
    pool = jnp.where(r_idx % TB == tb_idx, 1.0 / (Hc * wout_last), 0.0).astype(F32)

    args += [
        pool,                                              # (R, TB)
        params["lstm_wih"].T.astype(F32),                  # (4H, C_last)
        params["lstm_whh"].T.astype(F32),                  # (4H, H)
        params["lstm_b"].reshape(4 * hdim, 1).astype(F32),
        params["bn1_scale"].reshape(hdim, 1).astype(F32),
        params["bn1_shift"].reshape(hdim, 1).astype(F32),
        params["out_w"].T.astype(F32),                     # (n_class, H)
        params["out_b"].reshape(n_class, 1).astype(F32),
    ]

    # Advisory cost estimate for the XLA scheduler around the custom call.
    conv_flops, win, cin = 0, W, 1
    for (w, _, _) in blocks:
        kw_, _, cout = w.shape
        wout = win - kw_ + 1
        conv_flops += 2 * R * wout * kw_ * cin * cout
        win, cin = wout, cout
    flops = (conv_flops
             + 2 * c_last * R * TB                 # fused average pool
             + 2 * 4 * hdim * c_last * TB          # hoisted LSTM input projection
             + 3 * 2 * 4 * hdim * hdim * B         # 3 recurrence steps
             + 2 * n_class * hdim * B)             # output linear
    transcendentals = 3 * 5 * hdim * B
    bytes_accessed = sum(a.size * a.dtype.itemsize for a in args) + n_class * B * 4

    vmem = pl.BlockSpec(memory_space=pltpu.MemorySpace.VMEM)
    out_t = pl.pallas_call(
        make_fused_kernel(n_blocks, KW, B),
        out_shape=jax.ShapeDtypeStruct((n_class, B), F32),
        in_specs=[vmem] * len(args),
        out_specs=vmem,
        cost_estimate=pl.CostEstimate(flops=flops,
                                      transcendentals=transcendentals,
                                      bytes_accessed=bytes_accessed),
    )(*args)
    return out_t.T                                         # (B, n_class)


# ----------------------------------------------------------------------------
# Parameter construction (deterministic, synthetic) with eval-mode BN folding
# ----------------------------------------------------------------------------
def fold_bn(conv_bias, gamma, beta, mean, var, eps):
    scale = gamma / jnp.sqrt(var + eps)
    shift = (conv_bias - mean) * scale + beta
    return scale.reshape(1, -1).astype(F32), shift.reshape(1, -1).astype(F32)


def make_params(key, n_features, filter_w, hidden_dim, n_class, lstm_in):
    ks = iter(jax.random.split(key, 32))
    params = {"blocks": []}
    c_in = 1
    for c_out in n_features:
        w = 0.3 * jax.random.normal(next(ks), (filter_w, c_in, c_out), F32)
        b = 0.1 * jax.random.normal(next(ks), (c_out,), F32)
        gamma = 1.0 + 0.1 * jax.random.normal(next(ks), (c_out,), F32)
        beta = 0.1 * jax.random.normal(next(ks), (c_out,), F32)
        mean = 0.1 * jax.random.normal(next(ks), (c_out,), F32)
        var = 0.9 + 0.2 * jax.random.uniform(next(ks), (c_out,), F32)
        scale, shift = fold_bn(b, gamma, beta, mean, var, eps=0.001)
        params["blocks"].append((w, scale, shift))
        c_in = c_out

    params["lstm_wih"] = 0.2 * jax.random.normal(next(ks), (lstm_in, 4 * hidden_dim), F32)
    params["lstm_whh"] = 0.2 * jax.random.normal(next(ks), (hidden_dim, 4 * hidden_dim), F32)
    params["lstm_b"] = (0.1 * jax.random.normal(next(ks), (4 * hidden_dim,), F32)).reshape(1, -1)

    gamma = 1.0 + 0.1 * jax.random.normal(next(ks), (hidden_dim,), F32)
    beta = 0.1 * jax.random.normal(next(ks), (hidden_dim,), F32)
    mean = 0.1 * jax.random.normal(next(ks), (hidden_dim,), F32)
    var = 0.9 + 0.2 * jax.random.uniform(next(ks), (hidden_dim,), F32)
    scale, shift = fold_bn(jnp.zeros((hidden_dim,), F32), gamma, beta, mean, var, eps=0.0001)
    params["bn1_scale"], params["bn1_shift"] = scale, shift

    params["out_w"] = 0.3 * jax.random.normal(next(ks), (hidden_dim, n_class), F32)
    params["out_b"] = (0.1 * jax.random.normal(next(ks), (n_class,), F32)).reshape(1, -1)
    return params


# ----------------------------------------------------------------------------
# Pure-JAX reference (mirrors the PyTorch module math) for a sanity check
# ----------------------------------------------------------------------------
def ref_forward(x, params):
    B, _, T, Hc, W = x.shape
    seq = []
    for t in range(T):
        feat = x[:, :, t, :, :]                                   # (B, 1, Hc, W)
        for (w, scale, shift) in params["blocks"]:
            kw_, cin, cout = w.shape
            wout = feat.shape[-1] - kw_ + 1
            acc = jnp.zeros((B, cout, Hc, wout), F32)
            for k in range(kw_):
                acc = acc + jnp.einsum("bchw,cd->bdhw", feat[..., k:k + wout], w[k])
            y = acc * scale[0][None, :, None, None] + shift[0][None, :, None, None]
            feat = jnp.where(y > 0.0, y, 0.1 * y)
        seq.append(feat.mean(axis=(2, 3)))                        # (B, Cout)
    seq = jnp.stack(seq, axis=0)                                  # (T, B, F)

    Hd = params["lstm_whh"].shape[0]
    h = jnp.zeros((B, Hd), F32)
    c = jnp.zeros((B, Hd), F32)
    h2 = None
    for t in range(T):
        gates = seq[t] @ params["lstm_wih"] + h @ params["lstm_whh"] + params["lstm_b"][0]
        i_g = jax.nn.sigmoid(gates[:, 0 * Hd:1 * Hd])
        f_g = jax.nn.sigmoid(gates[:, 1 * Hd:2 * Hd])
        g_g = jnp.tanh(gates[:, 2 * Hd:3 * Hd])
        o_g = jax.nn.sigmoid(gates[:, 3 * Hd:4 * Hd])
        c = f_g * c + i_g * g_g
        h = o_g * jnp.tanh(c)
        if t == 2:
            h2 = h
    y = h2 * params["bn1_scale"][0] + params["bn1_shift"][0]
    y = jnp.where(y > 0.0, y, 0.1 * y)
    return y @ params["out_w"] + params["out_b"][0]


# ----------------------------------------------------------------------------
if __name__ == "__main__":
    # Config consistent with the module:
    #   number_of_class=5, number_of_blocks=2, number_of_features_output=[8,16],
    #   number_of_channels(Hc)=8, filter_size=(1,5), hidden_dim=32 (so 4H=128),
    #   T=8 time steps (module needs >=3 since it indexes lstm_output[2]),
    #   batch=2, W=16 time samples.  => R = Hc*T*B = 128 (one full lane group).
    B, T, Hc, W = 2, 8, 8, 16
    n_features = [8, 16]
    filter_w = 5
    hidden_dim = 32
    n_class = 5

    key = jax.random.PRNGKey(0)
    kx, kp = jax.random.split(key)
    x = jax.random.normal(kx, (B, 1, T, Hc, W), F32)
    params = make_params(kp, n_features, filter_w, hidden_dim, n_class, n_features[-1])

    out = jax.block_until_ready(forward(x, params))
    ref = ref_forward(x, params)

    assert out.shape == (B, n_class), out.shape
    assert bool(jnp.all(jnp.isfinite(out)))
    assert bool(jnp.allclose(out, ref, rtol=2e-2, atol=2e-2)), (out, ref)

    print("KERNEL_OK")
</pallas_src>

<mosaic_0001>
module attributes {stable_mosaic.version = 11 : i64} {
  func.func @kernel(%arg0: memref<1x16x128xf32, #tpu.memory_space<vmem>>, %arg1: memref<8x5xf32, #tpu.memory_space<vmem>>, %arg2: memref<8x1xf32, #tpu.memory_space<vmem>>, %arg3: memref<16x40xf32, #tpu.memory_space<vmem>>, %arg4: memref<16x1xf32, #tpu.memory_space<vmem>>, %arg5: memref<128x16xf32, #tpu.memory_space<vmem>>, %arg6: memref<128x16xf32, #tpu.memory_space<vmem>>, %arg7: memref<128x32xf32, #tpu.memory_space<vmem>>, %arg8: memref<128x1xf32, #tpu.memory_space<vmem>>, %arg9: memref<32x1xf32, #tpu.memory_space<vmem>>, %arg10: memref<32x1xf32, #tpu.memory_space<vmem>>, %arg11: memref<5x32xf32, #tpu.memory_space<vmem>>, %arg12: memref<5x1xf32, #tpu.memory_space<vmem>>, %arg13: memref<5x2xf32, #tpu.memory_space<vmem>>) attributes {dimension_semantics = [], scalar_prefetch = 0 : i64, scratch_operands = 0 : i64, tpu.core_type = #tpu.core_type<tc>} {
    %c0 = arith.constant 0 : index
    %c0_0 = arith.constant 0 : index
    %c0_1 = arith.constant 0 : index
    %0 = vector.load %arg0[%c0, %c0_0, %c0_1] : memref<1x16x128xf32, #tpu.memory_space<vmem>>, vector<1x16x128xf32>
    %1 = vector.extract_strided_slice %0 {offsets = [0, 0, 0], sizes = [1, 1, 128], strides = [1, 1, 1]} : vector<1x16x128xf32> to vector<1x1x128xf32>
    %2 = vector.shape_cast %1 : vector<1x1x128xf32> to vector<1x128xf32>
    %3 = vector.extract_strided_slice %0 {offsets = [0, 1, 0], sizes = [1, 1, 128], strides = [1, 1, 1]} : vector<1x16x128xf32> to vector<1x1x128xf32>
    %4 = vector.shape_cast %3 : vector<1x1x128xf32> to vector<1x128xf32>
    %5 = vector.extract_strided_slice %0 {offsets = [0, 2, 0], sizes = [1, 1, 128], strides = [1, 1, 1]} : vector<1x16x128xf32> to vector<1x1x128xf32>
    %6 = vector.shape_cast %5 : vector<1x1x128xf32> to vector<1x128xf32>
    %7 = vector.extract_strided_slice %0 {offsets = [0, 3, 0], sizes = [1, 1, 128], strides = [1, 1, 1]} : vector<1x16x128xf32> to vector<1x1x128xf32>
    %8 = vector.shape_cast %7 : vector<1x1x128xf32> to vector<1x128xf32>
    %9 = vector.extract_strided_slice %0 {offsets = [0, 4, 0], sizes = [1, 1, 128], strides = [1, 1, 1]} : vector<1x16x128xf32> to vector<1x1x128xf32>
    %10 = vector.shape_cast %9 : vector<1x1x128xf32> to vector<1x128xf32>
    %11 = vector.extract_strided_slice %0 {offsets = [0, 5, 0], sizes = [1, 1, 128], strides = [1, 1, 1]} : vector<1x16x128xf32> to vector<1x1x128xf32>
    %12 = vector.shape_cast %11 : vector<1x1x128xf32> to vector<1x128xf32>
    %13 = vector.extract_strided_slice %0 {offsets = [0, 6, 0], sizes = [1, 1, 128], strides = [1, 1, 1]} : vector<1x16x128xf32> to vector<1x1x128xf32>
    %14 = vector.shape_cast %13 : vector<1x1x128xf32> to vector<1x128xf32>
    %15 = vector.extract_strided_slice %0 {offsets = [0, 7, 0], sizes = [1, 1, 128], strides = [1, 1, 1]} : vector<1x16x128xf32> to vector<1x1x128xf32>
    %16 = vector.shape_cast %15 : vector<1x1x128xf32> to vector<1x128xf32>
    %17 = vector.extract_strided_slice %0 {offsets = [0, 8, 0], sizes = [1, 1, 128], strides = [1, 1, 1]} : vector<1x16x128xf32> to vector<1x1x128xf32>
    %18 = vector.shape_cast %17 : vector<1x1x128xf32> to vector<1x128xf32>
    %19 = vector.extract_strided_slice %0 {offsets = [0, 9, 0], sizes = [1, 1, 128], strides = [1, 1, 1]} : vector<1x16x128xf32> to vector<1x1x128xf32>
    %20 = vector.shape_cast %19 : vector<1x1x128xf32> to vector<1x128xf32>
    %21 = vector.extract_strided_slice %0 {offsets = [0, 10, 0], sizes = [1, 1, 128], strides = [1, 1, 1]} : vector<1x16x128xf32> to vector<1x1x128xf32>
    %22 = vector.shape_cast %21 : vector<1x1x128xf32> to vector<1x128xf32>
    %23 = vector.extract_strided_slice %0 {offsets = [0, 11, 0], sizes = [1, 1, 128], strides = [1, 1, 1]} : vector<1x16x128xf32> to vector<1x1x128xf32>
    %24 = vector.shape_cast %23 : vector<1x1x128xf32> to vector<1x128xf32>
    %25 = vector.extract_strided_slice %0 {offsets = [0, 12, 0], sizes = [1, 1, 128], strides = [1, 1, 1]} : vector<1x16x128xf32> to vector<1x1x128xf32>
    %26 = vector.shape_cast %25 : vector<1x1x128xf32> to vector<1x128xf32>
    %27 = vector.extract_strided_slice %0 {offsets = [0, 13, 0], sizes = [1, 1, 128], strides = [1, 1, 1]} : vector<1x16x128xf32> to vector<1x1x128xf32>
    %28 = vector.shape_cast %27 : vector<1x1x128xf32> to vector<1x128xf32>
    %29 = vector.extract_strided_slice %0 {offsets = [0, 14, 0], sizes = [1, 1, 128], strides = [1, 1, 1]} : vector<1x16x128xf32> to vector<1x1x128xf32>
    %30 = vector.shape_cast %29 : vector<1x1x128xf32> to vector<1x128xf32>
    %31 = vector.extract_strided_slice %0 {offsets = [0, 15, 0], sizes = [1, 1, 128], strides = [1, 1, 1]} : vector<1x16x128xf32> to vector<1x1x128xf32>
    %32 = vector.shape_cast %31 : vector<1x1x128xf32> to vector<1x128xf32>
    %c0_2 = arith.constant 0 : index
    %c0_3 = arith.constant 0 : index
    %33 = vector.load %arg1[%c0_2, %c0_3] : memref<8x5xf32, #tpu.memory_space<vmem>>, vector<8x5xf32>
    %c0_4 = arith.constant 0 : index
    %c0_5 = arith.constant 0 : index
    %34 = vector.load %arg2[%c0_4, %c0_5] : memref<8x1xf32, #tpu.memory_space<vmem>>, vector<8x1xf32>
    %35 = tpu.concatenate %2, %4, %6, %8, %10 in 0 : vector<1x128xf32>, vector<1x128xf32>, vector<1x128xf32>, vector<1x128xf32>, vector<1x128xf32> -> vector<5x128xf32>
    %cst = arith.constant dense<0.000000e+00> : vector<8x128xf32>
    %36 = tpu.matmul %33, %35, %cst {dimension_numbers = #tpu.dot_dimension_numbers<[1], [0], [0], [1], [0, 0, 1, 1], [], []>} : vector<8x5xf32>, vector<5x128xf32>, vector<8x128xf32> -> vector<8x128xf32>
    %37 = vector.broadcast %34 : vector<8x1xf32> to vector<8x128xf32>
    %38 = arith.addf %36, %37 : vector<8x128xf32>
    %cst_6 = arith.constant 0.000000e+00 : f32
    %39 = vector.broadcast %cst_6 : f32 to vector<8x128xf32>
    %40 = arith.cmpf ogt, %38, %39 : vector<8x128xf32>
    %cst_7 = arith.constant 1.000000e-01 : f32
    %41 = vector.broadcast %cst_7 : f32 to vector<8x128xf32>
    %42 = arith.mulf %41, %38 : vector<8x128xf32>
    %43 = arith.select %40, %38, %42 : vector<8x128xi1>, vector<8x128xf32>
    %44 = tpu.concatenate %4, %6, %8, %10, %12 in 0 : vector<1x128xf32>, vector<1x128xf32>, vector<1x128xf32>, vector<1x128xf32>, vector<1x128xf32> -> vector<5x128xf32>
    %cst_8 = arith.constant dense<0.000000e+00> : vector<8x128xf32>
    %45 = tpu.matmul %33, %44, %cst_8 {dimension_numbers = #tpu.dot_dimension_numbers<[1], [0], [0], [1], [0, 0, 1, 1], [], []>} : vector<8x5xf32>, vector<5x128xf32>, vector<8x128xf32> -> vector<8x128xf32>
    %46 = vector.broadcast %34 : vector<8x1xf32> to vector<8x128xf32>
    %47 = arith.addf %45, %46 : vector<8x128xf32>
    %cst_9 = arith.constant 0.000000e+00 : f32
    %48 = vector.broadcast %cst_9 : f32 to vector<8x128xf32>
    %49 = arith.cmpf ogt, %47, %48 : vector<8x128xf32>
    %cst_10 = arith.constant 1.000000e-01 : f32
    %50 = vector.broadcast %cst_10 : f32 to vector<8x128xf32>
    %51 = arith.mulf %50, %47 : vector<8x128xf32>
    %52 = arith.select %49, %47, %51 : vector<8x128xi1>, vector<8x128xf32>
    %53 = tpu.concatenate %6, %8, %10, %12, %14 in 0 : vector<1x128xf32>, vector<1x128xf32>, vector<1x128xf32>, vector<1x128xf32>, vector<1x128xf32> -> vector<5x128xf32>
    %cst_11 = arith.constant dense<0.000000e+00> : vector<8x128xf32>
    %54 = tpu.matmul %33, %53, %cst_11 {dimension_numbers = #tpu.dot_dimension_numbers<[1], [0], [0], [1], [0, 0, 1, 1], [], []>} : vector<8x5xf32>, vector<5x128xf32>, vector<8x128xf32> -> vector<8x128xf32>
    %55 = vector.broadcast %34 : vector<8x1xf32> to vector<8x128xf32>
    %56 = arith.addf %54, %55 : vector<8x128xf32>
    %cst_12 = arith.constant 0.000000e+00 : f32
    %57 = vector.broadcast %cst_12 : f32 to vector<8x128xf32>
    %58 = arith.cmpf ogt, %56, %57 : vector<8x128xf32>
    %cst_13 = arith.constant 1.000000e-01 : f32
    %59 = vector.broadcast %cst_13 : f32 to vector<8x128xf32>
    %60 = arith.mulf %59, %56 : vector<8x128xf32>
    %61 = arith.select %58, %56, %60 : vector<8x128xi1>, vector<8x128xf32>
    %62 = tpu.concatenate %8, %10, %12, %14, %16 in 0 : vector<1x128xf32>, vector<1x128xf32>, vector<1x128xf32>, vector<1x128xf32>, vector<1x128xf32> -> vector<5x128xf32>
    %cst_14 = arith.constant dense<0.000000e+00> : vector<8x128xf32>
    %63 = tpu.matmul %33, %62, %cst_14 {dimension_numbers = #tpu.dot_dimension_numbers<[1], [0], [0], [1], [0, 0, 1, 1], [], []>} : vector<8x5xf32>, vector<5x128xf32>, vector<8x128xf32> -> vector<8x128xf32>
    %64 = vector.broadcast %34 : vector<8x1xf32> to vector<8x128xf32>
    %65 = arith.addf %63, %64 : vector<8x128xf32>
    %cst_15 = arith.constant 0.000000e+00 : f32
    %66 = vector.broadcast %cst_15 : f32 to vector<8x128xf32>
    %67 = arith.cmpf ogt, %65, %66 : vector<8x128xf32>
    %cst_16 = arith.constant 1.000000e-01 : f32
    %68 = vector.broadcast %cst_16 : f32 to vector<8x128xf32>
    %69 = arith.mulf %68, %65 : vector<8x128xf32>
    %70 = arith.select %67, %65, %69 : vector<8x128xi1>, vector<8x128xf32>
    %71 = tpu.concatenate %10, %12, %14, %16, %18 in 0 : vector<1x128xf32>, vector<1x128xf32>, vector<1x128xf32>, vector<1x128xf32>, vector<1x128xf32> -> vector<5x128xf32>
    %cst_17 = arith.constant dense<0.000000e+00> : vector<8x128xf32>
    %72 = tpu.matmul %33, %71, %cst_17 {dimension_numbers = #tpu.dot_dimension_numbers<[1], [0], [0], [1], [0, 0, 1, 1], [], []>} : vector<8x5xf32>, vector<5x128xf32>, vector<8x128xf32> -> vector<8x128xf32>
    %73 = vector.broadcast %34 : vector<8x1xf32> to vector<8x128xf32>
    %74 = arith.addf %72, %73 : vector<8x128xf32>
    %cst_18 = arith.constant 0.000000e+00 : f32
    %75 = vector.broadcast %cst_18 : f32 to vector<8x128xf32>
    %76 = arith.cmpf ogt, %74, %75 : vector<8x128xf32>
    %cst_19 = arith.constant 1.000000e-01 : f32
    %77 = vector.broadcast %cst_19 : f32 to vector<8x128xf32>
    %78 = arith.mulf %77, %74 : vector<8x128xf32>
    %79 = arith.select %76, %74, %78 : vector<8x128xi1>, vector<8x128xf32>
    %80 = tpu.concatenate %12, %14, %16, %18, %20 in 0 : vector<1x128xf32>, vector<1x128xf32>, vector<1x128xf32>, vector<1x128xf32>, vector<1x128xf32> -> vector<5x128xf32>
    %cst_20 = arith.constant dense<0.000000e+00> : vector<8x128xf32>
    %81 = tpu.matmul %33, %80, %cst_20 {dimension_numbers = #tpu.dot_dimension_numbers<[1], [0], [0], [1], [0, 0, 1, 1], [], []>} : vector<8x5xf32>, vector<5x128xf32>, vector<8x128xf32> -> vector<8x128xf32>
    %82 = vector.broadcast %34 : vector<8x1xf32> to vector<8x128xf32>
    %83 = arith.addf %81, %82 : vector<8x128xf32>
    %cst_21 = arith.constant 0.000000e+00 : f32
    %84 = vector.broadcast %cst_21 : f32 to vector<8x128xf32>
    %85 = arith.cmpf ogt, %83, %84 : vector<8x128xf32>
    %cst_22 = arith.constant 1.000000e-01 : f32
    %86 = vector.broadcast %cst_22 : f32 to vector<8x128xf32>
    %87 = arith.mulf %86, %83 : vector<8x128xf32>
    %88 = arith.select %85, %83, %87 : vector<8x128xi1>, vector<8x128xf32>
    %89 = tpu.concatenate %14, %16, %18, %20, %22 in 0 : vector<1x128xf32>, vector<1x128xf32>, vector<1x128xf32>, vector<1x128xf32>, vector<1x128xf32> -> vector<5x128xf32>
    %cst_23 = arith.constant dense<0.000000e+00> : vector<8x128xf32>
    %90 = tpu.matmul %33, %89, %cst_23 {dimension_numbers = #tpu.dot_dimension_numbers<[1], [0], [0], [1], [0, 0, 1, 1], [], []>} : vector<8x5xf32>, vector<5x128xf32>, vector<8x128xf32> -> vector<8x128xf32>
    %91 = vector.broadcast %34 : vector<8x1xf32> to vector<8x128xf32>
    %92 = arith.addf %90, %91 : vector<8x128xf32>
    %cst_24 = arith.constant 0.000000e+00 : f32
    %93 = vector.broadcast %cst_24 : f32 to vector<8x128xf32>
    %94 = arith.cmpf ogt, %92, %93 : vector<8x128xf32>
    %cst_25 = arith.constant 1.000000e-01 : f32
    %95 = vector.broadcast %cst_25 : f32 to vector<8x128xf32>
    %96 = arith.mulf %95, %92 : vector<8x128xf32>
    %97 = arith.select %94, %92, %96 : vector<8x128xi1>, vector<8x128xf32>
    %98 = tpu.concatenate %16, %18, %20, %22, %24 in 0 : vector<1x128xf32>, vector<1x128xf32>, vector<1x128xf32>, vector<1x128xf32>, vector<1x128xf32> -> vector<5x128xf32>
    %cst_26 = arith.constant dense<0.000000e+00> : vector<8x128xf32>
    %99 = tpu.matmul %33, %98, %cst_26 {dimension_numbers = #tpu.dot_dimension_numbers<[1], [0], [0], [1], [0, 0, 1, 1], [], []>} : vector<8x5xf32>, vector<5x128xf32>, vector<8x128xf32> -> vector<8x128xf32>
    %100 = vector.broadcast %34 : vector<8x1xf32> to vector<8x128xf32>
    %101 = arith.addf %99, %100 : vector<8x128xf32>
    %cst_27 = arith.constant 0.000000e+00 : f32
    %102 = vector.broadcast %cst_27 : f32 to vector<8x128xf32>
    %103 = arith.cmpf ogt, %101, %102 : vector<8x128xf32>
    %cst_28 = arith.constant 1.000000e-01 : f32
    %104 = vector.broadcast %cst_28 : f32 to vector<8x128xf32>
    %105 = arith.mulf %104, %101 : vector<8x128xf32>
    %106 = arith.select %103, %101, %105 : vector<8x128xi1>, vector<8x128xf32>
    %107 = tpu.concatenate %18, %20, %22, %24, %26 in 0 : vector<1x128xf32>, vector<1x128xf32>, vector<1x128xf32>, vector<1x128xf32>, vector<1x128xf32> -> vector<5x128xf32>
    %cst_29 = arith.constant dense<0.000000e+00> : vector<8x128xf32>
    %108 = tpu.matmul %33, %107, %cst_29 {dimension_numbers = #tpu.dot_dimension_numbers<[1], [0], [0], [1], [0, 0, 1, 1], [], []>} : vector<8x5xf32>, vector<5x128xf32>, vector<8x128xf32> -> vector<8x128xf32>
    %109 = vector.broadcast %34 : vector<8x1xf32> to vector<8x128xf32>
    %110 = arith.addf %108, %109 : vector<8x128xf32>
    %cst_30 = arith.constant 0.000000e+00 : f32
    %111 = vector.broadcast %cst_30 : f32 to vector<8x128xf32>
    %112 = arith.cmpf ogt, %110, %111 : vector<8x128xf32>
    %cst_31 = arith.constant 1.000000e-01 : f32
    %113 = vector.broadcast %cst_31 : f32 to vector<8x128xf32>
    %114 = arith.mulf %113, %110 : vector<8x128xf32>
    %115 = arith.select %112, %110, %114 : vector<8x128xi1>, vector<8x128xf32>
    %116 = tpu.concatenate %20, %22, %24, %26, %28 in 0 : vector<1x128xf32>, vector<1x128xf32>, vector<1x128xf32>, vector<1x128xf32>, vector<1x128xf32> -> vector<5x128xf32>
    %cst_32 = arith.constant dense<0.000000e+00> : vector<8x128xf32>
    %117 = tpu.matmul %33, %116, %cst_32 {dimension_numbers = #tpu.dot_dimension_numbers<[1], [0], [0], [1], [0, 0, 1, 1], [], []>} : vector<8x5xf32>, vector<5x128xf32>, vector<8x128xf32> -> vector<8x128xf32>
    %118 = vector.broadcast %34 : vector<8x1xf32> to vector<8x128xf32>
    %119 = arith.addf %117, %118 : vector<8x128xf32>
    %cst_33 = arith.constant 0.000000e+00 : f32
    %120 = vector.broadcast %cst_33 : f32 to vector<8x128xf32>
    %121 = arith.cmpf ogt, %119, %120 : vector<8x128xf32>
    %cst_34 = arith.constant 1.000000e-01 : f32
    %122 = vector.broadcast %cst_34 : f32 to vector<8x128xf32>
    %123 = arith.mulf %122, %119 : vector<8x128xf32>
    %124 = arith.select %121, %119, %123 : vector<8x128xi1>, vector<8x128xf32>
    %125 = tpu.concatenate %22, %24, %26, %28, %30 in 0 : vector<1x128xf32>, vector<1x128xf32>, vector<1x128xf32>, vector<1x128xf32>, vector<1x128xf32> -> vector<5x128xf32>
    %cst_35 = arith.constant dense<0.000000e+00> : vector<8x128xf32>
    %126 = tpu.matmul %33, %125, %cst_35 {dimension_numbers = #tpu.dot_dimension_numbers<[1], [0], [0], [1], [0, 0, 1, 1], [], []>} : vector<8x5xf32>, vector<5x128xf32>, vector<8x128xf32> -> vector<8x128xf32>
    %127 = vector.broadcast %34 : vector<8x1xf32> to vector<8x128xf32>
    %128 = arith.addf %126, %127 : vector<8x128xf32>
    %cst_36 = arith.constant 0.000000e+00 : f32
    %129 = vector.broadcast %cst_36 : f32 to vector<8x128xf32>
    %130 = arith.cmpf ogt, %128, %129 : vector<8x128xf32>
    %cst_37 = arith.constant 1.000000e-01 : f32
    %131 = vector.broadcast %cst_37 : f32 to vector<8x128xf32>
    %132 = arith.mulf %131, %128 : vector<8x128xf32>
    %133 = arith.select %130, %128, %132 : vector<8x128xi1>, vector<8x128xf32>
    %134 = tpu.concatenate %24, %26, %28, %30, %32 in 0 : vector<1x128xf32>, vector<1x128xf32>, vector<1x128xf32>, vector<1x128xf32>, vector<1x128xf32> -> vector<5x128xf32>
    %cst_38 = arith.constant dense<0.000000e+00> : vector<8x128xf32>
    %135 = tpu.matmul %33, %134, %cst_38 {dimension_numbers = #tpu.dot_dimension_numbers<[1], [0], [0], [1], [0, 0, 1, 1], [], []>} : vector<8x5xf32>, vector<5x128xf32>, vector<8x128xf32> -> vector<8x128xf32>
    %136 = vector.broadcast %34 : vector<8x1xf32> to vector<8x128xf32>
    %137 = arith.addf %135, %136 : vector<8x128xf32>
    %cst_39 = arith.constant 0.000000e+00 : f32
    %138 = vector.broadcast %cst_39 : f32 to vector<8x128xf32>
    %139 = arith.cmpf ogt, %137, %138 : vector<8x128xf32>
    %cst_40 = arith.constant 1.000000e-01 : f32
    %140 = vector.broadcast %cst_40 : f32 to vector<8x128xf32>
    %141 = arith.mulf %140, %137 : vector<8x128xf32>
    %142 = arith.select %139, %137, %141 : vector<8x128xi1>, vector<8x128xf32>
    %c0_41 = arith.constant 0 : index
    %c0_42 = arith.constant 0 : index
    %143 = vector.load %arg3[%c0_41, %c0_42] : memref<16x40xf32, #tpu.memory_space<vmem>>, vector<16x40xf32>
    %c0_43 = arith.constant 0 : index
    %c0_44 = arith.constant 0 : index
    %144 = vector.load %arg4[%c0_43, %c0_44] : memref<16x1xf32, #tpu.memory_space<vmem>>, vector<16x1xf32>
    %145 = tpu.concatenate %43, %52, %61, %70, %79 in 0 : vector<8x128xf32>, vector<8x128xf32>, vector<8x128xf32>, vector<8x128xf32>, vector<8x128xf32> -> vector<40x128xf32>
    %cst_45 = arith.constant dense<0.000000e+00> : vector<16x128xf32>
    %146 = tpu.matmul %143, %145, %cst_45 {dimension_numbers = #tpu.dot_dimension_numbers<[1], [0], [0], [1], [0, 0, 1, 1], [], []>} : vector<16x40xf32>, vector<40x128xf32>, vector<16x128xf32> -> vector<16x128xf32>
    %147 = vector.broadcast %144 : vector<16x1xf32> to vector<16x128xf32>
    %148 = arith.addf %146, %147 : vector<16x128xf32>
    %cst_46 = arith.constant 0.000000e+00 : f32
    %149 = vector.broadcast %cst_46 : f32 to vector<16x128xf32>
    %150 = arith.cmpf ogt, %148, %149 : vector<16x128xf32>
    %cst_47 = arith.constant 1.000000e-01 : f32
    %151 = vector.broadcast %cst_47 : f32 to vector<16x128xf32>
    %152 = arith.mulf %151, %148 : vector<16x128xf32>
    %153 = arith.select %150, %148, %152 : vector<16x128xi1>, vector<16x128xf32>
    %154 = tpu.concatenate %52, %61, %70, %79, %88 in 0 : vector<8x128xf32>, vector<8x128xf32>, vector<8x128xf32>, vector<8x128xf32>, vector<8x128xf32> -> vector<40x128xf32>
    %cst_48 = arith.constant dense<0.000000e+00> : vector<16x128xf32>
    %155 = tpu.matmul %143, %154, %cst_48 {dimension_numbers = #tpu.dot_dimension_numbers<[1], [0], [0], [1], [0, 0, 1, 1], [], []>} : vector<16x40xf32>, vector<40x128xf32>, vector<16x128xf32> -> vector<16x128xf32>
    %156 = vector.broadcast %144 : vector<16x1xf32> to vector<16x128xf32>
    %157 = arith.addf %155, %156 : vector<16x128xf32>
    %cst_49 = arith.constant 0.000000e+00 : f32
    %158 = vector.broadcast %cst_49 : f32 to vector<16x128xf32>
    %159 = arith.cmpf ogt, %157, %158 : vector<16x128xf32>
    %cst_50 = arith.constant 1.000000e-01 : f32
    %160 = vector.broadcast %cst_50 : f32 to vector<16x128xf32>
    %161 = arith.mulf %160, %157 : vector<16x128xf32>
    %162 = arith.select %159, %157, %161 : vector<16x128xi1>, vector<16x128xf32>
    %163 = tpu.concatenate %61, %70, %79, %88, %97 in 0 : vector<8x128xf32>, vector<8x128xf32>, vector<8x128xf32>, vector<8x128xf32>, vector<8x128xf32> -> vector<40x128xf32>
    %cst_51 = arith.constant dense<0.000000e+00> : vector<16x128xf32>
    %164 = tpu.matmul %143, %163, %cst_51 {dimension_numbers = #tpu.dot_dimension_numbers<[1], [0], [0], [1], [0, 0, 1, 1], [], []>} : vector<16x40xf32>, vector<40x128xf32>, vector<16x128xf32> -> vector<16x128xf32>
    %165 = vector.broadcast %144 : vector<16x1xf32> to vector<16x128xf32>
    %166 = arith.addf %164, %165 : vector<16x128xf32>
    %cst_52 = arith.constant 0.000000e+00 : f32
    %167 = vector.broadcast %cst_52 : f32 to vector<16x128xf32>
    %168 = arith.cmpf ogt, %166, %167 : vector<16x128xf32>
    %cst_53 = arith.constant 1.000000e-01 : f32
    %169 = vector.broadcast %cst_53 : f32 to vector<16x128xf32>
    %170 = arith.mulf %169, %166 : vector<16x128xf32>
    %171 = arith.select %168, %166, %170 : vector<16x128xi1>, vector<16x128xf32>
    %172 = tpu.concatenate %70, %79, %88, %97, %106 in 0 : vector<8x128xf32>, vector<8x128xf32>, vector<8x128xf32>, vector<8x128xf32>, vector<8x128xf32> -> vector<40x128xf32>
    %cst_54 = arith.constant dense<0.000000e+00> : vector<16x128xf32>
    %173 = tpu.matmul %143, %172, %cst_54 {dimension_numbers = #tpu.dot_dimension_numbers<[1], [0], [0], [1], [0, 0, 1, 1], [], []>} : vector<16x40xf32>, vector<40x128xf32>, vector<16x128xf32> -> vector<16x128xf32>
    %174 = vector.broadcast %144 : vector<16x1xf32> to vector<16x128xf32>
    %175 = arith.addf %173, %174 : vector<16x128xf32>
    %cst_55 = arith.constant 0.000000e+00 : f32
    %176 = vector.broadcast %cst_55 : f32 to vector<16x128xf32>
    %177 = arith.cmpf ogt, %175, %176 : vector<16x128xf32>
    %cst_56 = arith.constant 1.000000e-01 : f32
    %178 = vector.broadcast %cst_56 : f32 to vector<16x128xf32>
    %179 = arith.mulf %178, %175 : vector<16x128xf32>
    %180 = arith.select %177, %175, %179 : vector<16x128xi1>, vector<16x128xf32>
    %181 = tpu.concatenate %79, %88, %97, %106, %115 in 0 : vector<8x128xf32>, vector<8x128xf32>, vector<8x128xf32>, vector<8x128xf32>, vector<8x128xf32> -> vector<40x128xf32>
    %cst_57 = arith.constant dense<0.000000e+00> : vector<16x128xf32>
    %182 = tpu.matmul %143, %181, %cst_57 {dimension_numbers = #tpu.dot_dimension_numbers<[1], [0], [0], [1], [0, 0, 1, 1], [], []>} : vector<16x40xf32>, vector<40x128xf32>, vector<16x128xf32> -> vector<16x128xf32>
    %183 = vector.broadcast %144 : vector<16x1xf32> to vector<16x128xf32>
    %184 = arith.addf %182, %183 : vector<16x128xf32>
    %cst_58 = arith.constant 0.000000e+00 : f32
    %185 = vector.broadcast %cst_58 : f32 to vector<16x128xf32>
    %186 = arith.cmpf ogt, %184, %185 : vector<16x128xf32>
    %cst_59 = arith.constant 1.000000e-01 : f32
    %187 = vector.broadcast %cst_59 : f32 to vector<16x128xf32>
    %188 = arith.mulf %187, %184 : vector<16x128xf32>
    %189 = arith.select %186, %184, %188 : vector<16x128xi1>, vector<16x128xf32>
    %190 = tpu.concatenate %88, %97, %106, %115, %124 in 0 : vector<8x128xf32>, vector<8x128xf32>, vector<8x128xf32>, vector<8x128xf32>, vector<8x128xf32> -> vector<40x128xf32>
    %cst_60 = arith.constant dense<0.000000e+00> : vector<16x128xf32>
    %191 = tpu.matmul %143, %190, %cst_60 {dimension_numbers = #tpu.dot_dimension_numbers<[1], [0], [0], [1], [0, 0, 1, 1], [], []>} : vector<16x40xf32>, vector<40x128xf32>, vector<16x128xf32> -> vector<16x128xf32>
    %192 = vector.broadcast %144 : vector<16x1xf32> to vector<16x128xf32>
    %193 = arith.addf %191, %192 : vector<16x128xf32>
    %cst_61 = arith.constant 0.000000e+00 : f32
    %194 = vector.broadcast %cst_61 : f32 to vector<16x128xf32>
    %195 = arith.cmpf ogt, %193, %194 : vector<16x128xf32>
    %cst_62 = arith.constant 1.000000e-01 : f32
    %196 = vector.broadcast %cst_62 : f32 to vector<16x128xf32>
    %197 = arith.mulf %196, %193 : vector<16x128xf32>
    %198 = arith.select %195, %193, %197 : vector<16x128xi1>, vector<16x128xf32>
    %199 = tpu.concatenate %97, %106, %115, %124, %133 in 0 : vector<8x128xf32>, vector<8x128xf32>, vector<8x128xf32>, vector<8x128xf32>, vector<8x128xf32> -> vector<40x128xf32>
    %cst_63 = arith.constant dense<0.000000e+00> : vector<16x128xf32>
    %200 = tpu.matmul %143, %199, %cst_63 {dimension_numbers = #tpu.dot_dimension_numbers<[1], [0], [0], [1], [0, 0, 1, 1], [], []>} : vector<16x40xf32>, vector<40x128xf32>, vector<16x128xf32> -> vector<16x128xf32>
    %201 = vector.broadcast %144 : vector<16x1xf32> to vector<16x128xf32>
    %202 = arith.addf %200, %201 : vector<16x128xf32>
    %cst_64 = arith.constant 0.000000e+00 : f32
    %203 = vector.broadcast %cst_64 : f32 to vector<16x128xf32>
    %204 = arith.cmpf ogt, %202, %203 : vector<16x128xf32>
    %cst_65 = arith.constant 1.000000e-01 : f32
    %205 = vector.broadcast %cst_65 : f32 to vector<16x128xf32>
    %206 = arith.mulf %205, %202 : vector<16x128xf32>
    %207 = arith.select %204, %202, %206 : vector<16x128xi1>, vector<16x128xf32>
    %208 = tpu.concatenate %106, %115, %124, %133, %142 in 0 : vector<8x128xf32>, vector<8x128xf32>, vector<8x128xf32>, vector<8x128xf32>, vector<8x128xf32> -> vector<40x128xf32>
    %cst_66 = arith.constant dense<0.000000e+00> : vector<16x128xf32>
    %209 = tpu.matmul %143, %208, %cst_66 {dimension_numbers = #tpu.dot_dimension_numbers<[1], [0], [0], [1], [0, 0, 1, 1], [], []>} : vector<16x40xf32>, vector<40x128xf32>, vector<16x128xf32> -> vector<16x128xf32>
    %210 = vector.broadcast %144 : vector<16x1xf32> to vector<16x128xf32>
    %211 = arith.addf %209, %210 : vector<16x128xf32>
    %cst_67 = arith.constant 0.000000e+00 : f32
    %212 = vector.broadcast %cst_67 : f32 to vector<16x128xf32>
    %213 = arith.cmpf ogt, %211, %212 : vector<16x128xf32>
    %cst_68 = arith.constant 1.000000e-01 : f32
    %214 = vector.broadcast %cst_68 : f32 to vector<16x128xf32>
    %215 = arith.mulf %214, %211 : vector<16x128xf32>
    %216 = arith.select %213, %211, %215 : vector<16x128xi1>, vector<16x128xf32>
    %217 = arith.addf %153, %162 : vector<16x128xf32>
    %218 = arith.addf %217, %171 : vector<16x128xf32>
    %219 = arith.addf %218, %180 : vector<16x128xf32>
    %220 = arith.addf %219, %189 : vector<16x128xf32>
    %221 = arith.addf %220, %198 : vector<16x128xf32>
    %222 = arith.addf %221, %207 : vector<16x128xf32>
    %223 = arith.addf %222, %216 : vector<16x128xf32>
    %c0_69 = arith.constant 0 : index
    %c0_70 = arith.constant 0 : index
    %224 = vector.load %arg5[%c0_69, %c0_70] : memref<128x16xf32, #tpu.memory_space<vmem>>, vector<128x16xf32>
    %cst_71 = arith.constant dense<0.000000e+00> : vector<16x16xf32>
    %225 = tpu.matmul %223, %224, %cst_71 {dimension_numbers = #tpu.dot_dimension_numbers<[1], [0], [0], [1], [0, 0, 1, 1], [], []>} : vector<16x128xf32>, vector<128x16xf32>, vector<16x16xf32> -> vector<16x16xf32>
    %c0_72 = arith.constant 0 : index
    %c0_73 = arith.constant 0 : index
    %226 = vector.load %arg7[%c0_72, %c0_73] : memref<128x32xf32, #tpu.memory_space<vmem>>, vector<128x32xf32>
    %c0_74 = arith.constant 0 : index
    %c0_75 = arith.constant 0 : index
    %227 = vector.load %arg6[%c0_74, %c0_75] : memref<128x16xf32, #tpu.memory_space<vmem>>, vector<128x16xf32>
    %cst_76 = arith.constant dense<0.000000e+00> : vector<128x16xf32>
    %228 = tpu.matmul %227, %225, %cst_76 {dimension_numbers = #tpu.dot_dimension_numbers<[1], [0], [0], [1], [0, 0, 1, 1], [], []>} : vector<128x16xf32>, vector<16x16xf32>, vector<128x16xf32> -> vector<128x16xf32>
    %c0_77 = arith.constant 0 : index
    %c0_78 = arith.constant 0 : index
    %229 = vector.load %arg8[%c0_77, %c0_78] : memref<128x1xf32, #tpu.memory_space<vmem>>, vector<128x1xf32>
    %230 = vector.broadcast %229 : vector<128x1xf32> to vector<128x16xf32>
    %231 = arith.addf %228, %230 : vector<128x16xf32>
    %cst_79 = arith.constant 0.000000e+00 : f32
    %232 = vector.broadcast %cst_79 : f32 to vector<32x2xf32>
    %cst_80 = arith.constant 0.000000e+00 : f32
    %233 = vector.broadcast %cst_80 : f32 to vector<32x2xf32>
    %234 = vector.extract_strided_slice %231 {offsets = [0, 0], sizes = [128, 2], strides = [1, 1]} : vector<128x16xf32> to vector<128x2xf32>
    %cst_81 = arith.constant dense<0.000000e+00> : vector<128x2xf32>
    %235 = tpu.matmul %226, %232, %cst_81 {dimension_numbers = #tpu.dot_dimension_numbers<[1], [0], [0], [1], [0, 0, 1, 1], [], []>} : vector<128x32xf32>, vector<32x2xf32>, vector<128x2xf32> -> vector<128x2xf32>
    %236 = arith.addf %234, %235 : vector<128x2xf32>
    %237 = vector.extract_strided_slice %236 {offsets = [0, 0], sizes = [32, 2], strides = [1, 1]} : vector<128x2xf32> to vector<32x2xf32>
    %238 = arith.negf %237 : vector<32x2xf32>
    %239 = math.exp %238 : vector<32x2xf32>
    %cst_82 = arith.constant 1.000000e+00 : f32
    %240 = vector.broadcast %cst_82 : f32 to vector<32x2xf32>
    %241 = arith.addf %240, %239 : vector<32x2xf32>
    %242 = arith.divf %240, %241 : vector<32x2xf32>
    %243 = vector.extract_strided_slice %236 {offsets = [32, 0], sizes = [32, 2], strides = [1, 1]} : vector<128x2xf32> to vector<32x2xf32>
    %244 = arith.negf %243 : vector<32x2xf32>
    %245 = math.exp %244 : vector<32x2xf32>
    %cst_83 = arith.constant 1.000000e+00 : f32
    %246 = vector.broadcast %cst_83 : f32 to vector<32x2xf32>
    %247 = arith.addf %246, %245 : vector<32x2xf32>
    %248 = arith.divf %246, %247 : vector<32x2xf32>
    %249 = vector.extract_strided_slice %236 {offsets = [64, 0], sizes = [32, 2], strides = [1, 1]} : vector<128x2xf32> to vector<32x2xf32>
    %250 = math.tanh %249 : vector<32x2xf32>
    %251 = vector.extract_strided_slice %236 {offsets = [96, 0], sizes = [32, 2], strides = [1, 1]} : vector<128x2xf32> to vector<32x2xf32>
    %252 = arith.negf %251 : vector<32x2xf32>
    %253 = math.exp %252 : vector<32x2xf32>
    %cst_84 = arith.constant 1.000000e+00 : f32
    %254 = vector.broadcast %cst_84 : f32 to vector<32x2xf32>
    %255 = arith.addf %254, %253 : vector<32x2xf32>
    %256 = arith.divf %254, %255 : vector<32x2xf32>
    %257 = arith.mulf %248, %233 : vector<32x2xf32>
    %258 = arith.mulf %242, %250 : vector<32x2xf32>
    %259 = arith.addf %257, %258 : vector<32x2xf32>
    %260 = math.tanh %259 : vector<32x2xf32>
    %261 = arith.mulf %256, %260 : vector<32x2xf32>
    %262 = vector.extract_strided_slice %231 {offsets = [0, 2], sizes = [128, 2], strides = [1, 1]} : vector<128x16xf32> to vector<128x2xf32>
    %cst_85 = arith.constant dense<0.000000e+00> : vector<128x2xf32>
    %263 = tpu.matmul %226, %261, %cst_85 {dimension_numbers = #tpu.dot_dimension_numbers<[1], [0], [0], [1], [0, 0, 1, 1], [], []>} : vector<128x32xf32>, vector<32x2xf32>, vector<128x2xf32> -> vector<128x2xf32>
    %264 = arith.addf %262, %263 : vector<128x2xf32>
    %265 = vector.extract_strided_slice %264 {offsets = [0, 0], sizes = [32, 2], strides = [1, 1]} : vector<128x2xf32> to vector<32x2xf32>
    %266 = arith.negf %265 : vector<32x2xf32>
    %267 = math.exp %266 : vector<32x2xf32>
    %cst_86 = arith.constant 1.000000e+00 : f32
    %268 = vector.broadcast %cst_86 : f32 to vector<32x2xf32>
    %269 = arith.addf %268, %267 : vector<32x2xf32>
    %270 = arith.divf %268, %269 : vector<32x2xf32>
    %271 = vector.extract_strided_slice %264 {offsets = [32, 0], sizes = [32, 2], strides = [1, 1]} : vector<128x2xf32> to vector<32x2xf32>
    %272 = arith.negf %271 : vector<32x2xf32>
    %273 = math.exp %272 : vector<32x2xf32>
    %cst_87 = arith.constant 1.000000e+00 : f32
    %274 = vector.broadcast %cst_87 : f32 to vector<32x2xf32>
    %275 = arith.addf %274, %273 : vector<32x2xf32>
    %276 = arith.divf %274, %275 : vector<32x2xf32>
    %277 = vector.extract_strided_slice %264 {offsets = [64, 0], sizes = [32, 2], strides = [1, 1]} : vector<128x2xf32> to vector<32x2xf32>
    %278 = math.tanh %277 : vector<32x2xf32>
    %279 = vector.extract_strided_slice %264 {offsets = [96, 0], sizes = [32, 2], strides = [1, 1]} : vector<128x2xf32> to vector<32x2xf32>
    %280 = arith.negf %279 : vector<32x2xf32>
    %281 = math.exp %280 : vector<32x2xf32>
    %cst_88 = arith.constant 1.000000e+00 : f32
    %282 = vector.broadcast %cst_88 : f32 to vector<32x2xf32>
    %283 = arith.addf %282, %281 : vector<32x2xf32>
    %284 = arith.divf %282, %283 : vector<32x2xf32>
    %285 = arith.mulf %276, %259 : vector<32x2xf32>
    %286 = arith.mulf %270, %278 : vector<32x2xf32>
    %287 = arith.addf %285, %286 : vector<32x2xf32>
    %288 = math.tanh %287 : vector<32x2xf32>
    %289 = arith.mulf %284, %288 : vector<32x2xf32>
    %290 = vector.extract_strided_slice %231 {offsets = [0, 4], sizes = [128, 2], strides = [1, 1]} : vector<128x16xf32> to vector<128x2xf32>
    %cst_89 = arith.constant dense<0.000000e+00> : vector<128x2xf32>
    %291 = tpu.matmul %226, %289, %cst_89 {dimension_numbers = #tpu.dot_dimension_numbers<[1], [0], [0], [1], [0, 0, 1, 1], [], []>} : vector<128x32xf32>, vector<32x2xf32>, vector<128x2xf32> -> vector<128x2xf32>
    %292 = arith.addf %290, %291 : vector<128x2xf32>
    %293 = vector.extract_strided_slice %292 {offsets = [0, 0], sizes = [32, 2], strides = [1, 1]} : vector<128x2xf32> to vector<32x2xf32>
    %294 = arith.negf %293 : vector<32x2xf32>
    %295 = math.exp %294 : vector<32x2xf32>
    %cst_90 = arith.constant 1.000000e+00 : f32
    %296 = vector.broadcast %cst_90 : f32 to vector<32x2xf32>
    %297 = arith.addf %296, %295 : vector<32x2xf32>
    %298 = arith.divf %296, %297 : vector<32x2xf32>
    %299 = vector.extract_strided_slice %292 {offsets = [32, 0], sizes = [32, 2], strides = [1, 1]} : vector<128x2xf32> to vector<32x2xf32>
    %300 = arith.negf %299 : vector<32x2xf32>
    %301 = math.exp %300 : vector<32x2xf32>
    %cst_91 = arith.constant 1.000000e+00 : f32
    %302 = vector.broadcast %cst_91 : f32 to vector<32x2xf32>
    %303 = arith.addf %302, %301 : vector<32x2xf32>
    %304 = arith.divf %302, %303 : vector<32x2xf32>
    %305 = vector.extract_strided_slice %292 {offsets = [64, 0], sizes = [32, 2], strides = [1, 1]} : vector<128x2xf32> to vector<32x2xf32>
    %306 = math.tanh %305 : vector<32x2xf32>
    %307 = vector.extract_strided_slice %292 {offsets = [96, 0], sizes = [32, 2], strides = [1, 1]} : vector<128x2xf32> to vector<32x2xf32>
    %308 = arith.negf %307 : vector<32x2xf32>
    %309 = math.exp %308 : vector<32x2xf32>
    %cst_92 = arith.constant 1.000000e+00 : f32
    %310 = vector.broadcast %cst_92 : f32 to vector<32x2xf32>
    %311 = arith.addf %310, %309 : vector<32x2xf32>
    %312 = arith.divf %310, %311 : vector<32x2xf32>
    %313 = arith.mulf %304, %287 : vector<32x2xf32>
    %314 = arith.mulf %298, %306 : vector<32x2xf32>
    %315 = arith.addf %313, %314 : vector<32x2xf32>
    %316 = math.tanh %315 : vector<32x2xf32>
    %317 = arith.mulf %312, %316 : vector<32x2xf32>
    %c0_93 = arith.constant 0 : index
    %c0_94 = arith.constant 0 : index
    %318 = vector.load %arg9[%c0_93, %c0_94] : memref<32x1xf32, #tpu.memory_space<vmem>>, vector<32x1xf32>
    %319 = vector.broadcast %318 : vector<32x1xf32> to vector<32x2xf32>
    %320 = arith.mulf %317, %319 : vector<32x2xf32>
    %c0_95 = arith.constant 0 : index
    %c0_96 = arith.constant 0 : index
    %321 = vector.load %arg10[%c0_95, %c0_96] : memref<32x1xf32, #tpu.memory_space<vmem>>, vector<32x1xf32>
    %322 = vector.broadcast %321 : vector<32x1xf32> to vector<32x2xf32>
    %323 = arith.addf %320, %322 : vector<32x2xf32>
    %cst_97 = arith.constant 0.000000e+00 : f32
    %324 = vector.broadcast %cst_97 : f32 to vector<32x2xf32>
    %325 = arith.cmpf ogt, %323, %324 : vector<32x2xf32>
    %cst_98 = arith.constant 1.000000e-01 : f32
    %326 = vector.broadcast %cst_98 : f32 to vector<32x2xf32>
    %327 = arith.mulf %326, %323 : vector<32x2xf32>
    %328 = arith.select %325, %323, %327 : vector<32x2xi1>, vector<32x2xf32>
    %c0_99 = arith.constant 0 : index
    %c0_100 = arith.constant 0 : index
    %329 = vector.load %arg11[%c0_99, %c0_100] : memref<5x32xf32, #tpu.memory_space<vmem>>, vector<5x32xf32>
    %cst_101 = arith.constant dense<0.000000e+00> : vector<5x2xf32>
    %330 = tpu.matmul %329, %328, %cst_101 {dimension_numbers = #tpu.dot_dimension_numbers<[1], [0], [0], [1], [0, 0, 1, 1], [], []>} : vector<5x32xf32>, vector<32x2xf32>, vector<5x2xf32> -> vector<5x2xf32>
    %c0_102 = arith.constant 0 : index
    %c0_103 = arith.constant 0 : index
    %331 = vector.load %arg12[%c0_102, %c0_103] : memref<5x1xf32, #tpu.memory_space<vmem>>, vector<5x1xf32>
    %332 = vector.broadcast %331 : vector<5x1xf32> to vector<5x2xf32>
    %333 = arith.addf %330, %332 : vector<5x2xf32>
    %c0_104 = arith.constant 0 : index
    %c0_105 = arith.constant 0 : index
    %334 = vector.load %arg13[%c0_104, %c0_105] : memref<5x2xf32, #tpu.memory_space<vmem>>, vector<5x2xf32>
    tpu.vector_store %arg13[%c0_104, %c0_105], %333 {strides = array<i32>} : memref<5x2xf32, #tpu.memory_space<vmem>>, vector<5x2xf32>,
    return
  }
}

</mosaic_0001>

<llo_original>
// kernel: forward.1
$region0: #{forward.1}
  #allocation0 [shape = 'u32[]', space=smem, size = 0x4, offset = 0x4, fixed_abs, tag = 'smem constant byte address 0x4 - core index']
  #allocation1 [shape = 'u32[144,128]{1,0:T(1,128)}', space=vmem, size = 0x12000, scoped, tag = 'internal scratch']
  %s0 = inlined_call_operand.vmem [shape: f32[1,16,128], index: 0, kind: input, shape index: {}]
  %s1 = inlined_call_operand.vmem [shape: f32[8,5], index: 1, kind: input, shape index: {}]
  %s2 = inlined_call_operand.vmem [shape: f32[8,1], index: 2, kind: input, shape index: {}]
  %s3 = inlined_call_operand.vmem [shape: f32[16,40], index: 3, kind: input, shape index: {}]
  %s4 = inlined_call_operand.vmem [shape: f32[16,1], index: 4, kind: input, shape index: {}]
  %s5 = inlined_call_operand.vmem [shape: f32[128,16], index: 5, kind: input, shape index: {}]
  %s6 = inlined_call_operand.vmem [shape: f32[128,16], index: 6, kind: input, shape index: {}]
  %s7 = inlined_call_operand.vmem [shape: f32[128,32], index: 7, kind: input, shape index: {}]
  %s8 = inlined_call_operand.vmem [shape: f32[128,1], index: 8, kind: input, shape index: {}]
  %s9 = inlined_call_operand.vmem [shape: f32[32,1], index: 9, kind: input, shape index: {}]
  %s10 = inlined_call_operand.vmem [shape: f32[32,1], index: 10, kind: input, shape index: {}]
  %s11 = inlined_call_operand.vmem [shape: f32[5,32], index: 11, kind: input, shape index: {}]
  %s12 = inlined_call_operand.vmem [shape: f32[5,1], index: 12, kind: input, shape index: {}]
  %s13 = inlined_call_operand.vmem [shape: f32[5,2], index: 13, kind: output, shape index: {}]
  %s14 = sld [smem:[#allocation0]]
  $region62: #{forward.1} parent=0
    _
  %s16 = ssub.s32 1, %s14
  %s17 = scalar_select 0, %s16, %s14
  // Predicated region
  $region2: #{forward.1} parent=0 // pred_check
    _
  $region3: #{forward.1} parent=0 // pred_check_branch
    %19 = sbr.rel (0) target = $region5
  $region4: #{forward.1} parent=0 // pred_region
    _
  $region5: #{forward.1} parent=0 // pred_fallthru
    _
  // Predicated region
  $region6: #{forward.1} parent=0 // pred_check
    _
  $region7: #{forward.1} parent=0 // pred_check_branch
    %21 = sbr.rel (0) target = $region9
  $region8: #{forward.1} parent=0 // pred_region
    _
  $region9: #{forward.1} parent=0 // pred_fallthru
    _
  // Predicated region
  $region10: #{forward.1} parent=0 // pred_check
    _
  $region11: #{forward.1} parent=0 // pred_check_branch
    %23 = sbr.rel (0) target = $region13
  $region12: #{forward.1} parent=0 // pred_region
    _
  $region13: #{forward.1} parent=0 // pred_fallthru
    _
  // Predicated region
  $region14: #{forward.1} parent=0 // pred_check
    _
  $region15: #{forward.1} parent=0 // pred_check_branch
    %25 = sbr.rel (0) target = $region17
  $region16: #{forward.1} parent=0 // pred_region
    _
  $region17: #{forward.1} parent=0 // pred_fallthru
    _
  // Predicated region
  $region18: #{forward.1} parent=0 // pred_check
    _
  $region19: #{forward.1} parent=0 // pred_check_branch
    %27 = sbr.rel (0) target = $region21
  $region20: #{forward.1} parent=0 // pred_region
    _
  $region21: #{forward.1} parent=0 // pred_fallthru
    _
  // Predicated region
  $region22: #{forward.1} parent=0 // pred_check
    _
  $region23: #{forward.1} parent=0 // pred_check_branch
    %29 = sbr.rel (0) target = $region25
  $region24: #{forward.1} parent=0 // pred_region
    _
  $region25: #{forward.1} parent=0 // pred_fallthru
    _
  // Predicated region
  $region26: #{forward.1} parent=0 // pred_check
    _
  $region27: #{forward.1} parent=0 // pred_check_branch
    %31 = sbr.rel (0) target = $region29
  $region28: #{forward.1} parent=0 // pred_region
    _
  $region29: #{forward.1} parent=0 // pred_fallthru
    _
  // Predicated region
  $region30: #{forward.1} parent=0 // pred_check
    _
  $region31: #{forward.1} parent=0 // pred_check_branch
    %33 = sbr.rel (0) target = $region33
  $region32: #{forward.1} parent=0 // pred_region
    _
  $region33: #{forward.1} parent=0 // pred_fallthru
    _
  // Predicated region
  $region34: #{forward.1} parent=0 // pred_check
    _
  $region35: #{forward.1} parent=0 // pred_check_branch
    %35 = sbr.rel (0) target = $region37
  $region36: #{forward.1} parent=0 // pred_region
    _
  $region37: #{forward.1} parent=0 // pred_fallthru
    _
  // Predicated region
  $region38: #{forward.1} parent=0 // pred_check
    _
  $region39: #{forward.1} parent=0 // pred_check_branch
    %37 = sbr.rel (0) target = $region41
  $region40: #{forward.1} parent=0 // pred_region
    _
  $region41: #{forward.1} parent=0 // pred_fallthru
    _
  // Predicated region
  $region42: #{forward.1} parent=0 // pred_check
    _
  $region43: #{forward.1} parent=0 // pred_check_branch
    %39 = sbr.rel (0) target = $region45
  $region44: #{forward.1} parent=0 // pred_region
    _
  $region45: #{forward.1} parent=0 // pred_fallthru
    _
  // Predicated region
  $region46: #{forward.1} parent=0 // pred_check
    _
  $region47: #{forward.1} parent=0 // pred_check_branch
    %41 = sbr.rel (0) target = $region49
  $region48: #{forward.1} parent=0 // pred_region
    _
  $region49: #{forward.1} parent=0 // pred_fallthru
    _
  // Predicated region
  $region50: #{forward.1} parent=0 // pred_check
    _
  $region51: #{forward.1} parent=0 // pred_check_branch
    %43 = sbr.rel (0) target = $region53
  $region52: #{forward.1} parent=0 // pred_region
    _
  $region53: #{forward.1} parent=0 // pred_fallthru
    _
  %v44 = vld [vmem:[%s0] sm:$0xff]
  %v45 = vld [vmem:[%s0 + $0x8] sm:$0xff]
  %v46 = vld [vmem:[%s1] sm:$0xff]
  %v47 = vld [vmem:[%s2] sm:$0xff]
  %49 = vset.pattern.permute.xlu0 0
  %50 = vperm.xlu0 %49, %v47
  %v51 = vpop.permute.xlu0 %50
  %vm53 = vcmask 39936
  %v55 = vsel %vm53, %v46, 0
  %vm57 = vcmask 1044480
  %v59 = vsel %vm57, %v44, 0
  %61 = vmatprep.subr.mxu0 0.0
  %62 = vmatpush1.msra.mxu0 %v59
  %63 = vmatprep.subr.mxu0 0.0
  %64 = vmatpush1.msra.mxu0 0.0
  %65 = vmatprep.subr.mxu0 0.0
  %66 = vmatpush1.msra.mxu0 0.0
  %67 = vmatprep.subr.mxu0 0.0
  %68 = vmatpush1.msra.mxu0 0.0
  %69 = vmatprep.subr.mxu0 0.0
  %70 = vmatpush1.msra.mxu0 0.0
  %71 = vmatprep.subr.mxu0 0.0
  %72 = vmatpush1.msra.mxu0 0.0
  %73 = vmatprep.subr.mxu0 0.0
  %74 = vmatpush1.msra.mxu0 0.0
  %75 = vmatprep.subr.mxu0 0.0
  %76 = vmatpush1.msra.mxu0 0.0
  %77 = vmatprep.subr.mxu0 0.0
  %78 = vmatpush1.msra.mxu0 0.0
  %79 = vmatprep.subr.mxu0 0.0
  %80 = vmatpush1.msra.mxu0 0.0
  %81 = vmatprep.subr.mxu0 0.0
  %82 = vmatpush1.msra.mxu0 0.0
  %83 = vmatprep.subr.mxu0 0.0
  %84 = vmatpush1.msra.mxu0 0.0
  %85 = vmatprep.subr.mxu0 0.0
  %86 = vmatpush1.msra.mxu0 0.0
  %87 = vmatprep.subr.mxu0 0.0
  %88 = vmatpush1.msra.mxu0 0.0
  %89 = vmatprep.subr.mxu0 0.0
  %90 = vmatpush1.msra.mxu0 0.0
  %91 = vmatprep.subr.mxu0 0.0
  %92 = vmatpush1.msra.mxu0 0.0
  %93 = vmatprep.subr.mxu0 0.0
  %94 = vmatpush1.msra.mxu0 0.0
  %95 = vmatprep.subr.mxu0 0.0
  %96 = vmatpush1.msra.mxu0 0.0
  %97 = vmatprep.subr.mxu0 0.0
  %98 = vmatpush1.msra.mxu0 0.0
  %99 = vmatprep.subr.mxu0 0.0
  %100 = vmatpush1.msra.mxu0 0.0
  %101 = vmatprep.subr.mxu0 0.0
  %102 = vmatpush1.msra.mxu0 0.0
  %103 = vmatprep.subr.mxu0 0.0
  %104 = vmatpush1.msra.mxu0 0.0
  %105 = vmatprep.subr.mxu0 0.0
  %106 = vmatpush1.msra.mxu0 0.0
  %107 = vmatprep.subr.mxu0 0.0
  %108 = vmatpush1.msra.mxu0 0.0
  %109 = vmatprep.subr.mxu0 0.0
  %110 = vmatpush1.msra.mxu0 0.0
  %111 = vmatprep.subr.mxu0 0.0
  %112 = vmatpush1.msra.mxu0 0.0
  %113 = vmatprep.subr.mxu0 0.0
  %114 = vmatpush1.msra.mxu0 0.0
  %115 = vmatprep.subr.mxu0 0.0
  %116 = vmatpush1.msra.mxu0 0.0
  %117 = vmatprep.subr.mxu0 0.0
  %118 = vmatpush1.msra.mxu0 0.0
  %119 = vmatprep.subr.mxu0 0.0
  %120 = vmatpush1.msra.mxu0 0.0
  %121 = vmatprep.subr.mxu0 0.0
  %122 = vmatpush1.msra.mxu0 0.0
  %123 = vmatprep.subr.mxu0 0.0
  %124 = vmatpush1.msra.mxu0 0.0
  %125 = vmatprep.mubr.f32.mxu0 0.0
  %126 = vmatmul.mubr.f32.gmra.mrb[0].mxu0 %v55
  %v127 = vpop.f32.mrb[0].mxu0
  %v128 = vadd.f32 %v51, %v127
  %v129 = vpop.f32.mrb[0].mxu0
  %130 = vdwg.mxu0
  %vm131 = vcmp.gt.f32.partialorder %v128, 0.0
  %v132 = vmul.f32 %v128, 0.1
  %v133 = vsel %vm131, %v128, %v132
  %v134 = vrot.slane %v44, 1
  %vm136 = vcmask 1040384
  %vm137 = vcmask 1041408
  %v138 = vsel %vm137, %v134, %v134
  %vm139 = vcmask 1042432
  %v140 = vsel %vm139, %v138, %v134
  %vm141 = vcmask 1043456
  %v142 = vsel %vm141, %v140, %v134
  %v144 = vsel %vm57, %v142, 0
  %146 = vmatprep.subr.mxu0 0.0
  %147 = vmatpush1.msra.mxu0 %v144
  %148 = vmatprep.subr.mxu0 0.0
  %149 = vmatpush1.msra.mxu0 0.0
  %150 = vmatprep.subr.mxu0 0.0
  %151 = vmatpush1.msra.mxu0 0.0
  %152 = vmatprep.subr.mxu0 0.0
  %153 = vmatpush1.msra.mxu0 0.0
  %154 = vmatprep.subr.mxu0 0.0
  %155 = vmatpush1.msra.mxu0 0.0
  %156 = vmatprep.subr.mxu0 0.0
  %157 = vmatpush1.msra.mxu0 0.0
  %158 = vmatprep.subr.mxu0 0.0
  %159 = vmatpush1.msra.mxu0 0.0
  %160 = vmatprep.subr.mxu0 0.0
  %161 = vmatpush1.msra.mxu0 0.0
  %162 = vmatprep.subr.mxu0 0.0
  %163 = vmatpush1.msra.mxu0 0.0
  %164 = vmatprep.subr.mxu0 0.0
  %165 = vmatpush1.msra.mxu0 0.0
  %166 = vmatprep.subr.mxu0 0.0
  %167 = vmatpush1.msra.mxu0 0.0
  %168 = vmatprep.subr.mxu0 0.0
  %169 = vmatpush1.msra.mxu0 0.0
  %170 = vmatprep.subr.mxu0 0.0
  %171 = vmatpush1.msra.mxu0 0.0
  %172 = vmatprep.subr.mxu0 0.0
  %173 = vmatpush1.msra.mxu0 0.0
  %174 = vmatprep.subr.mxu0 0.0
  %175 = vmatpush1.msra.mxu0 0.0
  %176 = vmatprep.subr.mxu0 0.0
  %177 = vmatpush1.msra.mxu0 0.0
  %178 = vmatprep.subr.mxu0 0.0
  %179 = vmatpush1.msra.mxu0 0.0
  %180 = vmatprep.subr.mxu0 0.0
  %181 = vmatpush1.msra.mxu0 0.0
  %182 = vmatprep.subr.mxu0 0.0
  %183 = vmatpush1.msra.mxu0 0.0
  %184 = vmatprep.subr.mxu0 0.0
  %185 = vmatpush1.msra.mxu0 0.0
  %186 = vmatprep.subr.mxu0 0.0
  %187 = vmatpush1.msra.mxu0 0.0
  %188 = vmatprep.subr.mxu0 0.0
  %189 = vmatpush1.msra.mxu0 0.0
  %190 = vmatprep.subr.mxu0 0.0
  %191 = vmatpush1.msra.mxu0 0.0
  %192 = vmatprep.subr.mxu0 0.0
  %193 = vmatpush1.msra.mxu0 0.0
  %194 = vmatprep.subr.mxu0 0.0
  %195 = vmatpush1.msra.mxu0 0.0
  %196 = vmatprep.subr.mxu0 0.0
  %197 = vmatpush1.msra.mxu0 0.0
  %198 = vmatprep.subr.mxu0 0.0
  %199 = vmatpush1.msra.mxu0 0.0
  %200 = vmatprep.subr.mxu0 0.0
  %201 = vmatpush1.msra.mxu0 0.0
  %202 = vmatprep.subr.mxu0 0.0
  %203 = vmatpush1.msra.mxu0 0.0
  %204 = vmatprep.subr.mxu0 0.0
  %205 = vmatpush1.msra.mxu0 0.0
  %206 = vmatprep.subr.mxu0 0.0
  %207 = vmatpush1.msra.mxu0 0.0
  %208 = vmatprep.subr.mxu0 0.0
  %209 = vmatpush1.msra.mxu0 0.0
  %210 = vmatprep.mubr.f32.mxu0 0.0
  %211 = vmatmul.mubr.f32.gmra.mrb[0].mxu0 %v55
  %v212 = vpop.f32.mrb[0].mxu0
  %v213 = vadd.f32 %v51, %v212
  %v214 = vpop.f32.mrb[0].mxu0
  %215 = vdwg.mxu0
  %vm216 = vcmp.gt.f32.partialorder %v213, 0.0
  %v217 = vmul.f32 %v213, 0.1
  %v218 = vsel %vm216, %v213, %v217
  %v219 = vrot.slane %v44, 2
  %v221 = vsel %vm137, %v219, %v219
  %v222 = vsel %vm139, %v221, %v219
  %v223 = vsel %vm141, %v222, %v219
  %v225 = vsel %vm57, %v223, 0
  %227 = vmatprep.subr.mxu0 0.0
  %228 = vmatpush1.msra.mxu0 %v225
  %229 = vmatprep.subr.mxu0 0.0
  %230 = vmatpush1.msra.mxu0 0.0
  %231 = vmatprep.subr.mxu0 0.0
  %232 = vmatpush1.msra.mxu0 0.0
  %233 = vmatprep.subr.mxu0 0.0
  %234 = vmatpush1.msra.mxu0 0.0
  %235 = vmatprep.subr.mxu0 0.0
  %236 = vmatpush1.msra.mxu0 0.0
  %237 = vmatprep.subr.mxu0 0.0
  %238 = vmatpush1.msra.mxu0 0.0
  %239 = vmatprep.subr.mxu0 0.0
  %240 = vmatpush1.msra.mxu0 0.0
  %241 = vmatprep.subr.mxu0 0.0
  %242 = vmatpush1.msra.mxu0 0.0
  %243 = vmatprep.subr.mxu0 0.0
  %244 = vmatpush1.msra.mxu0 0.0
  %245 = vmatprep.subr.mxu0 0.0
  %246 = vmatpush1.msra.mxu0 0.0
  %247 = vmatprep.subr.mxu0 0.0
  %248 = vmatpush1.msra.mxu0 0.0
  %249 = vmatprep.subr.mxu0 0.0
  %250 = vmatpush1.msra.mxu0 0.0
  %251 = vmatprep.subr.mxu0 0.0
  %252 = vmatpush1.msra.mxu0 0.0
  %253 = vmatprep.subr.mxu0 0.0
  %254 = vmatpush1.msra.mxu0 0.0
  %255 = vmatprep.subr.mxu0 0.0
  %256 = vmatpush1.msra.mxu0 0.0
  %257 = vmatprep.subr.mxu0 0.0
  %258 = vmatpush1.msra.mxu0 0.0
  %259 = vmatprep.subr.mxu0 0.0
  %260 = vmatpush1.msra.mxu0 0.0
  %261 = vmatprep.subr.mxu0 0.0
  %262 = vmatpush1.msra.mxu0 0.0
  %263 = vmatprep.subr.mxu0 0.0
  %264 = vmatpush1.msra.mxu0 0.0
  %265 = vmatprep.subr.mxu0 0.0
  %266 = vmatpush1.msra.mxu0 0.0
  %267 = vmatprep.subr.mxu0 0.0
  %268 = vmatpush1.msra.mxu0 0.0
  %269 = vmatprep.subr.mxu0 0.0
  %270 = vmatpush1.msra.mxu0 0.0
  %271 = vmatprep.subr.mxu0 0.0
  %272 = vmatpush1.msra.mxu0 0.0
  %273 = vmatprep.subr.mxu0 0.0
  %274 = vmatpush1.msra.mxu0 0.0
  %275 = vmatprep.subr.mxu0 0.0
  %276 = vmatpush1.msra.mxu0 0.0
  %277 = vmatprep.subr.mxu0 0.0
  %278 = vmatpush1.msra.mxu0 0.0
  %279 = vmatprep.subr.mxu0 0.0
  %280 = vmatpush1.msra.mxu0 0.0
  %281 = vmatprep.subr.mxu0 0.0
  %282 = vmatpush1.msra.mxu0 0.0
  %283 = vmatprep.subr.mxu0 0.0
  %284 = vmatpush1.msra.mxu0 0.0
  %285 = vmatprep.subr.mxu0 0.0
  %286 = vmatpush1.msra.mxu0 0.0
  %287 = vmatprep.subr.mxu0 0.0
  %288 = vmatpush1.msra.mxu0 0.0
  %289 = vmatprep.subr.mxu0 0.0
  %290 = vmatpush1.msra.mxu0 0.0
  %291 = vmatprep.mubr.f32.mxu0 0.0
  %292 = vmatmul.mubr.f32.gmra.mrb[0].mxu0 %v55
  %v293 = vpop.f32.mrb[0].mxu0
  %v294 = vadd.f32 %v51, %v293
  %v295 = vpop.f32.mrb[0].mxu0
  %296 = vdwg.mxu0
  %vm297 = vcmp.gt.f32.partialorder %v294, 0.0
  %v298 = vmul.f32 %v294, 0.1
  %v299 = vsel %vm297, %v294, %v298
  %v300 = vrot.slane %v44, 3
  %v302 = vsel %vm137, %v300, %v300
  %v303 = vsel %vm139, %v302, %v300
  %v304 = vsel %vm141, %v303, %v300
  %v306 = vsel %vm57, %v304, 0
  %308 = vmatprep.subr.mxu0 0.0
  %309 = vmatpush1.msra.mxu0 %v306
  %310 = vmatprep.subr.mxu0 0.0
  %311 = vmatpush1.msra.mxu0 0.0
  %312 = vmatprep.subr.mxu0 0.0
  %313 = vmatpush1.msra.mxu0 0.0
  %314 = vmatprep.subr.mxu0 0.0
  %315 = vmatpush1.msra.mxu0 0.0
  %316 = vmatprep.subr.mxu0 0.0
  %317 = vmatpush1.msra.mxu0 0.0
  %318 = vmatprep.subr.mxu0 0.0
  %319 = vmatpush1.msra.mxu0 0.0
  %320 = vmatprep.subr.mxu0 0.0
  %321 = vmatpush1.msra.mxu0 0.0
  %322 = vmatprep.subr.mxu0 0.0
  %323 = vmatpush1.msra.mxu0 0.0
  %324 = vmatprep.subr.mxu0 0.0
  %325 = vmatpush1.msra.mxu0 0.0
  %326 = vmatprep.subr.mxu0 0.0
  %327 = vmatpush1.msra.mxu0 0.0
  %328 = vmatprep.subr.mxu0 0.0
  %329 = vmatpush1.msra.mxu0 0.0
  %330 = vmatprep.subr.mxu0 0.0
  %331 = vmatpush1.msra.mxu0 0.0
  %332 = vmatprep.subr.mxu0 0.0
  %333 = vmatpush1.msra.mxu0 0.0
  %334 = vmatprep.subr.mxu0 0.0
  %335 = vmatpush1.msra.mxu0 0.0
  %336 = vmatprep.subr.mxu0 0.0
  %337 = vmatpush1.msra.mxu0 0.0
  %338 = vmatprep.subr.mxu0 0.0
  %339 = vmatpush1.msra.mxu0 0.0
  %340 = vmatprep.subr.mxu0 0.0
  %341 = vmatpush1.msra.mxu0 0.0
  %342 = vmatprep.subr.mxu0 0.0
  %343 = vmatpush1.msra.mxu0 0.0
  %344 = vmatprep.subr.mxu0 0.0
  %345 = vmatpush1.msra.mxu0 0.0
  %346 = vmatprep.subr.mxu0 0.0
  %347 = vmatpush1.msra.mxu0 0.0
  %348 = vmatprep.subr.mxu0 0.0
  %349 = vmatpush1.msra.mxu0 0.0
  %350 = vmatprep.subr.mxu0 0.0
  %351 = vmatpush1.msra.mxu0 0.0
  %352 = vmatprep.subr.mxu0 0.0
  %353 = vmatpush1.msra.mxu0 0.0
  %354 = vmatprep.subr.mxu0 0.0
  %355 = vmatpush1.msra.mxu0 0.0
  %356 = vmatprep.subr.mxu0 0.0
  %357 = vmatpush1.msra.mxu0 0.0
  %358 = vmatprep.subr.mxu0 0.0
  %359 = vmatpush1.msra.mxu0 0.0
  %360 = vmatprep.subr.mxu0 0.0
  %361 = vmatpush1.msra.mxu0 0.0
  %362 = vmatprep.subr.mxu0 0.0
  %363 = vmatpush1.msra.mxu0 0.0
  %364 = vmatprep.subr.mxu0 0.0
  %365 = vmatpush1.msra.mxu0 0.0
  %366 = vmatprep.subr.mxu0 0.0
  %367 = vmatpush1.msra.mxu0 0.0
  %368 = vmatprep.subr.mxu0 0.0
  %369 = vmatpush1.msra.mxu0 0.0
  %370 = vmatprep.subr.mxu0 0.0
  %371 = vmatpush1.msra.mxu0 0.0
  %372 = vmatprep.mubr.f32.mxu0 0.0
  %373 = vmatmul.mubr.f32.gmra.mrb[0].mxu0 %v55
  %v374 = vpop.f32.mrb[0].mxu0
  %v375 = vadd.f32 %v51, %v374
  %v376 = vpop.f32.mrb[0].mxu0
  %377 = vdwg.mxu0
  %vm378 = vcmp.gt.f32.partialorder %v375, 0.0
  %v379 = vmul.f32 %v375, 0.1
  %v380 = vsel %vm378, %v375, %v379
  %v381 = vrot.slane %v44, 4
  %v384 = vrot.slane %v45, 4
  %v386 = vsel %vm137, %v381, %v381
  %v387 = vsel %vm139, %v386, %v381
  %v388 = vsel %vm141, %v387, %v384
  %v390 = vsel %vm57, %v388, 0
  %392 = vmatprep.subr.mxu0 0.0
  %393 = vmatpush1.msra.mxu0 %v390
  %394 = vmatprep.subr.mxu0 0.0
  %395 = vmatpush1.msra.mxu0 0.0
  %396 = vmatprep.subr.mxu0 0.0
  %397 = vmatpush1.msra.mxu0 0.0
  %398 = vmatprep.subr.mxu0 0.0
  %399 = vmatpush1.msra.mxu0 0.0
  %400 = vmatprep.subr.mxu0 0.0
  %401 = vmatpush1.msra.mxu0 0.0
  %402 = vmatprep.subr.mxu0 0.0
  %403 = vmatpush1.msra.mxu0 0.0
  %404 = vmatprep.subr.mxu0 0.0
  %405 = vmatpush1.msra.mxu0 0.0
  %406 = vmatprep.subr.mxu0 0.0
  %407 = vmatpush1.msra.mxu0 0.0
  %408 = vmatprep.subr.mxu0 0.0
  %409 = vmatpush1.msra.mxu0 0.0
  %410 = vmatprep.subr.mxu0 0.0
  %411 = vmatpush1.msra.mxu0 0.0
  %412 = vmatprep.subr.mxu0 0.0
  %413 = vmatpush1.msra.mxu0 0.0
  %414 = vmatprep.subr.mxu0 0.0
  %415 = vmatpush1.msra.mxu0 0.0
  %416 = vmatprep.subr.mxu0 0.0
  %417 = vmatpush1.msra.mxu0 0.0
  %418 = vmatprep.subr.mxu0 0.0
  %419 = vmatpush1.msra.mxu0 0.0
  %420 = vmatprep.subr.mxu0 0.0
  %421 = vmatpush1.msra.mxu0 0.0
  %422 = vmatprep.subr.mxu0 0.0
  %423 = vmatpush1.msra.mxu0 0.0
  %424 = vmatprep.subr.mxu0 0.0
  %425 = vmatpush1.msra.mxu0 0.0
  %426 = vmatprep.subr.mxu0 0.0
  %427 = vmatpush1.msra.mxu0 0.0
  %428 = vmatprep.subr.mxu0 0.0
  %429 = vmatpush1.msra.mxu0 0.0
  %430 = vmatprep.subr.mxu0 0.0
  %431 = vmatpush1.msra.mxu0 0.0
  %432 = vmatprep.subr.mxu0 0.0
  %433 = vmatpush1.msra.mxu0 0.0
  %434 = vmatprep.subr.mxu0 0.0
  %435 = vmatpush1.msra.mxu0 0.0
  %436 = vmatprep.subr.mxu0 0.0
  %437 = vmatpush1.msra.mxu0 0.0
  %438 = vmatprep.subr.mxu0 0.0
  %439 = vmatpush1.msra.mxu0 0.0
  %440 = vmatprep.subr.mxu0 0.0
  %441 = vmatpush1.msra.mxu0 0.0
  %442 = vmatprep.subr.mxu0 0.0
  %443 = vmatpush1.msra.mxu0 0.0
  %444 = vmatprep.subr.mxu0 0.0
  %445 = vmatpush1.msra.mxu0 0.0
  %446 = vmatprep.subr.mxu0 0.0
  %447 = vmatpush1.msra.mxu0 0.0
  %448 = vmatprep.subr.mxu0 0.0
  %449 = vmatpush1.msra.mxu0 0.0
  %450 = vmatprep.subr.mxu0 0.0
  %451 = vmatpush1.msra.mxu0 0.0
  %452 = vmatprep.subr.mxu0 0.0
  %453 = vmatpush1.msra.mxu0 0.0
  %454 = vmatprep.subr.mxu0 0.0
  %455 = vmatpush1.msra.mxu0 0.0
  %456 = vmatprep.mubr.f32.mxu0 0.0
  %457 = vmatmul.mubr.f32.gmra.mrb[0].mxu0 %v55
  %v458 = vpop.f32.mrb[0].mxu0
  %v459 = vadd.f32 %v51, %v458
  %v460 = vpop.f32.mrb[0].mxu0
  %461 = vdwg.mxu0
  %vm462 = vcmp.gt.f32.partialorder %v459, 0.0
  %v463 = vmul.f32 %v459, 0.1
  %v464 = vsel %vm462, %v459, %v463
  %v465 = vrot.slane %v44, 5
  %v467 = vrot.slane %v45, 5
  %v469 = vsel %vm137, %v465, %v465
  %v470 = vsel %vm139, %v469, %v467
  %v471 = vsel %vm141, %v470, %v467
  %v473 = vsel %vm57, %v471, 0
  %475 = vmatprep.subr.mxu0 0.0
  %476 = vmatpush1.msra.mxu0 %v473
  %477 = vmatprep.subr.mxu0 0.0
  %478 = vmatpush1.msra.mxu0 0.0
  %479 = vmatprep.subr.mxu0 0.0
  %480 = vmatpush1.msra.mxu0 0.0
  %481 = vmatprep.subr.mxu0 0.0
  %482 = vmatpush1.msra.mxu0 0.0
  %483 = vmatprep.subr.mxu0 0.0
  %484 = vmatpush1.msra.mxu0 0.0
  %485 = vmatprep.subr.mxu0 0.0
  %486 = vmatpush1.msra.mxu0 0.0
  %487 = vmatprep.subr.mxu0 0.0
  %488 = vmatpush1.msra.mxu0 0.0
  %489 = vmatprep.subr.mxu0 0.0
  %490 = vmatpush1.msra.mxu0 0.0
  %491 = vmatprep.subr.mxu0 0.0
  %492 = vmatpush1.msra.mxu0 0.0
  %493 = vmatprep.subr.mxu0 0.0
  %494 = vmatpush1.msra.mxu0 0.0
  %495 = vmatprep.subr.mxu0 0.0
  %496 = vmatpush1.msra.mxu0 0.0
  %497 = vmatprep.subr.mxu0 0.0
  %498 = vmatpush1.msra.mxu0 0.0
  %499 = vmatprep.subr.mxu0 0.0
  %500 = vmatpush1.msra.mxu0 0.0
  %501 = vmatprep.subr.mxu0 0.0
  %502 = vmatpush1.msra.mxu0 0.0
  %503 = vmatprep.subr.mxu0 0.0
  %504 = vmatpush1.msra.mxu0 0.0
  %505 = vmatprep.subr.mxu0 0.0
  %506 = vmatpush1.msra.mxu0 0.0
  %507 = vmatprep.subr.mxu0 0.0
  %508 = vmatpush1.msra.mxu0 0.0
  %509 = vmatprep.subr.mxu0 0.0
  %510 = vmatpush1.msra.mxu0 0.0
  %511 = vmatprep.subr.mxu0 0.0
  %512 = vmatpush1.msra.mxu0 0.0
  %513 = vmatprep.subr.mxu0 0.0
  %514 = vmatpush1.msra.mxu0 0.0
  %515 = vmatprep.subr.mxu0 0.0
  %516 = vmatpush1.msra.mxu0 0.0
  %517 = vmatprep.subr.mxu0 0.0
  %518 = vmatpush1.msra.mxu0 0.0
  %519 = vmatprep.subr.mxu0 0.0
  %520 = vmatpush1.msra.mxu0 0.0
  %521 = vmatprep.subr.mxu0 0.0
  %522 = vmatpush1.msra.mxu0 0.0
  %523 = vmatprep.subr.mxu0 0.0
  %524 = vmatpush1.msra.mxu0 0.0
  %525 = vmatprep.subr.mxu0 0.0
  %526 = vmatpush1.msra.mxu0 0.0
  %527 = vmatprep.subr.mxu0 0.0
  %528 = vmatpush1.msra.mxu0 0.0
  %529 = vmatprep.subr.mxu0 0.0
  %530 = vmatpush1.msra.mxu0 0.0
  %531 = vmatprep.subr.mxu0 0.0
  %532 = vmatpush1.msra.mxu0 0.0
  %533 = vmatprep.subr.mxu0 0.0
  %534 = vmatpush1.msra.mxu0 0.0
  %535 = vmatprep.subr.mxu0 0.0
  %536 = vmatpush1.msra.mxu0 0.0
  %537 = vmatprep.subr.mxu0 0.0
  %538 = vmatpush1.msra.mxu0 0.0
  %539 = vmatprep.mubr.f32.mxu0 0.0
  %540 = vmatmul.mubr.f32.gmra.mrb[0].mxu0 %v55
  %v541 = vpop.f32.mrb[0].mxu0
  %v542 = vadd.f32 %v51, %v541
  %v543 = vpop.f32.mrb[0].mxu0
  %544 = vdwg.mxu0
  %vm545 = vcmp.gt.f32.partialorder %v542, 0.0
  %v546 = vmul.f32 %v542, 0.1
  %v547 = vsel %vm545, %v542, %v546
  %v548 = vrot.slane %v44, 6
  %v550 = vrot.slane %v45, 6
  %v552 = vsel %vm137, %v548, %v550
  %v553 = vsel %vm139, %v552, %v550
  %v554 = vsel %vm141, %v553, %v550
  %v556 = vsel %vm57, %v554, 0
  %558 = vmatprep.subr.mxu0 0.0
  %559 = vmatpush1.msra.mxu0 %v556
  %560 = vmatprep.subr.mxu0 0.0
  %561 = vmatpush1.msra.mxu0 0.0
  %562 = vmatprep.subr.mxu0 0.0
  %563 = vmatpush1.msra.mxu0 0.0
  %564 = vmatprep.subr.mxu0 0.0
  %565 = vmatpush1.msra.mxu0 0.0
  %566 = vmatprep.subr.mxu0 0.0
  %567 = vmatpush1.msra.mxu0 0.0
  %568 = vmatprep.subr.mxu0 0.0
  %569 = vmatpush1.msra.mxu0 0.0
  %570 = vmatprep.subr.mxu0 0.0
  %571 = vmatpush1.msra.mxu0 0.0
  %572 = vmatprep.subr.mxu0 0.0
  %573 = vmatpush1.msra.mxu0 0.0
  %574 = vmatprep.subr.mxu0 0.0
  %575 = vmatpush1.msra.mxu0 0.0
  %576 = vmatprep.subr.mxu0 0.0
  %577 = vmatpush1.msra.mxu0 0.0
  %578 = vmatprep.subr.mxu0 0.0
  %579 = vmatpush1.msra.mxu0 0.0
  %580 = vmatprep.subr.mxu0 0.0
  %581 = vmatpush1.msra.mxu0 0.0
  %582 = vmatprep.subr.mxu0 0.0
  %583 = vmatpush1.msra.mxu0 0.0
  %584 = vmatprep.subr.mxu0 0.0
  %585 = vmatpush1.msra.mxu0 0.0
  %586 = vmatprep.subr.mxu0 0.0
  %587 = vmatpush1.msra.mxu0 0.0
  %588 = vmatprep.subr.mxu0 0.0
  %589 = vmatpush1.msra.mxu0 0.0
  %590 = vmatprep.subr.mxu0 0.0
  %591 = vmatpush1.msra.mxu0 0.0
  %592 = vmatprep.subr.mxu0 0.0
  %593 = vmatpush1.msra.mxu0 0.0
  %594 = vmatprep.subr.mxu0 0.0
  %595 = vmatpush1.msra.mxu0 0.0
  %596 = vmatprep.subr.mxu0 0.0
  %597 = vmatpush1.msra.mxu0 0.0
  %598 = vmatprep.subr.mxu0 0.0
  %599 = vmatpush1.msra.mxu0 0.0
  %600 = vmatprep.subr.mxu0 0.0
  %601 = vmatpush1.msra.mxu0 0.0
  %602 = vmatprep.subr.mxu0 0.0
  %603 = vmatpush1.msra.mxu0 0.0
  %604 = vmatprep.subr.mxu0 0.0
  %605 = vmatpush1.msra.mxu0 0.0
  %606 = vmatprep.subr.mxu0 0.0
  %607 = vmatpush1.msra.mxu0 0.0
  %608 = vmatprep.subr.mxu0 0.0
  %609 = vmatpush1.msra.mxu0 0.0
  %610 = vmatprep.subr.mxu0 0.0
  %611 = vmatpush1.msra.mxu0 0.0
  %612 = vmatprep.subr.mxu0 0.0
  %613 = vmatpush1.msra.mxu0 0.0
  %614 = vmatprep.subr.mxu0 0.0
  %615 = vmatpush1.msra.mxu0 0.0
  %616 = vmatprep.subr.mxu0 0.0
  %617 = vmatpush1.msra.mxu0 0.0
  %618 = vmatprep.subr.mxu0 0.0
  %619 = vmatpush1.msra.mxu0 0.0
  %620 = vmatprep.subr.mxu0 0.0
  %621 = vmatpush1.msra.mxu0 0.0
  %622 = vmatprep.mubr.f32.mxu0 0.0
  %623 = vmatmul.mubr.f32.gmra.mrb[0].mxu0 %v55
  %v624 = vpop.f32.mrb[0].mxu0
  %v625 = vadd.f32 %v51, %v624
  %v626 = vpop.f32.mrb[0].mxu0
  %627 = vdwg.mxu0
  %vm628 = vcmp.gt.f32.partialorder %v625, 0.0
  %v629 = vmul.f32 %v625, 0.1
  %v630 = vsel %vm628, %v625, %v629
  %v631 = vrot.slane %v44, 7
  %v633 = vrot.slane %v45, 7
  %v635 = vsel %vm136, %v631, %v633
  %v636 = vsel %vm137, %v635, %v633
  %v637 = vsel %vm139, %v636, %v633
  %v638 = vsel %vm141, %v637, %v633
  %v640 = vsel %vm57, %v638, 0
  %642 = vmatprep.subr.mxu0 0.0
  %643 = vmatpush1.msra.mxu0 %v640
  %644 = vmatprep.subr.mxu0 0.0
  %645 = vmatpush1.msra.mxu0 0.0
  %646 = vmatprep.subr.mxu0 0.0
  %647 = vmatpush1.msra.mxu0 0.0
  %648 = vmatprep.subr.mxu0 0.0
  %649 = vmatpush1.msra.mxu0 0.0
  %650 = vmatprep.subr.mxu0 0.0
  %651 = vmatpush1.msra.mxu0 0.0
  %652 = vmatprep.subr.mxu0 0.0
  %653 = vmatpush1.msra.mxu0 0.0
  %654 = vmatprep.subr.mxu0 0.0
  %655 = vmatpush1.msra.mxu0 0.0
  %656 = vmatprep.subr.mxu0 0.0
  %657 = vmatpush1.msra.mxu0 0.0
  %658 = vmatprep.subr.mxu0 0.0
  %659 = vmatpush1.msra.mxu0 0.0
  %660 = vmatprep.subr.mxu0 0.0
  %661 = vmatpush1.msra.mxu0 0.0
  %662 = vmatprep.subr.mxu0 0.0
  %663 = vmatpush1.msra.mxu0 0.0
  %664 = vmatprep.subr.mxu0 0.0
  %665 = vmatpush1.msra.mxu0 0.0
  %666 = vmatprep.subr.mxu0 0.0
  %667 = vmatpush1.msra.mxu0 0.0
  %668 = vmatprep.subr.mxu0 0.0
  %669 = vmatpush1.msra.mxu0 0.0
  %670 = vmatprep.subr.mxu0 0.0
  %671 = vmatpush1.msra.mxu0 0.0
  %672 = vmatprep.subr.mxu0 0.0
  %673 = vmatpush1.msra.mxu0 0.0
  %674 = vmatprep.subr.mxu0 0.0
  %675 = vmatpush1.msra.mxu0 0.0
  %676 = vmatprep.subr.mxu0 0.0
  %677 = vmatpush1.msra.mxu0 0.0
  %678 = vmatprep.subr.mxu0 0.0
  %679 = vmatpush1.msra.mxu0 0.0
  %680 = vmatprep.subr.mxu0 0.0
  %681 = vmatpush1.msra.mxu0 0.0
  %682 = vmatprep.subr.mxu0 0.0
  %683 = vmatpush1.msra.mxu0 0.0
  %684 = vmatprep.subr.mxu0 0.0
  %685 = vmatpush1.msra.mxu0 0.0
  %686 = vmatprep.subr.mxu0 0.0
  %687 = vmatpush1.msra.mxu0 0.0
  %688 = vmatprep.subr.mxu0 0.0
  %689 = vmatpush1.msra.mxu0 0.0
  %690 = vmatprep.subr.mxu0 0.0
  %691 = vmatpush1.msra.mxu0 0.0
  %692 = vmatprep.subr.mxu0 0.0
  %693 = vmatpush1.msra.mxu0 0.0
  %694 = vmatprep.subr.mxu0 0.0
  %695 = vmatpush1.msra.mxu0 0.0
  %696 = vmatprep.subr.mxu0 0.0
  %697 = vmatpush1.msra.mxu0 0.0
  %698 = vmatprep.subr.mxu0 0.0
  %699 = vmatpush1.msra.mxu0 0.0
  %700 = vmatprep.subr.mxu0 0.0
  %701 = vmatpush1.msra.mxu0 0.0
  %702 = vmatprep.subr.mxu0 0.0
  %703 = vmatpush1.msra.mxu0 0.0
  %704 = vmatprep.subr.mxu0 0.0
  %705 = vmatpush1.msra.mxu0 0.0
  %706 = vmatprep.mubr.f32.mxu0 0.0
  %707 = vmatmul.mubr.f32.gmra.mrb[0].mxu0 %v55
  %v708 = vpop.f32.mrb[0].mxu0
  %v709 = vadd.f32 %v51, %v708
  %v710 = vpop.f32.mrb[0].mxu0
  %711 = vdwg.mxu0
  %vm712 = vcmp.gt.f32.partialorder %v709, 0.0
  %v713 = vmul.f32 %v709, 0.1
  %v714 = vsel %vm712, %v709, %v713
  %v715 = vsel %vm57, %v45, 0
  %717 = vmatprep.subr.mxu0 0.0
  %718 = vmatpush1.msra.mxu0 %v715
  %719 = vmatprep.subr.mxu0 0.0
  %720 = vmatpush1.msra.mxu0 0.0
  %721 = vmatprep.subr.mxu0 0.0
  %722 = vmatpush1.msra.mxu0 0.0
  %723 = vmatprep.subr.mxu0 0.0
  %724 = vmatpush1.msra.mxu0 0.0
  %725 = vmatprep.subr.mxu0 0.0
  %726 = vmatpush1.msra.mxu0 0.0
  %727 = vmatprep.subr.mxu0 0.0
  %728 = vmatpush1.msra.mxu0 0.0
  %729 = vmatprep.subr.mxu0 0.0
  %730 = vmatpush1.msra.mxu0 0.0
  %731 = vmatprep.subr.mxu0 0.0
  %732 = vmatpush1.msra.mxu0 0.0
  %733 = vmatprep.subr.mxu0 0.0
  %734 = vmatpush1.msra.mxu0 0.0
  %735 = vmatprep.subr.mxu0 0.0
  %736 = vmatpush1.msra.mxu0 0.0
  %737 = vmatprep.subr.mxu0 0.0
  %738 = vmatpush1.msra.mxu0 0.0
  %739 = vmatprep.subr.mxu0 0.0
  %740 = vmatpush1.msra.mxu0 0.0
  %741 = vmatprep.subr.mxu0 0.0
  %742 = vmatpush1.msra.mxu0 0.0
  %743 = vmatprep.subr.mxu0 0.0
  %744 = vmatpush1.msra.mxu0 0.0
  %745 = vmatprep.subr.mxu0 0.0
  %746 = vmatpush1.msra.mxu0 0.0
  %747 = vmatprep.subr.mxu0 0.0
  %748 = vmatpush1.msra.mxu0 0.0
  %749 = vmatprep.subr.mxu0 0.0
  %750 = vmatpush1.msra.mxu0 0.0
  %751 = vmatprep.subr.mxu0 0.0
  %752 = vmatpush1.msra.mxu0 0.0
  %753 = vmatprep.subr.mxu0 0.0
  %754 = vmatpush1.msra.mxu0 0.0
  %755 = vmatprep.subr.mxu0 0.0
  %756 = vmatpush1.msra.mxu0 0.0
  %757 = vmatprep.subr.mxu0 0.0
  %758 = vmatpush1.msra.mxu0 0.0
  %759 = vmatprep.subr.mxu0 0.0
  %760 = vmatpush1.msra.mxu0 0.0
  %761 = vmatprep.subr.mxu0 0.0
  %762 = vmatpush1.msra.mxu0 0.0
  %763 = vmatprep.subr.mxu0 0.0
  %764 = vmatpush1.msra.mxu0 0.0
  %765 = vmatprep.subr.mxu0 0.0
  %766 = vmatpush1.msra.mxu0 0.0
  %767 = vmatprep.subr.mxu0 0.0
  %768 = vmatpush1.msra.mxu0 0.0
  %769 = vmatprep.subr.mxu0 0.0
  %770 = vmatpush1.msra.mxu0 0.0
  %771 = vmatprep.subr.mxu0 0.0
  %772 = vmatpush1.msra.mxu0 0.0
  %773 = vmatprep.subr.mxu0 0.0
  %774 = vmatpush1.msra.mxu0 0.0
  %775 = vmatprep.subr.mxu0 0.0
  %776 = vmatpush1.msra.mxu0 0.0
  %777 = vmatprep.subr.mxu0 0.0
  %778 = vmatpush1.msra.mxu0 0.0
  %779 = vmatprep.subr.mxu0 0.0
  %780 = vmatpush1.msra.mxu0 0.0
  %781 = vmatprep.mubr.f32.mxu0 0.0
  %782 = vmatmul.mubr.f32.gmra.mrb[0].mxu0 %v55
  %v783 = vpop.f32.mrb[0].mxu0
  %v784 = vadd.f32 %v51, %v783
  %v785 = vpop.f32.mrb[0].mxu0
  %786 = vdwg.mxu0
  %vm787 = vcmp.gt.f32.partialorder %v784, 0.0
  %v788 = vmul.f32 %v784, 0.1
  %v789 = vsel %vm787, %v784, %v788
  %v790 = vrot.slane %v45, 1
  %v792 = vsel %vm137, %v790, %v790
  %v793 = vsel %vm139, %v792, %v790
  %v794 = vsel %vm141, %v793, %v790
  %v796 = vsel %vm57, %v794, 0
  %798 = vmatprep.subr.mxu0 0.0
  %799 = vmatpush1.msra.mxu0 %v796
  %800 = vmatprep.subr.mxu0 0.0
  %801 = vmatpush1.msra.mxu0 0.0
  %802 = vmatprep.subr.mxu0 0.0
  %803 = vmatpush1.msra.mxu0 0.0
  %804 = vmatprep.subr.mxu0 0.0
  %805 = vmatpush1.msra.mxu0 0.0
  %806 = vmatprep.subr.mxu0 0.0
  %807 = vmatpush1.msra.mxu0 0.0
  %808 = vmatprep.subr.mxu0 0.0
  %809 = vmatpush1.msra.mxu0 0.0
  %810 = vmatprep.subr.mxu0 0.0
  %811 = vmatpush1.msra.mxu0 0.0
  %812 = vmatprep.subr.mxu0 0.0
  %813 = vmatpush1.msra.mxu0 0.0
  %814 = vmatprep.subr.mxu0 0.0
  %815 = vmatpush1.msra.mxu0 0.0
  %816 = vmatprep.subr.mxu0 0.0
  %817 = vmatpush1.msra.mxu0 0.0
  %818 = vmatprep.subr.mxu0 0.0
  %819 = vmatpush1.msra.mxu0 0.0
  %820 = vmatprep.subr.mxu0 0.0
  %821 = vmatpush1.msra.mxu0 0.0
  %822 = vmatprep.subr.mxu0 0.0
  %823 = vmatpush1.msra.mxu0 0.0
  %824 = vmatprep.subr.mxu0 0.0
  %825 = vmatpush1.msra.mxu0 0.0
  %826 = vmatprep.subr.mxu0 0.0
  %827 = vmatpush1.msra.mxu0 0.0
  %828 = vmatprep.subr.mxu0 0.0
  %829 = vmatpush1.msra.mxu0 0.0
  %830 = vmatprep.subr.mxu0 0.0
  %831 = vmatpush1.msra.mxu0 0.0
  %832 = vmatprep.subr.mxu0 0.0
  %833 = vmatpush1.msra.mxu0 0.0
  %834 = vmatprep.subr.mxu0 0.0
  %835 = vmatpush1.msra.mxu0 0.0
  %836 = vmatprep.subr.mxu0 0.0
  %837 = vmatpush1.msra.mxu0 0.0
  %838 = vmatprep.subr.mxu0 0.0
  %839 = vmatpush1.msra.mxu0 0.0
  %840 = vmatprep.subr.mxu0 0.0
  %841 = vmatpush1.msra.mxu0 0.0
  %842 = vmatprep.subr.mxu0 0.0
  %843 = vmatpush1.msra.mxu0 0.0
  %844 = vmatprep.subr.mxu0 0.0
  %845 = vmatpush1.msra.mxu0 0.0
  %846 = vmatprep.subr.mxu0 0.0
  %847 = vmatpush1.msra.mxu0 0.0
  %848 = vmatprep.subr.mxu0 0.0
  %849 = vmatpush1.msra.mxu0 0.0
  %850 = vmatprep.subr.mxu0 0.0
  %851 = vmatpush1.msra.mxu0 0.0
  %852 = vmatprep.subr.mxu0 0.0
  %853 = vmatpush1.msra.mxu0 0.0
  %854 = vmatprep.subr.mxu0 0.0
  %855 = vmatpush1.msra.mxu0 0.0
  %856 = vmatprep.subr.mxu0 0.0
  %857 = vmatpush1.msra.mxu0 0.0
  %858 = vmatprep.subr.mxu0 0.0
  %859 = vmatpush1.msra.mxu0 0.0
  %860 = vmatprep.subr.mxu0 0.0
  %861 = vmatpush1.msra.mxu0 0.0
  %862 = vmatprep.mubr.f32.mxu0 0.0
  %863 = vmatmul.mubr.f32.gmra.mrb[0].mxu0 %v55
  %v864 = vpop.f32.mrb[0].mxu0
  %v865 = vadd.f32 %v51, %v864
  %v866 = vpop.f32.mrb[0].mxu0
  %867 = vdwg.mxu0
  %vm868 = vcmp.gt.f32.partialorder %v865, 0.0
  %v869 = vmul.f32 %v865, 0.1
  %v870 = vsel %vm868, %v865, %v869
  %v871 = vrot.slane %v45, 2
  %v873 = vsel %vm137, %v871, %v871
  %v874 = vsel %vm139, %v873, %v871
  %v875 = vsel %vm141, %v874, %v871
  %v877 = vsel %vm57, %v875, 0
  %879 = vmatprep.subr.mxu0 0.0
  %880 = vmatpush1.msra.mxu0 %v877
  %881 = vmatprep.subr.mxu0 0.0
  %882 = vmatpush1.msra.mxu0 0.0
  %883 = vmatprep.subr.mxu0 0.0
  %884 = vmatpush1.msra.mxu0 0.0
  %885 = vmatprep.subr.mxu0 0.0
  %886 = vmatpush1.msra.mxu0 0.0
  %887 = vmatprep.subr.mxu0 0.0
  %888 = vmatpush1.msra.mxu0 0.0
  %889 = vmatprep.subr.mxu0 0.0
  %890 = vmatpush1.msra.mxu0 0.0
  %891 = vmatprep.subr.mxu0 0.0
  %892 = vmatpush1.msra.mxu0 0.0
  %893 = vmatprep.subr.mxu0 0.0
  %894 = vmatpush1.msra.mxu0 0.0
  %895 = vmatprep.subr.mxu0 0.0
  %896 = vmatpush1.msra.mxu0 0.0
  %897 = vmatprep.subr.mxu0 0.0
  %898 = vmatpush1.msra.mxu0 0.0
  %899 = vmatprep.subr.mxu0 0.0
  %900 = vmatpush1.msra.mxu0 0.0
  %901 = vmatprep.subr.mxu0 0.0
  %902 = vmatpush1.msra.mxu0 0.0
  %903 = vmatprep.subr.mxu0 0.0
  %904 = vmatpush1.msra.mxu0 0.0
  %905 = vmatprep.subr.mxu0 0.0
  %906 = vmatpush1.msra.mxu0 0.0
  %907 = vmatprep.subr.mxu0 0.0
  %908 = vmatpush1.msra.mxu0 0.0
  %909 = vmatprep.subr.mxu0 0.0
  %910 = vmatpush1.msra.mxu0 0.0
  %911 = vmatprep.subr.mxu0 0.0
  %912 = vmatpush1.msra.mxu0 0.0
  %913 = vmatprep.subr.mxu0 0.0
  %914 = vmatpush1.msra.mxu0 0.0
  %915 = vmatprep.subr.mxu0 0.0
  %916 = vmatpush1.msra.mxu0 0.0
  %917 = vmatprep.subr.mxu0 0.0
  %918 = vmatpush1.msra.mxu0 0.0
  %919 = vmatprep.subr.mxu0 0.0
  %920 = vmatpush1.msra.mxu0 0.0
  %921 = vmatprep.subr.mxu0 0.0
  %922 = vmatpush1.msra.mxu0 0.0
  %923 = vmatprep.subr.mxu0 0.0
  %924 = vmatpush1.msra.mxu0 0.0
  %925 = vmatprep.subr.mxu0 0.0
  %926 = vmatpush1.msra.mxu0 0.0
  %927 = vmatprep.subr.mxu0 0.0
  %928 = vmatpush1.msra.mxu0 0.0
  %929 = vmatprep.subr.mxu0 0.0
  %930 = vmatpush1.msra.mxu0 0.0
  %931 = vmatprep.subr.mxu0 0.0
  %932 = vmatpush1.msra.mxu0 0.0
  %933 = vmatprep.subr.mxu0 0.0
  %934 = vmatpush1.msra.mxu0 0.0
  %935 = vmatprep.subr.mxu0 0.0
  %936 = vmatpush1.msra.mxu0 0.0
  %937 = vmatprep.subr.mxu0 0.0
  %938 = vmatpush1.msra.mxu0 0.0
  %939 = vmatprep.subr.mxu0 0.0
  %940 = vmatpush1.msra.mxu0 0.0
  %941 = vmatprep.subr.mxu0 0.0
  %942 = vmatpush1.msra.mxu0 0.0
  %943 = vmatprep.mubr.f32.mxu0 0.0
  %944 = vmatmul.mubr.f32.gmra.mrb[0].mxu0 %v55
  %v945 = vpop.f32.mrb[0].mxu0
  %v946 = vadd.f32 %v51, %v945
  %v947 = vpop.f32.mrb[0].mxu0
  %948 = vdwg.mxu0
  %vm949 = vcmp.gt.f32.partialorder %v946, 0.0
  %v950 = vmul.f32 %v946, 0.1
  %v951 = vsel %vm949, %v946, %v950
  %v952 = vrot.slane %v45, 3
  %v954 = vsel %vm137, %v952, %v952
  %v955 = vsel %vm139, %v954, %v952
  %v956 = vsel %vm141, %v955, %v952
  %v958 = vsel %vm57, %v956, 0
  %960 = vmatprep.subr.mxu0 0.0
  %961 = vmatpush1.msra.mxu0 %v958
  %962 = vmatprep.subr.mxu0 0.0
  %963 = vmatpush1.msra.mxu0 0.0
  %964 = vmatprep.subr.mxu0 0.0
  %965 = vmatpush1.msra.mxu0 0.0
  %966 = vmatprep.subr.mxu0 0.0
  %967 = vmatpush1.msra.mxu0 0.0
  %968 = vmatprep.subr.mxu0 0.0
  %969 = vmatpush1.msra.mxu0 0.0
  %970 = vmatprep.subr.mxu0 0.0
  %971 = vmatpush1.msra.mxu0 0.0
  %972 = vmatprep.subr.mxu0 0.0
  %973 = vmatpush1.msra.mxu0 0.0
  %974 = vmatprep.subr.mxu0 0.0
  %975 = vmatpush1.msra.mxu0 0.0
  %976 = vmatprep.subr.mxu0 0.0
  %977 = vmatpush1.msra.mxu0 0.0
  %978 = vmatprep.subr.mxu0 0.0
  %979 = vmatpush1.msra.mxu0 0.0
  %980 = vmatprep.subr.mxu0 0.0
  %981 = vmatpush1.msra.mxu0 0.0
  %982 = vmatprep.subr.mxu0 0.0
  %983 = vmatpush1.msra.mxu0 0.0
  %984 = vmatprep.subr.mxu0 0.0
  %985 = vmatpush1.msra.mxu0 0.0
  %986 = vmatprep.subr.mxu0 0.0
  %987 = vmatpush1.msra.mxu0 0.0
  %988 = vmatprep.subr.mxu0 0.0
  %989 = vmatpush1.msra.mxu0 0.0
  %990 = vmatprep.subr.mxu0 0.0
  %991 = vmatpush1.msra.mxu0 0.0
  %992 = vmatprep.subr.mxu0 0.0
  %993 = vmatpush1.msra.mxu0 0.0
  %994 = vmatprep.subr.mxu0 0.0
  %995 = vmatpush1.msra.mxu0 0.0
  %996 = vmatprep.subr.mxu0 0.0
  %997 = vmatpush1.msra.mxu0 0.0
  %998 = vmatprep.subr.mxu0 0.0
  %999 = vmatpush1.msra.mxu0 0.0
  %1000 = vmatprep.subr.mxu0 0.0
  %1001 = vmatpush1.msra.mxu0 0.0
  %1002 = vmatprep.subr.mxu0 0.0
  %1003 = vmatpush1.msra.mxu0 0.0
  %1004 = vmatprep.subr.mxu0 0.0
  %1005 = vmatpush1.msra.mxu0 0.0
  %1006 = vmatprep.subr.mxu0 0.0
  %1007 = vmatpush1.msra.mxu0 0.0
  %1008 = vmatprep.subr.mxu0 0.0
  %1009 = vmatpush1.msra.mxu0 0.0
  %1010 = vmatprep.subr.mxu0 0.0
  %1011 = vmatpush1.msra.mxu0 0.0
  %1012 = vmatprep.subr.mxu0 0.0
  %1013 = vmatpush1.msra.mxu0 0.0
  %1014 = vmatprep.subr.mxu0 0.0
  %1015 = vmatpush1.msra.mxu0 0.0
  %1016 = vmatprep.subr.mxu0 0.0
  %1017 = vmatpush1.msra.mxu0 0.0
  %1018 = vmatprep.subr.mxu0 0.0
  %1019 = vmatpush1.msra.mxu0 0.0
  %1020 = vmatprep.subr.mxu0 0.0
  %1021 = vmatpush1.msra.mxu0 0.0
  %1022 = vmatprep.subr.mxu0 0.0
  %1023 = vmatpush1.msra.mxu0 0.0
  %1024 = vmatprep.mubr.f32.mxu0 0.0
  %1025 = vmatmul.mubr.f32.gmra.mrb[0].mxu0 %v55
  %v1026 = vpop.f32.mrb[0].mxu0
  %v1027 = vadd.f32 %v51, %v1026
  %v1028 = vpop.f32.mrb[0].mxu0
  %1029 = vdwg.mxu0
  %vm1030 = vcmp.gt.f32.partialorder %v1027, 0.0
  %v1031 = vmul.f32 %v1027, 0.1
  %v1032 = vsel %vm1030, %v1027, %v1031
  %v1033 = vld [vmem:[%s3] sm:$0xff]
  %v1034 = vld [vmem:[%s3 + $0x8] sm:$0xff]
  %v1035 = vld [vmem:[%s4] sm:$0xff]
  %v1036 = vld [vmem:[%s4 + $0x8] sm:$0xff]
  %1038 = vset.pattern.permute.xlu0 0
  %1039 = vperm.xlu0 %1038, %v1035
  %v1040 = vpop.permute.xlu0 %1039
  %1043 = vset.pattern.permute.xlu0 0
  %1044 = vperm.xlu0 %1043, %v1036
  %v1045 = vpop.permute.xlu0 %1044
  %vm1047 = vcmask 326656
  %v1049 = vsel %vm1047, %v1033, 0
  %v1052 = vsel %vm1047, %v1034, 0
  %1054 = vmatprep.subr.mxu0 0.0
  %1055 = vmatpush1.msra.mxu0 %v133
  %1056 = vmatprep.subr.mxu0 0.0
  %1057 = vmatpush1.msra.mxu0 %v218
  %1058 = vmatprep.subr.mxu0 0.0
  %1059 = vmatpush1.msra.mxu0 %v299
  %1060 = vmatprep.subr.mxu0 0.0
  %1061 = vmatpush1.msra.mxu0 %v380
  %1062 = vmatprep.subr.mxu0 0.0
  %1063 = vmatpush1.msra.mxu0 %v464
  %1064 = vmatprep.subr.mxu0 0.0
  %1065 = vmatpush1.msra.mxu0 0.0
  %1066 = vmatprep.subr.mxu0 0.0
  %1067 = vmatpush1.msra.mxu0 0.0
  %1068 = vmatprep.subr.mxu0 0.0
  %1069 = vmatpush1.msra.mxu0 0.0
  %1070 = vmatprep.subr.mxu0 0.0
  %1071 = vmatpush1.msra.mxu0 0.0
  %1072 = vmatprep.subr.mxu0 0.0
  %1073 = vmatpush1.msra.mxu0 0.0
  %1074 = vmatprep.subr.mxu0 0.0
  %1075 = vmatpush1.msra.mxu0 0.0
  %1076 = vmatprep.subr.mxu0 0.0
  %1077 = vmatpush1.msra.mxu0 0.0
  %1078 = vmatprep.subr.mxu0 0.0
  %1079 = vmatpush1.msra.mxu0 0.0
  %1080 = vmatprep.subr.mxu0 0.0
  %1081 = vmatpush1.msra.mxu0 0.0
  %1082 = vmatprep.subr.mxu0 0.0
  %1083 = vmatpush1.msra.mxu0 0.0
  %1084 = vmatprep.subr.mxu0 0.0
  %1085 = vmatpush1.msra.mxu0 0.0
  %1086 = vmatprep.subr.mxu0 0.0
  %1087 = vmatpush1.msra.mxu0 0.0
  %1088 = vmatprep.subr.mxu0 0.0
  %1089 = vmatpush1.msra.mxu0 0.0
  %1090 = vmatprep.subr.mxu0 0.0
  %1091 = vmatpush1.msra.mxu0 0.0
  %1092 = vmatprep.subr.mxu0 0.0
  %1093 = vmatpush1.msra.mxu0 0.0
  %1094 = vmatprep.subr.mxu0 0.0
  %1095 = vmatpush1.msra.mxu0 0.0
  %1096 = vmatprep.subr.mxu0 0.0
  %1097 = vmatpush1.msra.mxu0 0.0
  %1098 = vmatprep.subr.mxu0 0.0
  %1099 = vmatpush1.msra.mxu0 0.0
  %1100 = vmatprep.subr.mxu0 0.0
  %1101 = vmatpush1.msra.mxu0 0.0
  %1102 = vmatprep.subr.mxu0 0.0
  %1103 = vmatpush1.msra.mxu0 0.0
  %1104 = vmatprep.subr.mxu0 0.0
  %1105 = vmatpush1.msra.mxu0 0.0
  %1106 = vmatprep.subr.mxu0 0.0
  %1107 = vmatpush1.msra.mxu0 0.0
  %1108 = vmatprep.subr.mxu0 0.0
  %1109 = vmatpush1.msra.mxu0 0.0
  %1110 = vmatprep.subr.mxu0 0.0
  %1111 = vmatpush1.msra.mxu0 0.0
  %1112 = vmatprep.subr.mxu0 0.0
  %1113 = vmatpush1.msra.mxu0 0.0
  %1114 = vmatprep.subr.mxu0 0.0
  %1115 = vmatpush1.msra.mxu0 0.0
  %1116 = vmatprep.subr.mxu0 0.0
  %1117 = vmatpush1.msra.mxu0 0.0
  %1118 = vmatprep.mubr.f32.mxu0 0.0
  %1119 = vmatmul.mubr.f32.gmra.mrb[0].mxu0 %v1049
  %v1120 = vpop.f32.mrb[0].mxu0
  %v1121 = vadd.f32 %v1040, %v1120
  %v1122 = vpop.f32.mrb[0].mxu0
  %1123 = vmatprep.mubr.f32.mxu0 0.0
  %1124 = vmatmul.mubr.f32.gmra.mrb[0].mxu0 %v1052
  %v1125 = vpop.f32.mrb[0].mxu0
  %v1126 = vadd.f32 %v1045, %v1125
  %v1127 = vpop.f32.mrb[0].mxu0
  %1128 = vdwg.mxu0
  %vm1129 = vcmp.gt.f32.partialorder %v1121, 0.0
  %vm1130 = vcmp.gt.f32.partialorder %v1126, 0.0
  %v1131 = vmul.f32 %v1121, 0.1
  %v1132 = vmul.f32 %v1126, 0.1
  %v1133 = vsel %vm1129, %v1121, %v1131
  %v1134 = vsel %vm1130, %v1126, %v1132
  %1135 = vmatprep.subr.mxu0 0.0
  %1136 = vmatpush1.msra.mxu0 %v218
  %1137 = vmatprep.subr.mxu0 0.0
  %1138 = vmatpush1.msra.mxu0 %v299
  %1139 = vmatprep.subr.mxu0 0.0
  %1140 = vmatpush1.msra.mxu0 %v380
  %1141 = vmatprep.subr.mxu0 0.0
  %1142 = vmatpush1.msra.mxu0 %v464
  %1143 = vmatprep.subr.mxu0 0.0
  %1144 = vmatpush1.msra.mxu0 %v547
  %1145 = vmatprep.subr.mxu0 0.0
  %1146 = vmatpush1.msra.mxu0 0.0
  %1147 = vmatprep.subr.mxu0 0.0
  %1148 = vmatpush1.msra.mxu0 0.0
  %1149 = vmatprep.subr.mxu0 0.0
  %1150 = vmatpush1.msra.mxu0 0.0
  %1151 = vmatprep.subr.mxu0 0.0
  %1152 = vmatpush1.msra.mxu0 0.0
  %1153 = vmatprep.subr.mxu0 0.0
  %1154 = vmatpush1.msra.mxu0 0.0
  %1155 = vmatprep.subr.mxu0 0.0
  %1156 = vmatpush1.msra.mxu0 0.0
  %1157 = vmatprep.subr.mxu0 0.0
  %1158 = vmatpush1.msra.mxu0 0.0
  %1159 = vmatprep.subr.mxu0 0.0
  %1160 = vmatpush1.msra.mxu0 0.0
  %1161 = vmatprep.subr.mxu0 0.0
  %1162 = vmatpush1.msra.mxu0 0.0
  %1163 = vmatprep.subr.mxu0 0.0
  %1164 = vmatpush1.msra.mxu0 0.0
  %1165 = vmatprep.subr.mxu0 0.0
  %1166 = vmatpush1.msra.mxu0 0.0
  %1167 = vmatprep.subr.mxu0 0.0
  %1168 = vmatpush1.msra.mxu0 0.0
  %1169 = vmatprep.subr.mxu0 0.0
  %1170 = vmatpush1.msra.mxu0 0.0
  %1171 = vmatprep.subr.mxu0 0.0
  %1172 = vmatpush1.msra.mxu0 0.0
  %1173 = vmatprep.subr.mxu0 0.0
  %1174 = vmatpush1.msra.mxu0 0.0
  %1175 = vmatprep.subr.mxu0 0.0
  %1176 = vmatpush1.msra.mxu0 0.0
  %1177 = vmatprep.subr.mxu0 0.0
  %1178 = vmatpush1.msra.mxu0 0.0
  %1179 = vmatprep.subr.mxu0 0.0
  %1180 = vmatpush1.msra.mxu0 0.0
  %1181 = vmatprep.subr.mxu0 0.0
  %1182 = vmatpush1.msra.mxu0 0.0
  %1183 = vmatprep.subr.mxu0 0.0
  %1184 = vmatpush1.msra.mxu0 0.0
  %1185 = vmatprep.subr.mxu0 0.0
  %1186 = vmatpush1.msra.mxu0 0.0
  %1187 = vmatprep.subr.mxu0 0.0
  %1188 = vmatpush1.msra.mxu0 0.0
  %1189 = vmatprep.subr.mxu0 0.0
  %1190 = vmatpush1.msra.mxu0 0.0
  %1191 = vmatprep.subr.mxu0 0.0
  %1192 = vmatpush1.msra.mxu0 0.0
  %1193 = vmatprep.subr.mxu0 0.0
  %1194 = vmatpush1.msra.mxu0 0.0
  %1195 = vmatprep.subr.mxu0 0.0
  %1196 = vmatpush1.msra.mxu0 0.0
  %1197 = vmatprep.subr.mxu0 0.0
  %1198 = vmatpush1.msra.mxu0 0.0
  %1199 = vmatprep.mubr.f32.mxu0 0.0
  %1200 = vmatmul.mubr.f32.gmra.mrb[0].mxu0 %v1049
  %v1201 = vpop.f32.mrb[0].mxu0
  %v1202 = vadd.f32 %v1040, %v1201
  %v1203 = vpop.f32.mrb[0].mxu0
  %1204 = vmatprep.mubr.f32.mxu0 0.0
  %1205 = vmatmul.mubr.f32.gmra.mrb[0].mxu0 %v1052
  %v1206 = vpop.f32.mrb[0].mxu0
  %v1207 = vadd.f32 %v1045, %v1206
  %v1208 = vpop.f32.mrb[0].mxu0
  %1209 = vdwg.mxu0
  %vm1210 = vcmp.gt.f32.partialorder %v1202, 0.0
  %vm1211 = vcmp.gt.f32.partialorder %v1207, 0.0
  %v1212 = vmul.f32 %v1202, 0.1
  %v1213 = vmul.f32 %v1207, 0.1
  %v1214 = vsel %vm1210, %v1202, %v1212
  %v1215 = vsel %vm1211, %v1207, %v1213
  %1216 = vmatprep.subr.mxu0 0.0
  %1217 = vmatpush1.msra.mxu0 %v299
  %1218 = vmatprep.subr.mxu0 0.0
  %1219 = vmatpush1.msra.mxu0 %v380
  %1220 = vmatprep.subr.mxu0 0.0
  %1221 = vmatpush1.msra.mxu0 %v464
  %1222 = vmatprep.subr.mxu0 0.0
  %1223 = vmatpush1.msra.mxu0 %v547
  %1224 = vmatprep.subr.mxu0 0.0
  %1225 = vmatpush1.msra.mxu0 %v630
  %1226 = vmatprep.subr.mxu0 0.0
  %1227 = vmatpush1.msra.mxu0 0.0
  %1228 = vmatprep.subr.mxu0 0.0
  %1229 = vmatpush1.msra.mxu0 0.0
  %1230 = vmatprep.subr.mxu0 0.0
  %1231 = vmatpush1.msra.mxu0 0.0
  %1232 = vmatprep.subr.mxu0 0.0
  %1233 = vmatpush1.msra.mxu0 0.0
  %1234 = vmatprep.subr.mxu0 0.0
  %1235 = vmatpush1.msra.mxu0 0.0
  %1236 = vmatprep.subr.mxu0 0.0
  %1237 = vmatpush1.msra.mxu0 0.0
  %1238 = vmatprep.subr.mxu0 0.0
  %1239 = vmatpush1.msra.mxu0 0.0
  %1240 = vmatprep.subr.mxu0 0.0
  %1241 = vmatpush1.msra.mxu0 0.0
  %1242 = vmatprep.subr.mxu0 0.0
  %1243 = vmatpush1.msra.mxu0 0.0
  %1244 = vmatprep.subr.mxu0 0.0
  %1245 = vmatpush1.msra.mxu0 0.0
  %1246 = vmatprep.subr.mxu0 0.0
  %1247 = vmatpush1.msra.mxu0 0.0
  %1248 = vmatprep.subr.mxu0 0.0
  %1249 = vmatpush1.msra.mxu0 0.0
  %1250 = vmatprep.subr.mxu0 0.0
  %1251 = vmatpush1.msra.mxu0 0.0
  %1252 = vmatprep.subr.mxu0 0.0
  %1253 = vmatpush1.msra.mxu0 0.0
  %1254 = vmatprep.subr.mxu0 0.0
  %1255 = vmatpush1.msra.mxu0 0.0
  %1256 = vmatprep.subr.mxu0 0.0
  %1257 = vmatpush1.msra.mxu0 0.0
  %1258 = vmatprep.subr.mxu0 0.0
  %1259 = vmatpush1.msra.mxu0 0.0
  %1260 = vmatprep.subr.mxu0 0.0
  %1261 = vmatpush1.msra.mxu0 0.0
  %1262 = vmatprep.subr.mxu0 0.0
  %1263 = vmatpush1.msra.mxu0 0.0
  %1264 = vmatprep.subr.mxu0 0.0
  %1265 = vmatpush1.msra.mxu0 0.0
  %1266 = vmatprep.subr.mxu0 0.0
  %1267 = vmatpush1.msra.mxu0 0.0
  %1268 = vmatprep.subr.mxu0 0.0
  %1269 = vmatpush1.msra.mxu0 0.0
  %1270 = vmatprep.subr.mxu0 0.0
  %1271 = vmatpush1.msra.mxu0 0.0
  %1272 = vmatprep.subr.mxu0 0.0
  %1273 = vmatpush1.msra.mxu0 0.0
  %1274 = vmatprep.subr.mxu0 0.0
  %1275 = vmatpush1.msra.mxu0 0.0
  %1276 = vmatprep.subr.mxu0 0.0
  %1277 = vmatpush1.msra.mxu0 0.0
  %1278 = vmatprep.subr.mxu0 0.0
  %1279 = vmatpush1.msra.mxu0 0.0
  %1280 = vmatprep.mubr.f32.mxu0 0.0
  %1281 = vmatmul.mubr.f32.gmra.mrb[0].mxu0 %v1049
  %v1282 = vpop.f32.mrb[0].mxu0
  %v1283 = vadd.f32 %v1040, %v1282
  %v1284 = vpop.f32.mrb[0].mxu0
  %1285 = vmatprep.mubr.f32.mxu0 0.0
  %1286 = vmatmul.mubr.f32.gmra.mrb[0].mxu0 %v1052
  %v1287 = vpop.f32.mrb[0].mxu0
  %v1288 = vadd.f32 %v1045, %v1287
  %v1289 = vpop.f32.mrb[0].mxu0
  %1290 = vdwg.mxu0
  %vm1291 = vcmp.gt.f32.partialorder %v1283, 0.0
  %vm1292 = vcmp.gt.f32.partialorder %v1288, 0.0
  %v1293 = vmul.f32 %v1283, 0.1
  %v1294 = vmul.f32 %v1288, 0.1
  %v1295 = vsel %vm1291, %v1283, %v1293
  %v1296 = vsel %vm1292, %v1288, %v1294
  %1297 = vmatprep.subr.mxu0 0.0
  %1298 = vmatpush1.msra.mxu0 %v380
  %1299 = vmatprep.subr.mxu0 0.0
  %1300 = vmatpush1.msra.mxu0 %v464
  %1301 = vmatprep.subr.mxu0 0.0
  %1302 = vmatpush1.msra.mxu0 %v547
  %1303 = vmatprep.subr.mxu0 0.0
  %1304 = vmatpush1.msra.mxu0 %v630
  %1305 = vmatprep.subr.mxu0 0.0
  %1306 = vmatpush1.msra.mxu0 %v714
  %1307 = vmatprep.subr.mxu0 0.0
  %1308 = vmatpush1.msra.mxu0 0.0
  %1309 = vmatprep.subr.mxu0 0.0
  %1310 = vmatpush1.msra.mxu0 0.0
  %1311 = vmatprep.subr.mxu0 0.0
  %1312 = vmatpush1.msra.mxu0 0.0
  %1313 = vmatprep.subr.mxu0 0.0
  %1314 = vmatpush1.msra.mxu0 0.0
  %1315 = vmatprep.subr.mxu0 0.0
  %1316 = vmatpush1.msra.mxu0 0.0
  %1317 = vmatprep.subr.mxu0 0.0
  %1318 = vmatpush1.msra.mxu0 0.0
  %1319 = vmatprep.subr.mxu0 0.0
  %1320 = vmatpush1.msra.mxu0 0.0
  %1321 = vmatprep.subr.mxu0 0.0
  %1322 = vmatpush1.msra.mxu0 0.0
  %1323 = vmatprep.subr.mxu0 0.0
  %1324 = vmatpush1.msra.mxu0 0.0
  %1325 = vmatprep.subr.mxu0 0.0
  %1326 = vmatpush1.msra.mxu0 0.0
  %1327 = vmatprep.subr.mxu0 0.0
  %1328 = vmatpush1.msra.mxu0 0.0
  %1329 = vmatprep.subr.mxu0 0.0
  %1330 = vmatpush1.msra.mxu0 0.0
  %1331 = vmatprep.subr.mxu0 0.0
  %1332 = vmatpush1.msra.mxu0 0.0
  %1333 = vmatprep.subr.mxu0 0.0
  %1334 = vmatpush1.msra.mxu0 0.0
  %1335 = vmatprep.subr.mxu0 0.0
  %1336 = vmatpush1.msra.mxu0 0.0
  %1337 = vmatprep.subr.mxu0 0.0
  %1338 = vmatpush1.msra.mxu0 0.0
  %1339 = vmatprep.subr.mxu0 0.0
  %1340 = vmatpush1.msra.mxu0 0.0
  %1341 = vmatprep.subr.mxu0 0.0
  %1342 = vmatpush1.msra.mxu0 0.0
  %1343 = vmatprep.subr.mxu0 0.0
  %1344 = vmatpush1.msra.mxu0 0.0
  %1345 = vmatprep.subr.mxu0 0.0
  %1346 = vmatpush1.msra.mxu0 0.0
  %1347 = vmatprep.subr.mxu0 0.0
  %1348 = vmatpush1.msra.mxu0 0.0
  %1349 = vmatprep.subr.mxu0 0.0
  %1350 = vmatpush1.msra.mxu0 0.0
  %1351 = vmatprep.subr.mxu0 0.0
  %1352 = vmatpush1.msra.mxu0 0.0
  %1353 = vmatprep.subr.mxu0 0.0
  %1354 = vmatpush1.msra.mxu0 0.0
  %1355 = vmatprep.subr.mxu0 0.0
  %1356 = vmatpush1.msra.mxu0 0.0
  %1357 = vmatprep.subr.mxu0 0.0
  %1358 = vmatpush1.msra.mxu0 0.0
  %1359 = vmatprep.subr.mxu0 0.0
  %1360 = vmatpush1.msra.mxu0 0.0
  %1361 = vmatprep.mubr.f32.mxu0 0.0
  %1362 = vmatmul.mubr.f32.gmra.mrb[0].mxu0 %v1049
  %v1363 = vpop.f32.mrb[0].mxu0
  %v1364 = vadd.f32 %v1040, %v1363
  %v1365 = vpop.f32.mrb[0].mxu0
  %1366 = vmatprep.mubr.f32.mxu0 0.0
  %1367 = vmatmul.mubr.f32.gmra.mrb[0].mxu0 %v1052
  %v1368 = vpop.f32.mrb[0].mxu0
  %v1369 = vadd.f32 %v1045, %v1368
  %v1370 = vpop.f32.mrb[0].mxu0
  %1371 = vdwg.mxu0
  %vm1372 = vcmp.gt.f32.partialorder %v1364, 0.0
  %vm1373 = vcmp.gt.f32.partialorder %v1369, 0.0
  %v1374 = vmul.f32 %v1364, 0.1
  %v1375 = vmul.f32 %v1369, 0.1
  %v1376 = vsel %vm1372, %v1364, %v1374
  %v1377 = vsel %vm1373, %v1369, %v1375
  %1378 = vmatprep.subr.mxu0 0.0
  %1379 = vmatpush1.msra.mxu0 %v464
  %1380 = vmatprep.subr.mxu0 0.0
  %1381 = vmatpush1.msra.mxu0 %v547
  %1382 = vmatprep.subr.mxu0 0.0
  %1383 = vmatpush1.msra.mxu0 %v630
  %1384 = vmatprep.subr.mxu0 0.0
  %1385 = vmatpush1.msra.mxu0 %v714
  %1386 = vmatprep.subr.mxu0 0.0
  %1387 = vmatpush1.msra.mxu0 %v789
  %1388 = vmatprep.subr.mxu0 0.0
  %1389 = vmatpush1.msra.mxu0 0.0
  %1390 = vmatprep.subr.mxu0 0.0
  %1391 = vmatpush1.msra.mxu0 0.0
  %1392 = vmatprep.subr.mxu0 0.0
  %1393 = vmatpush1.msra.mxu0 0.0
  %1394 = vmatprep.subr.mxu0 0.0
  %1395 = vmatpush1.msra.mxu0 0.0
  %1396 = vmatprep.subr.mxu0 0.0
  %1397 = vmatpush1.msra.mxu0 0.0
  %1398 = vmatprep.subr.mxu0 0.0
  %1399 = vmatpush1.msra.mxu0 0.0
  %1400 = vmatprep.subr.mxu0 0.0
  %1401 = vmatpush1.msra.mxu0 0.0
  %1402 = vmatprep.subr.mxu0 0.0
  %1403 = vmatpush1.msra.mxu0 0.0
  %1404 = vmatprep.subr.mxu0 0.0
  %1405 = vmatpush1.msra.mxu0 0.0
  %1406 = vmatprep.subr.mxu0 0.0
  %1407 = vmatpush1.msra.mxu0 0.0
  %1408 = vmatprep.subr.mxu0 0.0
  %1409 = vmatpush1.msra.mxu0 0.0
  %1410 = vmatprep.subr.mxu0 0.0
  %1411 = vmatpush1.msra.mxu0 0.0
  %1412 = vmatprep.subr.mxu0 0.0
  %1413 = vmatpush1.msra.mxu0 0.0
  %1414 = vmatprep.subr.mxu0 0.0
  %1415 = vmatpush1.msra.mxu0 0.0
  %1416 = vmatprep.subr.mxu0 0.0
  %1417 = vmatpush1.msra.mxu0 0.0
  %1418 = vmatprep.subr.mxu0 0.0
  %1419 = vmatpush1.msra.mxu0 0.0
  %1420 = vmatprep.subr.mxu0 0.0
  %1421 = vmatpush1.msra.mxu0 0.0
  %1422 = vmatprep.subr.mxu0 0.0
  %1423 = vmatpush1.msra.mxu0 0.0
  %1424 = vmatprep.subr.mxu0 0.0
  %1425 = vmatpush1.msra.mxu0 0.0
  %1426 = vmatprep.subr.mxu0 0.0
  %1427 = vmatpush1.msra.mxu0 0.0
  %1428 = vmatprep.subr.mxu0 0.0
  %1429 = vmatpush1.msra.mxu0 0.0
  %1430 = vmatprep.subr.mxu0 0.0
  %1431 = vmatpush1.msra.mxu0 0.0
  %1432 = vmatprep.subr.mxu0 0.0
  %1433 = vmatpush1.msra.mxu0 0.0
  %1434 = vmatprep.subr.mxu0 0.0
  %1435 = vmatpush1.msra.mxu0 0.0
  %1436 = vmatprep.subr.mxu0 0.0
  %1437 = vmatpush1.msra.mxu0 0.0
  %1438 = vmatprep.subr.mxu0 0.0
  %1439 = vmatpush1.msra.mxu0 0.0
  %1440 = vmatprep.subr.mxu0 0.0
  %1441 = vmatpush1.msra.mxu0 0.0
  %1442 = vmatprep.mubr.f32.mxu0 0.0
  %1443 = vmatmul.mubr.f32.gmra.mrb[0].mxu0 %v1049
  %v1444 = vpop.f32.mrb[0].mxu0
  %v1445 = vadd.f32 %v1040, %v1444
  %v1446 = vpop.f32.mrb[0].mxu0
  %1447 = vmatprep.mubr.f32.mxu0 0.0
  %1448 = vmatmul.mubr.f32.gmra.mrb[0].mxu0 %v1052
  %v1449 = vpop.f32.mrb[0].mxu0
  %v1450 = vadd.f32 %v1045, %v1449
  %v1451 = vpop.f32.mrb[0].mxu0
  %1452 = vdwg.mxu0
  %vm1453 = vcmp.gt.f32.partialorder %v1445, 0.0
  %vm1454 = vcmp.gt.f32.partialorder %v1450, 0.0
  %v1455 = vmul.f32 %v1445, 0.1
  %v1456 = vmul.f32 %v1450, 0.1
  %v1457 = vsel %vm1453, %v1445, %v1455
  %v1458 = vsel %vm1454, %v1450, %v1456
  %1459 = vmatprep.subr.mxu0 0.0
  %1460 = vmatpush1.msra.mxu0 %v547
  %1461 = vmatprep.subr.mxu0 0.0
  %1462 = vmatpush1.msra.mxu0 %v630
  %1463 = vmatprep.subr.mxu0 0.0
  %1464 = vmatpush1.msra.mxu0 %v714
  %1465 = vmatprep.subr.mxu0 0.0
  %1466 = vmatpush1.msra.mxu0 %v789
  %1467 = vmatprep.subr.mxu0 0.0
  %1468 = vmatpush1.msra.mxu0 %v870
  %1469 = vmatprep.subr.mxu0 0.0
  %1470 = vmatpush1.msra.mxu0 0.0
  %1471 = vmatprep.subr.mxu0 0.0
  %1472 = vmatpush1.msra.mxu0 0.0
  %1473 = vmatprep.subr.mxu0 0.0
  %1474 = vmatpush1.msra.mxu0 0.0
  %1475 = vmatprep.subr.mxu0 0.0
  %1476 = vmatpush1.msra.mxu0 0.0
  %1477 = vmatprep.subr.mxu0 0.0
  %1478 = vmatpush1.msra.mxu0 0.0
  %1479 = vmatprep.subr.mxu0 0.0
  %1480 = vmatpush1.msra.mxu0 0.0
  %1481 = vmatprep.subr.mxu0 0.0
  %1482 = vmatpush1.msra.mxu0 0.0
  %1483 = vmatprep.subr.mxu0 0.0
  %1484 = vmatpush1.msra.mxu0 0.0
  %1485 = vmatprep.subr.mxu0 0.0
  %1486 = vmatpush1.msra.mxu0 0.0
  %1487 = vmatprep.subr.mxu0 0.0
  %1488 = vmatpush1.msra.mxu0 0.0
  %1489 = vmatprep.subr.mxu0 0.0
  %1490 = vmatpush1.msra.mxu0 0.0
  %1491 = vmatprep.subr.mxu0 0.0
  %1492 = vmatpush1.msra.mxu0 0.0
  %1493 = vmatprep.subr.mxu0 0.0
  %1494 = vmatpush1.msra.mxu0 0.0
  %1495 = vmatprep.subr.mxu0 0.0
  %1496 = vmatpush1.msra.mxu0 0.0
  %1497 = vmatprep.subr.mxu0 0.0
  %1498 = vmatpush1.msra.mxu0 0.0
  %1499 = vmatprep.subr.mxu0 0.0
  %1500 = vmatpush1.msra.mxu0 0.0
  %1501 = vmatprep.subr.mxu0 0.0
  %1502 = vmatpush1.msra.mxu0 0.0
  %1503 = vmatprep.subr.mxu0 0.0
  %1504 = vmatpush1.msra.mxu0 0.0
  %1505 = vmatprep.subr.mxu0 0.0
  %1506 = vmatpush1.msra.mxu0 0.0
  %1507 = vmatprep.subr.mxu0 0.0
  %1508 = vmatpush1.msra.mxu0 0.0
  %1509 = vmatprep.subr.mxu0 0.0
  %1510 = vmatpush1.msra.mxu0 0.0
  %1511 = vmatprep.subr.mxu0 0.0
  %1512 = vmatpush1.msra.mxu0 0.0
  %1513 = vmatprep.subr.mxu0 0.0
  %1514 = vmatpush1.msra.mxu0 0.0
  %1515 = vmatprep.subr.mxu0 0.0
  %1516 = vmatpush1.msra.mxu0 0.0
  %1517 = vmatprep.subr.mxu0 0.0
  %1518 = vmatpush1.msra.mxu0 0.0
  %1519 = vmatprep.subr.mxu0 0.0
  %1520 = vmatpush1.msra.mxu0 0.0
  %1521 = vmatprep.subr.mxu0 0.0
  %1522 = vmatpush1.msra.mxu0 0.0
  %1523 = vmatprep.mubr.f32.mxu0 0.0
  %1524 = vmatmul.mubr.f32.gmra.mrb[0].mxu0 %v1049
  %v1525 = vpop.f32.mrb[0].mxu0
  %v1526 = vadd.f32 %v1040, %v1525
  %v1527 = vpop.f32.mrb[0].mxu0
  %1528 = vmatprep.mubr.f32.mxu0 0.0
  %1529 = vmatmul.mubr.f32.gmra.mrb[0].mxu0 %v1052
  %v1530 = vpop.f32.mrb[0].mxu0
  %v1531 = vadd.f32 %v1045, %v1530
  %v1532 = vpop.f32.mrb[0].mxu0
  %1533 = vdwg.mxu0
  %vm1534 = vcmp.gt.f32.partialorder %v1526, 0.0
  %vm1535 = vcmp.gt.f32.partialorder %v1531, 0.0
  %v1536 = vmul.f32 %v1526, 0.1
  %v1537 = vmul.f32 %v1531, 0.1
  %v1538 = vsel %vm1534, %v1526, %v1536
  %v1539 = vsel %vm1535, %v1531, %v1537
  %1540 = vmatprep.subr.mxu0 0.0
  %1541 = vmatpush1.msra.mxu0 %v630
  %1542 = vmatprep.subr.mxu0 0.0
  %1543 = vmatpush1.msra.mxu0 %v714
  %1544 = vmatprep.subr.mxu0 0.0
  %1545 = vmatpush1.msra.mxu0 %v789
  %1546 = vmatprep.subr.mxu0 0.0
  %1547 = vmatpush1.msra.mxu0 %v870
  %1548 = vmatprep.subr.mxu0 0.0
  %1549 = vmatpush1.msra.mxu0 %v951
  %1550 = vmatprep.subr.mxu0 0.0
  %1551 = vmatpush1.msra.mxu0 0.0
  %1552 = vmatprep.subr.mxu0 0.0
  %1553 = vmatpush1.msra.mxu0 0.0
  %1554 = vmatprep.subr.mxu0 0.0
  %1555 = vmatpush1.msra.mxu0 0.0
  %1556 = vmatprep.subr.mxu0 0.0
  %1557 = vmatpush1.msra.mxu0 0.0
  %1558 = vmatprep.subr.mxu0 0.0
  %1559 = vmatpush1.msra.mxu0 0.0
  %1560 = vmatprep.subr.mxu0 0.0
  %1561 = vmatpush1.msra.mxu0 0.0
  %1562 = vmatprep.subr.mxu0 0.0
  %1563 = vmatpush1.msra.mxu0 0.0
  %1564 = vmatprep.subr.mxu0 0.0
  %1565 = vmatpush1.msra.mxu0 0.0
  %1566 = vmatprep.subr.mxu0 0.0
  %1567 = vmatpush1.msra.mxu0 0.0
  %1568 = vmatprep.subr.mxu0 0.0
  %1569 = vmatpush1.msra.mxu0 0.0
  %1570 = vmatprep.subr.mxu0 0.0
  %1571 = vmatpush1.msra.mxu0 0.0
  %1572 = vmatprep.subr.mxu0 0.0
  %1573 = vmatpush1.msra.mxu0 0.0
  %1574 = vmatprep.subr.mxu0 0.0
  %1575 = vmatpush1.msra.mxu0 0.0
  %1576 = vmatprep.subr.mxu0 0.0
  %1577 = vmatpush1.msra.mxu0 0.0
  %1578 = vmatprep.subr.mxu0 0.0
  %1579 = vmatpush1.msra.mxu0 0.0
  %1580 = vmatprep.subr.mxu0 0.0
  %1581 = vmatpush1.msra.mxu0 0.0
  %1582 = vmatprep.subr.mxu0 0.0
  %1583 = vmatpush1.msra.mxu0 0.0
  %1584 = vmatprep.subr.mxu0 0.0
  %1585 = vmatpush1.msra.mxu0 0.0
  %1586 = vmatprep.subr.mxu0 0.0
  %1587 = vmatpush1.msra.mxu0 0.0
  %1588 = vmatprep.subr.mxu0 0.0
  %1589 = vmatpush1.msra.mxu0 0.0
  %1590 = vmatprep.subr.mxu0 0.0
  %1591 = vmatpush1.msra.mxu0 0.0
  %1592 = vmatprep.subr.mxu0 0.0
  %1593 = vmatpush1.msra.mxu0 0.0
  %1594 = vmatprep.subr.mxu0 0.0
  %1595 = vmatpush1.msra.mxu0 0.0
  %1596 = vmatprep.subr.mxu0 0.0
  %1597 = vmatpush1.msra.mxu0 0.0
  %1598 = vmatprep.subr.mxu0 0.0
  %1599 = vmatpush1.msra.mxu0 0.0
  %1600 = vmatprep.subr.mxu0 0.0
  %1601 = vmatpush1.msra.mxu0 0.0
  %1602 = vmatprep.subr.mxu0 0.0
  %1603 = vmatpush1.msra.mxu0 0.0
  %1604 = vmatprep.mubr.f32.mxu0 0.0
  %1605 = vmatmul.mubr.f32.gmra.mrb[0].mxu0 %v1049
  %v1606 = vpop.f32.mrb[0].mxu0
  %v1607 = vadd.f32 %v1040, %v1606
  %v1608 = vpop.f32.mrb[0].mxu0
  %1609 = vmatprep.mubr.f32.mxu0 0.0
  %1610 = vmatmul.mubr.f32.gmra.mrb[0].mxu0 %v1052
  %v1611 = vpop.f32.mrb[0].mxu0
  %v1612 = vadd.f32 %v1045, %v1611
  %v1613 = vpop.f32.mrb[0].mxu0
  %1614 = vdwg.mxu0
  %vm1615 = vcmp.gt.f32.partialorder %v1607, 0.0
  %vm1616 = vcmp.gt.f32.partialorder %v1612, 0.0
  %v1617 = vmul.f32 %v1607, 0.1
  %v1618 = vmul.f32 %v1612, 0.1
  %v1619 = vsel %vm1615, %v1607, %v1617
  %v1620 = vsel %vm1616, %v1612, %v1618
  %1621 = vmatprep.subr.mxu0 0.0
  %1622 = vmatpush1.msra.mxu0 %v714
  %1623 = vmatprep.subr.mxu0 0.0
  %1624 = vmatpush1.msra.mxu0 %v789
  %1625 = vmatprep.subr.mxu0 0.0
  %1626 = vmatpush1.msra.mxu0 %v870
  %1627 = vmatprep.subr.mxu0 0.0
  %1628 = vmatpush1.msra.mxu0 %v951
  %1629 = vmatprep.subr.mxu0 0.0
  %1630 = vmatpush1.msra.mxu0 %v1032
  %1631 = vmatprep.subr.mxu0 0.0
  %1632 = vmatpush1.msra.mxu0 0.0
  %1633 = vmatprep.subr.mxu0 0.0
  %1634 = vmatpush1.msra.mxu0 0.0
  %1635 = vmatprep.subr.mxu0 0.0
  %1636 = vmatpush1.msra.mxu0 0.0
  %1637 = vmatprep.subr.mxu0 0.0
  %1638 = vmatpush1.msra.mxu0 0.0
  %1639 = vmatprep.subr.mxu0 0.0
  %1640 = vmatpush1.msra.mxu0 0.0
  %1641 = vmatprep.subr.mxu0 0.0
  %1642 = vmatpush1.msra.mxu0 0.0
  %1643 = vmatprep.subr.mxu0 0.0
  %1644 = vmatpush1.msra.mxu0 0.0
  %1645 = vmatprep.subr.mxu0 0.0
  %1646 = vmatpush1.msra.mxu0 0.0
  %1647 = vmatprep.subr.mxu0 0.0
  %1648 = vmatpush1.msra.mxu0 0.0
  %1649 = vmatprep.subr.mxu0 0.0
  %1650 = vmatpush1.msra.mxu0 0.0
  %1651 = vmatprep.subr.mxu0 0.0
  %1652 = vmatpush1.msra.mxu0 0.0
  %1653 = vmatprep.subr.mxu0 0.0
  %1654 = vmatpush1.msra.mxu0 0.0
  %1655 = vmatprep.subr.mxu0 0.0
  %1656 = vmatpush1.msra.mxu0 0.0
  %1657 = vmatprep.subr.mxu0 0.0
  %1658 = vmatpush1.msra.mxu0 0.0
  %1659 = vmatprep.subr.mxu0 0.0
  %1660 = vmatpush1.msra.mxu0 0.0
  %1661 = vmatprep.subr.mxu0 0.0
  %1662 = vmatpush1.msra.mxu0 0.0
  %1663 = vmatprep.subr.mxu0 0.0
  %1664 = vmatpush1.msra.mxu0 0.0
  %1665 = vmatprep.subr.mxu0 0.0
  %1666 = vmatpush1.msra.mxu0 0.0
  %1667 = vmatprep.subr.mxu0 0.0
  %1668 = vmatpush1.msra.mxu0 0.0
  %1669 = vmatprep.subr.mxu0 0.0
  %1670 = vmatpush1.msra.mxu0 0.0
  %1671 = vmatprep.subr.mxu0 0.0
  %1672 = vmatpush1.msra.mxu0 0.0
  %1673 = vmatprep.subr.mxu0 0.0
  %1674 = vmatpush1.msra.mxu0 0.0
  %1675 = vmatprep.subr.mxu0 0.0
  %1676 = vmatpush1.msra.mxu0 0.0
  %1677 = vmatprep.subr.mxu0 0.0
  %1678 = vmatpush1.msra.mxu0 0.0
  %1679 = vmatprep.subr.mxu0 0.0
  %1680 = vmatpush1.msra.mxu0 0.0
  %1681 = vmatprep.subr.mxu0 0.0
  %1682 = vmatpush1.msra.mxu0 0.0
  %1683 = vmatprep.subr.mxu0 0.0
  %1684 = vmatpush1.msra.mxu0 0.0
  %1685 = vmatprep.mubr.f32.mxu0 0.0
  %1686 = vmatmul.mubr.f32.gmra.mrb[0].mxu0 %v1049
  %v1687 = vpop.f32.mrb[0].mxu0
  %v1688 = vadd.f32 %v1040, %v1687
  %v1689 = vpop.f32.mrb[0].mxu0
  %1690 = vmatprep.mubr.f32.mxu0 0.0
  %1691 = vmatmul.mubr.f32.gmra.mrb[0].mxu0 %v1052
  %v1692 = vpop.f32.mrb[0].mxu0
  %v1693 = vadd.f32 %v1045, %v1692
  %v1694 = vpop.f32.mrb[0].mxu0
  %1695 = vdwg.mxu0
  %vm1696 = vcmp.gt.f32.partialorder %v1688, 0.0
  %vm1697 = vcmp.gt.f32.partialorder %v1693, 0.0
  %v1698 = vmul.f32 %v1688, 0.1
  %v1699 = vmul.f32 %v1693, 0.1
  %v1700 = vsel %vm1696, %v1688, %v1698
  %v1701 = vsel %vm1697, %v1693, %v1699
  %v1702 = vadd.f32 %v1133, %v1214
  %v1703 = vadd.f32 %v1134, %v1215
  %v1704 = vadd.f32 %v1702, %v1295
  %v1705 = vadd.f32 %v1703, %v1296
  %v1706 = vadd.f32 %v1704, %v1376
  %v1707 = vadd.f32 %v1705, %v1377
  %v1708 = vadd.f32 %v1706, %v1457
  %v1709 = vadd.f32 %v1707, %v1458
  %v1710 = vadd.f32 %v1708, %v1538
  %v1711 = vadd.f32 %v1709, %v1539
  %v1712 = vadd.f32 %v1710, %v1619
  %v1713 = vadd.f32 %v1711, %v1620
  %v1714 = vadd.f32 %v1712, %v1700
  %v1715 = vadd.f32 %v1713, %v1701
  %v1716 = vld [vmem:[%s5] sm:$0xff]
  %v1717 = vld [vmem:[%s5 + $0x8] sm:$0xff]
  %v1718 = vld [vmem:[%s5 + $0x10] sm:$0xff]
  %v1719 = vld [vmem:[%s5 + $0x18] sm:$0xff]
  %v1720 = vld [vmem:[%s5 + $0x20] sm:$0xff]
  %v1721 = vld [vmem:[%s5 + $0x28] sm:$0xff]
  %v1722 = vld [vmem:[%s5 + $0x30] sm:$0xff]
  %v1723 = vld [vmem:[%s5 + $0x38] sm:$0xff]
  %v1724 = vld [vmem:[%s5 + $0x40] sm:$0xff]
  %v1725 = vld [vmem:[%s5 + $0x48] sm:$0xff]
  %v1726 = vld [vmem:[%s5 + $0x50] sm:$0xff]
  %v1727 = vld [vmem:[%s5 + $0x58] sm:$0xff]
  %v1728 = vld [vmem:[%s5 + $0x60] sm:$0xff]
  %v1729 = vld [vmem:[%s5 + $0x68] sm:$0xff]
  %v1730 = vld [vmem:[%s5 + $0x70] sm:$0xff]
  %v1731 = vld [vmem:[%s5 + $0x78] sm:$0xff]
  %1732 = vmatprep.subr.mxu0 0.0
  %1733 = vmatpush1.msra.mxu0 %v1716
  %1734 = vmatprep.subr.mxu0 0.0
  %1735 = vmatpush1.msra.mxu0 %v1717
  %1736 = vmatprep.subr.mxu0 0.0
  %1737 = vmatpush1.msra.mxu0 %v1718
  %1738 = vmatprep.subr.mxu0 0.0
  %1739 = vmatpush1.msra.mxu0 %v1719
  %1740 = vmatprep.subr.mxu0 0.0
  %1741 = vmatpush1.msra.mxu0 %v1720
  %1742 = vmatprep.subr.mxu0 0.0
  %1743 = vmatpush1.msra.mxu0 %v1721
  %1744 = vmatprep.subr.mxu0 0.0
  %1745 = vmatpush1.msra.mxu0 %v1722
  %1746 = vmatprep.subr.mxu0 0.0
  %1747 = vmatpush1.msra.mxu0 %v1723
  %1748 = vmatprep.subr.mxu0 0.0
  %1749 = vmatpush1.msra.mxu0 %v1724
  %1750 = vmatprep.subr.mxu0 0.0
  %1751 = vmatpush1.msra.mxu0 %v1725
  %1752 = vmatprep.subr.mxu0 0.0
  %1753 = vmatpush1.msra.mxu0 %v1726
  %1754 = vmatprep.subr.mxu0 0.0
  %1755 = vmatpush1.msra.mxu0 %v1727
  %1756 = vmatprep.subr.mxu0 0.0
  %1757 = vmatpush1.msra.mxu0 %v1728
  %1758 = vmatprep.subr.mxu0 0.0
  %1759 = vmatpush1.msra.mxu0 %v1729
  %1760 = vmatprep.subr.mxu0 0.0
  %1761 = vmatpush1.msra.mxu0 %v1730
  %1762 = vmatprep.subr.mxu0 0.0
  %1763 = vmatpush1.msra.mxu0 %v1731
  %1764 = vmatprep.subr.mxu0 0.0
  %1765 = vmatpush1.msra.mxu0 0.0
  %1766 = vmatprep.subr.mxu0 0.0
  %1767 = vmatpush1.msra.mxu0 0.0
  %1768 = vmatprep.subr.mxu0 0.0
  %1769 = vmatpush1.msra.mxu0 0.0
  %1770 = vmatprep.subr.mxu0 0.0
  %1771 = vmatpush1.msra.mxu0 0.0
  %1772 = vmatprep.subr.mxu0 0.0
  %1773 = vmatpush1.msra.mxu0 0.0
  %1774 = vmatprep.subr.mxu0 0.0
  %1775 = vmatpush1.msra.mxu0 0.0
  %1776 = vmatprep.subr.mxu0 0.0
  %1777 = vmatpush1.msra.mxu0 0.0
  %1778 = vmatprep.subr.mxu0 0.0
  %1779 = vmatpush1.msra.mxu0 0.0
  %1780 = vmatprep.subr.mxu0 0.0
  %1781 = vmatpush1.msra.mxu0 0.0
  %1782 = vmatprep.subr.mxu0 0.0
  %1783 = vmatpush1.msra.mxu0 0.0
  %1784 = vmatprep.subr.mxu0 0.0
  %1785 = vmatpush1.msra.mxu0 0.0
  %1786 = vmatprep.subr.mxu0 0.0
  %1787 = vmatpush1.msra.mxu0 0.0
  %1788 = vmatprep.subr.mxu0 0.0
  %1789 = vmatpush1.msra.mxu0 0.0
  %1790 = vmatprep.subr.mxu0 0.0
  %1791 = vmatpush1.msra.mxu0 0.0
  %1792 = vmatprep.subr.mxu0 0.0
  %1793 = vmatpush1.msra.mxu0 0.0
  %1794 = vmatprep.subr.mxu0 0.0
  %1795 = vmatpush1.msra.mxu0 0.0
  %1796 = vmatprep.mubr.f32.mxu0 0.0
  %1797 = vmatmul.mubr.f32.gmra.mrb[0].mxu0 %v1714
  %v1798 = vpop.f32.mrb[0].mxu0
  %v1799 = vadd.f32 0.0, %v1798
  %v1800 = vpop.f32.mrb[0].mxu0
  %1801 = vmatprep.mubr.f32.mxu0 0.0
  %1802 = vmatmul.mubr.f32.gmra.mrb[0].mxu0 %v1715
  %v1803 = vpop.f32.mrb[0].mxu0
  %v1804 = vadd.f32 0.0, %v1803
  %v1805 = vpop.f32.mrb[0].mxu0
  %1806 = vdwg.mxu0
  %v1807 = vld [vmem:[%s7] sm:$0xff]
  %v1808 = vld [vmem:[%s7 + $0x8] sm:$0xff]
  %v1809 = vld [vmem:[%s7 + $0x10] sm:$0xff]
  %v1810 = vld [vmem:[%s7 + $0x18] sm:$0xff]
  %v1811 = vld [vmem:[%s7 + $0x20] sm:$0xff]
  %v1812 = vld [vmem:[%s7 + $0x28] sm:$0xff]
  %v1813 = vld [vmem:[%s7 + $0x30] sm:$0xff]
  %v1814 = vld [vmem:[%s7 + $0x38] sm:$0xff]
  %v1815 = vld [vmem:[%s7 + $0x40] sm:$0xff]
  %v1816 = vld [vmem:[%s7 + $0x48] sm:$0xff]
  %v1817 = vld [vmem:[%s7 + $0x50] sm:$0xff]
  %v1818 = vld [vmem:[%s7 + $0x58] sm:$0xff]
  %v1819 = vld [vmem:[%s7 + $0x60] sm:$0xff]
  %v1820 = vld [vmem:[%s7 + $0x68] sm:$0xff]
  %v1821 = vld [vmem:[%s7 + $0x70] sm:$0xff]
  %v1822 = vld [vmem:[%s7 + $0x78] sm:$0xff]
  %v1823 = vld [vmem:[%s6] sm:$0xff]
  %v1824 = vld [vmem:[%s6 + $0x8] sm:$0xff]
  %v1825 = vld [vmem:[%s6 + $0x10] sm:$0xff]
  %v1826 = vld [vmem:[%s6 + $0x18] sm:$0xff]
  %v1827 = vld [vmem:[%s6 + $0x20] sm:$0xff]
  %v1828 = vld [vmem:[%s6 + $0x28] sm:$0xff]
  %v1829 = vld [vmem:[%s6 + $0x30] sm:$0xff]
  %v1830 = vld [vmem:[%s6 + $0x38] sm:$0xff]
  %v1831 = vld [vmem:[%s6 + $0x40] sm:$0xff]
  %v1832 = vld [vmem:[%s6 + $0x48] sm:$0xff]
  %v1833 = vld [vmem:[%s6 + $0x50] sm:$0xff]
  %v1834 = vld [vmem:[%s6 + $0x58] sm:$0xff]
  %v1835 = vld [vmem:[%s6 + $0x60] sm:$0xff]
  %v1836 = vld [vmem:[%s6 + $0x68] sm:$0xff]
  %v1837 = vld [vmem:[%s6 + $0x70] sm:$0xff]
  %v1838 = vld [vmem:[%s6 + $0x78] sm:$0xff]
  %v1839 = vld [vmem:[%s8] sm:$0xff]
  %v1840 = vld [vmem:[%s8 + $0x8] sm:$0xff]
  %v1841 = vld [vmem:[%s8 + $0x10] sm:$0xff]
  %v1842 = vld [vmem:[%s8 + $0x18] sm:$0xff]
  %v1843 = vld [vmem:[%s8 + $0x20] sm:$0xff]
  %v1844 = vld [vmem:[%s8 + $0x28] sm:$0xff]
  %v1845 = vld [vmem:[%s8 + $0x30] sm:$0xff]
  %v1846 = vld [vmem:[%s8 + $0x38] sm:$0xff]
  %v1847 = vld [vmem:[%s8 + $0x40] sm:$0xff]
  %v1848 = vld [vmem:[%s8 + $0x48] sm:$0xff]
  %v1849 = vld [vmem:[%s8 + $0x50] sm:$0xff]
  %v1850 = vld [vmem:[%s8 + $0x58] sm:$0xff]
  %v1851 = vld [vmem:[%s8 + $0x60] sm:$0xff]
  %v1852 = vld [vmem:[%s8 + $0x68] sm:$0xff]
  %v1853 = vld [vmem:[%s8 + $0x70] sm:$0xff]
  %v1854 = vld [vmem:[%s8 + $0x78] sm:$0xff]
  %1856 = vset.pattern.permute.xlu0 0
  %1857 = vperm.xlu0 %1856, %v1839
  %v1858 = vpop.permute.xlu0 %1857
  %1861 = vset.pattern.permute.xlu0 0
  %1862 = vperm.xlu0 %1861, %v1840
  %v1863 = vpop.permute.xlu0 %1862
  %1866 = vset.pattern.permute.xlu0 0
  %1867 = vperm.xlu0 %1866, %v1841
  %v1868 = vpop.permute.xlu0 %1867
  %1871 = vset.pattern.permute.xlu0 0
  %1872 = vperm.xlu0 %1871, %v1842
  %v1873 = vpop.permute.xlu0 %1872
  %1876 = vset.pattern.permute.xlu0 0
  %1877 = vperm.xlu0 %1876, %v1843
  %v1878 = vpop.permute.xlu0 %1877
  %1881 = vset.pattern.permute.xlu0 0
  %1882 = vperm.xlu0 %1881, %v1844
  %v1883 = vpop.permute.xlu0 %1882
  %1886 = vset.pattern.permute.xlu0 0
  %1887 = vperm.xlu0 %1886, %v1845
  %v1888 = vpop.permute.xlu0 %1887
  %1891 = vset.pattern.permute.xlu0 0
  %1892 = vperm.xlu0 %1891, %v1846
  %v1893 = vpop.permute.xlu0 %1892
  %1896 = vset.pattern.permute.xlu0 0
  %1897 = vperm.xlu0 %1896, %v1847
  %v1898 = vpop.permute.xlu0 %1897
  %1901 = vset.pattern.permute.xlu0 0
  %1902 = vperm.xlu0 %1901, %v1848
  %v1903 = vpop.permute.xlu0 %1902
  %1906 = vset.pattern.permute.xlu0 0
  %1907 = vperm.xlu0 %1906, %v1849
  %v1908 = vpop.permute.xlu0 %1907
  %1911 = vset.pattern.permute.xlu0 0
  %1912 = vperm.xlu0 %1911, %v1850
  %v1913 = vpop.permute.xlu0 %1912
  %1916 = vset.pattern.permute.xlu0 0
  %1917 = vperm.xlu0 %1916, %v1851
  %v1918 = vpop.permute.xlu0 %1917
  %1921 = vset.pattern.permute.xlu0 0
  %1922 = vperm.xlu0 %1921, %v1852
  %v1923 = vpop.permute.xlu0 %1922
  %1926 = vset.pattern.permute.xlu0 0
  %1927 = vperm.xlu0 %1926, %v1853
  %v1928 = vpop.permute.xlu0 %1927
  %1931 = vset.pattern.permute.xlu0 0
  %1932 = vperm.xlu0 %1931, %v1854
  %v1933 = vpop.permute.xlu0 %1932
  %vm1935 = vcmask 130048
  %v1937 = vsel %vm1935, %v1823, 0
  %v1940 = vsel %vm1935, %v1824, 0
  %v1943 = vsel %vm1935, %v1825, 0
  %v1946 = vsel %vm1935, %v1826, 0
  %v1949 = vsel %vm1935, %v1827, 0
  %v1952 = vsel %vm1935, %v1828, 0
  %v1955 = vsel %vm1935, %v1829, 0
  %v1958 = vsel %vm1935, %v1830, 0
  %v1961 = vsel %vm1935, %v1831, 0
  %v1964 = vsel %vm1935, %v1832, 0
  %v1967 = vsel %vm1935, %v1833, 0
  %v1970 = vsel %vm1935, %v1834, 0
  %v1973 = vsel %vm1935, %v1835, 0
  %v1976 = vsel %vm1935, %v1836, 0
  %v1979 = vsel %vm1935, %v1837, 0
  %v1982 = vsel %vm1935, %v1838, 0
  %1984 = vmatprep.subr.mxu0 0.0
  %1985 = vmatpush1.msra.mxu0 %v1799
  %1986 = vmatprep.subr.mxu0 0.0
  %1987 = vmatpush1.msra.mxu0 %v1804
  %1988 = vmatprep.subr.mxu0 0.0
  %1989 = vmatpush1.msra.mxu0 0.0
  %1990 = vmatprep.subr.mxu0 0.0
  %1991 = vmatpush1.msra.mxu0 0.0
  %1992 = vmatprep.subr.mxu0 0.0
  %1993 = vmatpush1.msra.mxu0 0.0
  %1994 = vmatprep.subr.mxu0 0.0
  %1995 = vmatpush1.msra.mxu0 0.0
  %1996 = vmatprep.subr.mxu0 0.0
  %1997 = vmatpush1.msra.mxu0 0.0
  %1998 = vmatprep.subr.mxu0 0.0
  %1999 = vmatpush1.msra.mxu0 0.0
  %2000 = vmatprep.subr.mxu0 0.0
  %2001 = vmatpush1.msra.mxu0 0.0
  %2002 = vmatprep.subr.mxu0 0.0
  %2003 = vmatpush1.msra.mxu0 0.0
  %2004 = vmatprep.subr.mxu0 0.0
  %2005 = vmatpush1.msra.mxu0 0.0
  %2006 = vmatprep.subr.mxu0 0.0
  %2007 = vmatpush1.msra.mxu0 0.0
  %2008 = vmatprep.subr.mxu0 0.0
  %2009 = vmatpush1.msra.mxu0 0.0
  %2010 = vmatprep.subr.mxu0 0.0
  %2011 = vmatpush1.msra.mxu0 0.0
  %2012 = vmatprep.subr.mxu0 0.0
  %2013 = vmatpush1.msra.mxu0 0.0
  %2014 = vmatprep.subr.mxu0 0.0
  %2015 = vmatpush1.msra.mxu0 0.0
  %2016 = vmatprep.subr.mxu0 0.0
  %2017 = vmatpush1.msra.mxu0 0.0
  %2018 = vmatprep.subr.mxu0 0.0
  %2019 = vmatpush1.msra.mxu0 0.0
  %2020 = vmatprep.subr.mxu0 0.0
  %2021 = vmatpush1.msra.mxu0 0.0
  %2022 = vmatprep.subr.mxu0 0.0
  %2023 = vmatpush1.msra.mxu0 0.0
  %2024 = vmatprep.subr.mxu0 0.0
  %2025 = vmatpush1.msra.mxu0 0.0
  %2026 = vmatprep.subr.mxu0 0.0
  %2027 = vmatpush1.msra.mxu0 0.0
  %2028 = vmatprep.subr.mxu0 0.0
  %2029 = vmatpush1.msra.mxu0 0.0
  %2030 = vmatprep.subr.mxu0 0.0
  %2031 = vmatpush1.msra.mxu0 0.0
  %2032 = vmatprep.subr.mxu0 0.0
  %2033 = vmatpush1.msra.mxu0 0.0
  %2034 = vmatprep.subr.mxu0 0.0
  %2035 = vmatpush1.msra.mxu0 0.0
  %2036 = vmatprep.subr.mxu0 0.0
  %2037 = vmatpush1.msra.mxu0 0.0
  %2038 = vmatprep.subr.mxu0 0.0
  %2039 = vmatpush1.msra.mxu0 0.0
  %2040 = vmatprep.subr.mxu0 0.0
  %2041 = vmatpush1.msra.mxu0 0.0
  %2042 = vmatprep.subr.mxu0 0.0
  %2043 = vmatpush1.msra.mxu0 0.0
  %2044 = vmatprep.subr.mxu0 0.0
  %2045 = vmatpush1.msra.mxu0 0.0
  %2046 = vmatprep.subr.mxu0 0.0
  %2047 = vmatpush1.msra.mxu0 0.0
  %2048 = vmatprep.mubr.f32.mxu0 0.0
  %2049 = vmatmul.mubr.f32.gmra.mrb[0].mxu0 %v1937
  %v2050 = vpop.f32.mrb[0].mxu0
  %v2051 = vadd.f32 %v1858, %v2050
  %v2052 = vpop.f32.mrb[0].mxu0
  %2053 = vmatprep.mubr.f32.mxu0 0.0
  %2054 = vmatmul.mubr.f32.gmra.mrb[0].mxu0 %v1940
  %v2055 = vpop.f32.mrb[0].mxu0
  %v2056 = vadd.f32 %v1863, %v2055
  %v2057 = vpop.f32.mrb[0].mxu0
  %2058 = vmatprep.mubr.f32.mxu0 0.0
  %2059 = vmatmul.mubr.f32.gmra.mrb[0].mxu0 %v1943
  %v2060 = vpop.f32.mrb[0].mxu0
  %v2061 = vadd.f32 %v1868, %v2060
  %v2062 = vpop.f32.mrb[0].mxu0
  %2063 = vmatprep.mubr.f32.mxu0 0.0
  %2064 = vmatmul.mubr.f32.gmra.mrb[0].mxu0 %v1946
  %v2065 = vpop.f32.mrb[0].mxu0
  %v2066 = vadd.f32 %v1873, %v2065
  %v2067 = vpop.f32.mrb[0].mxu0
  %2068 = vmatprep.mubr.f32.mxu0 0.0
  %2069 = vmatmul.mubr.f32.gmra.mrb[0].mxu0 %v1949
  %v2070 = vpop.f32.mrb[0].mxu0
  %v2071 = vadd.f32 %v1878, %v2070
  %v2072 = vpop.f32.mrb[0].mxu0
  %2073 = vmatprep.mubr.f32.mxu0 0.0
  %2074 = vmatmul.mubr.f32.gmra.mrb[0].mxu0 %v1952
  %v2075 = vpop.f32.mrb[0].mxu0
  %v2076 = vadd.f32 %v1883, %v2075
  %v2077 = vpop.f32.mrb[0].mxu0
  %2078 = vmatprep.mubr.f32.mxu0 0.0
  %2079 = vmatmul.mubr.f32.gmra.mrb[0].mxu0 %v1955
  %v2080 = vpop.f32.mrb[0].mxu0
  %v2081 = vadd.f32 %v1888, %v2080
  %v2082 = vpop.f32.mrb[0].mxu0
  %2083 = vmatprep.mubr.f32.mxu0 0.0
  %2084 = vmatmul.mubr.f32.gmra.mrb[0].mxu0 %v1958
  %v2085 = vpop.f32.mrb[0].mxu0
  %v2086 = vadd.f32 %v1893, %v2085
  %v2087 = vpop.f32.mrb[0].mxu0
  %2088 = vmatprep.mubr.f32.mxu0 0.0
  %2089 = vmatmul.mubr.f32.gmra.mrb[0].mxu0 %v1961
  %v2090 = vpop.f32.mrb[0].mxu0
  %v2091 = vadd.f32 %v1898, %v2090
  %v2092 = vpop.f32.mrb[0].mxu0
  %2093 = vmatprep.mubr.f32.mxu0 0.0
  %2094 = vmatmul.mubr.f32.gmra.mrb[0].mxu0 %v1964
  %v2095 = vpop.f32.mrb[0].mxu0
  %v2096 = vadd.f32 %v1903, %v2095
  %v2097 = vpop.f32.mrb[0].mxu0
  %2098 = vmatprep.mubr.f32.mxu0 0.0
  %2099 = vmatmul.mubr.f32.gmra.mrb[0].mxu0 %v1967
  %v2100 = vpop.f32.mrb[0].mxu0
  %v2101 = vadd.f32 %v1908, %v2100
  %v2102 = vpop.f32.mrb[0].mxu0
  %2103 = vmatprep.mubr.f32.mxu0 0.0
  %2104 = vmatmul.mubr.f32.gmra.mrb[0].mxu0 %v1970
  %v2105 = vpop.f32.mrb[0].mxu0
  %v2106 = vadd.f32 %v1913, %v2105
  %v2107 = vpop.f32.mrb[0].mxu0
  %2108 = vmatprep.mubr.f32.mxu0 0.0
  %2109 = vmatmul.mubr.f32.gmra.mrb[0].mxu0 %v1973
  %v2110 = vpop.f32.mrb[0].mxu0
  %v2111 = vadd.f32 %v1918, %v2110
  %v2112 = vpop.f32.mrb[0].mxu0
  %2113 = vmatprep.mubr.f32.mxu0 0.0
  %2114 = vmatmul.mubr.f32.gmra.mrb[0].mxu0 %v1976
  %v2115 = vpop.f32.mrb[0].mxu0
  %v2116 = vadd.f32 %v1923, %v2115
  %v2117 = vpop.f32.mrb[0].mxu0
  %2118 = vmatprep.mubr.f32.mxu0 0.0
  %2119 = vmatmul.mubr.f32.gmra.mrb[0].mxu0 %v1979
  %v2120 = vpop.f32.mrb[0].mxu0
  %v2121 = vadd.f32 %v1928, %v2120
  %v2122 = vpop.f32.mrb[0].mxu0
  %2123 = vmatprep.mubr.f32.mxu0 0.0
  %2124 = vmatmul.mubr.f32.gmra.mrb[0].mxu0 %v1982
  %v2125 = vpop.f32.mrb[0].mxu0
  %v2126 = vadd.f32 %v1933, %v2125
  %v2127 = vpop.f32.mrb[0].mxu0
  %2128 = vdwg.mxu0
  %vm2129 = vcmask 261120
  %v2131 = vsel %vm2129, %v1807, 0
  %v2134 = vsel %vm2129, %v1808, 0
  %v2137 = vsel %vm2129, %v1809, 0
  %v2140 = vsel %vm2129, %v1810, 0
  %v2143 = vsel %vm2129, %v1811, 0
  %v2146 = vsel %vm2129, %v1812, 0
  %v2149 = vsel %vm2129, %v1813, 0
  %v2152 = vsel %vm2129, %v1814, 0
  %v2155 = vsel %vm2129, %v1815, 0
  %v2158 = vsel %vm2129, %v1816, 0
  %v2161 = vsel %vm2129, %v1817, 0
  %v2164 = vsel %vm2129, %v1818, 0
  %v2167 = vsel %vm2129, %v1819, 0
  %v2170 = vsel %vm2129, %v1820, 0
  %v2173 = vsel %vm2129, %v1821, 0
  %v2176 = vsel %vm2129, %v1822, 0
  %2178 = vmatprep.subr.mxu0 0.0
  %2179 = vmatpush1.msra.mxu0 0.0
  %2180 = vmatprep.subr.mxu0 0.0
  %2181 = vmatpush1.msra.mxu0 0.0
  %2182 = vmatprep.subr.mxu0 0.0
  %2183 = vmatpush1.msra.mxu0 0.0
  %2184 = vmatprep.subr.mxu0 0.0
  %2185 = vmatpush1.msra.mxu0 0.0
  %2186 = vmatprep.subr.mxu0 0.0
  %2187 = vmatpush1.msra.mxu0 0.0
  %2188 = vmatprep.subr.mxu0 0.0
  %2189 = vmatpush1.msra.mxu0 0.0
  %2190 = vmatprep.subr.mxu0 0.0
  %2191 = vmatpush1.msra.mxu0 0.0
  %2192 = vmatprep.subr.mxu0 0.0
  %2193 = vmatpush1.msra.mxu0 0.0
  %2194 = vmatprep.subr.mxu0 0.0
  %2195 = vmatpush1.msra.mxu0 0.0
  %2196 = vmatprep.subr.mxu0 0.0
  %2197 = vmatpush1.msra.mxu0 0.0
  %2198 = vmatprep.subr.mxu0 0.0
  %2199 = vmatpush1.msra.mxu0 0.0
  %2200 = vmatprep.subr.mxu0 0.0
  %2201 = vmatpush1.msra.mxu0 0.0
  %2202 = vmatprep.subr.mxu0 0.0
  %2203 = vmatpush1.msra.mxu0 0.0
  %2204 = vmatprep.subr.mxu0 0.0
  %2205 = vmatpush1.msra.mxu0 0.0
  %2206 = vmatprep.subr.mxu0 0.0
  %2207 = vmatpush1.msra.mxu0 0.0
  %2208 = vmatprep.subr.mxu0 0.0
  %2209 = vmatpush1.msra.mxu0 0.0
  %2210 = vmatprep.subr.mxu0 0.0
  %2211 = vmatpush1.msra.mxu0 0.0
  %2212 = vmatprep.subr.mxu0 0.0
  %2213 = vmatpush1.msra.mxu0 0.0
  %2214 = vmatprep.subr.mxu0 0.0
  %2215 = vmatpush1.msra.mxu0 0.0
  %2216 = vmatprep.subr.mxu0 0.0
  %2217 = vmatpush1.msra.mxu0 0.0
  %2218 = vmatprep.subr.mxu0 0.0
  %2219 = vmatpush1.msra.mxu0 0.0
  %2220 = vmatprep.subr.mxu0 0.0
  %2221 = vmatpush1.msra.mxu0 0.0
  %2222 = vmatprep.subr.mxu0 0.0
  %2223 = vmatpush1.msra.mxu0 0.0
  %2224 = vmatprep.subr.mxu0 0.0
  %2225 = vmatpush1.msra.mxu0 0.0
  %2226 = vmatprep.subr.mxu0 0.0
  %2227 = vmatpush1.msra.mxu0 0.0
  %2228 = vmatprep.subr.mxu0 0.0
  %2229 = vmatpush1.msra.mxu0 0.0
  %2230 = vmatprep.subr.mxu0 0.0
  %2231 = vmatpush1.msra.mxu0 0.0
  %2232 = vmatprep.subr.mxu0 0.0
  %2233 = vmatpush1.msra.mxu0 0.0
  %2234 = vmatprep.subr.mxu0 0.0
  %2235 = vmatpush1.msra.mxu0 0.0
  %2236 = vmatprep.subr.mxu0 0.0
  %2237 = vmatpush1.msra.mxu0 0.0
  %2238 = vmatprep.subr.mxu0 0.0
  %2239 = vmatpush1.msra.mxu0 0.0
  %2240 = vmatprep.subr.mxu0 0.0
  %2241 = vmatpush1.msra.mxu0 0.0
  %2242 = vmatprep.mubr.f32.mxu0 0.0
  %2243 = vmatmul.mubr.f32.gmra.mrb[0].mxu0 %v2131
  %v2244 = vpop.f32.mrb[0].mxu0
  %v2245 = vadd.f32 0.0, %v2244
  %v2246 = vpop.f32.mrb[0].mxu0
  %2247 = vmatprep.mubr.f32.mxu0 0.0
  %2248 = vmatmul.mubr.f32.gmra.mrb[0].mxu0 %v2134
  %v2249 = vpop.f32.mrb[0].mxu0
  %v2250 = vadd.f32 0.0, %v2249
  %v2251 = vpop.f32.mrb[0].mxu0
  %2252 = vmatprep.mubr.f32.mxu0 0.0
  %2253 = vmatmul.mubr.f32.gmra.mrb[0].mxu0 %v2137
  %v2254 = vpop.f32.mrb[0].mxu0
  %v2255 = vadd.f32 0.0, %v2254
  %v2256 = vpop.f32.mrb[0].mxu0
  %2257 = vmatprep.mubr.f32.mxu0 0.0
  %2258 = vmatmul.mubr.f32.gmra.mrb[0].mxu0 %v2140
  %v2259 = vpop.f32.mrb[0].mxu0
  %v2260 = vadd.f32 0.0, %v2259
  %v2261 = vpop.f32.mrb[0].mxu0
  %2262 = vmatprep.mubr.f32.mxu0 0.0
  %2263 = vmatmul.mubr.f32.gmra.mrb[0].mxu0 %v2143
  %v2264 = vpop.f32.mrb[0].mxu0
  %v2265 = vadd.f32 0.0, %v2264
  %v2266 = vpop.f32.mrb[0].mxu0
  %2267 = vmatprep.mubr.f32.mxu0 0.0
  %2268 = vmatmul.mubr.f32.gmra.mrb[0].mxu0 %v2146
  %v2269 = vpop.f32.mrb[0].mxu0
  %v2270 = vadd.f32 0.0, %v2269
  %v2271 = vpop.f32.mrb[0].mxu0
  %2272 = vmatprep.mubr.f32.mxu0 0.0
  %2273 = vmatmul.mubr.f32.gmra.mrb[0].mxu0 %v2149
  %v2274 = vpop.f32.mrb[0].mxu0
  %v2275 = vadd.f32 0.0, %v2274
  %v2276 = vpop.f32.mrb[0].mxu0
  %2277 = vmatprep.mubr.f32.mxu0 0.0
  %2278 = vmatmul.mubr.f32.gmra.mrb[0].mxu0 %v2152
  %v2279 = vpop.f32.mrb[0].mxu0
  %v2280 = vadd.f32 0.0, %v2279
  %v2281 = vpop.f32.mrb[0].mxu0
  %2282 = vmatprep.mubr.f32.mxu0 0.0
  %2283 = vmatmul.mubr.f32.gmra.mrb[0].mxu0 %v2155
  %v2284 = vpop.f32.mrb[0].mxu0
  %v2285 = vadd.f32 0.0, %v2284
  %v2286 = vpop.f32.mrb[0].mxu0
  %2287 = vmatprep.mubr.f32.mxu0 0.0
  %2288 = vmatmul.mubr.f32.gmra.mrb[0].mxu0 %v2158
  %v2289 = vpop.f32.mrb[0].mxu0
  %v2290 = vadd.f32 0.0, %v2289
  %v2291 = vpop.f32.mrb[0].mxu0
  %2292 = vmatprep.mubr.f32.mxu0 0.0
  %2293 = vmatmul.mubr.f32.gmra.mrb[0].mxu0 %v2161
  %v2294 = vpop.f32.mrb[0].mxu0
  %v2295 = vadd.f32 0.0, %v2294
  %v2296 = vpop.f32.mrb[0].mxu0
  %2297 = vmatprep.mubr.f32.mxu0 0.0
  %2298 = vmatmul.mubr.f32.gmra.mrb[0].mxu0 %v2164
  %v2299 = vpop.f32.mrb[0].mxu0
  %v2300 = vadd.f32 0.0, %v2299
  %v2301 = vpop.f32.mrb[0].mxu0
  %2302 = vmatprep.mubr.f32.mxu0 0.0
  %2303 = vmatmul.mubr.f32.gmra.mrb[0].mxu0 %v2167
  %v2304 = vpop.f32.mrb[0].mxu0
  %v2305 = vadd.f32 0.0, %v2304
  %v2306 = vpop.f32.mrb[0].mxu0
  %2307 = vmatprep.mubr.f32.mxu0 0.0
  %2308 = vmatmul.mubr.f32.gmra.mrb[0].mxu0 %v2170
  %v2309 = vpop.f32.mrb[0].mxu0
  %v2310 = vadd.f32 0.0, %v2309
  %v2311 = vpop.f32.mrb[0].mxu0
  %2312 = vmatprep.mubr.f32.mxu0 0.0
  %2313 = vmatmul.mubr.f32.gmra.mrb[0].mxu0 %v2173
  %v2314 = vpop.f32.mrb[0].mxu0
  %v2315 = vadd.f32 0.0, %v2314
  %v2316 = vpop.f32.mrb[0].mxu0
  %2317 = vmatprep.mubr.f32.mxu0 0.0
  %2318 = vmatmul.mubr.f32.gmra.mrb[0].mxu0 %v2176
  %v2319 = vpop.f32.mrb[0].mxu0
  %v2320 = vadd.f32 0.0, %v2319
  %v2321 = vpop.f32.mrb[0].mxu0
  %2322 = vdwg.mxu0
  %v2323 = vadd.f32 %v2051, %v2245
  %v2324 = vadd.f32 %v2056, %v2250
  %v2325 = vadd.f32 %v2061, %v2255
  %v2326 = vadd.f32 %v2066, %v2260
  %v2327 = vadd.f32 %v2071, %v2265
  %v2328 = vadd.f32 %v2076, %v2270
  %v2329 = vadd.f32 %v2081, %v2275
  %v2330 = vadd.f32 %v2086, %v2280
  %v2331 = vadd.f32 %v2091, %v2285
  %v2332 = vadd.f32 %v2096, %v2290
  %v2333 = vadd.f32 %v2101, %v2295
  %v2334 = vadd.f32 %v2106, %v2300
  %v2335 = vadd.f32 %v2111, %v2305
  %v2336 = vadd.f32 %v2116, %v2310
  %v2337 = vadd.f32 %v2121, %v2315
  %v2338 = vadd.f32 %v2126, %v2320
  %v2339 = vxor.u32 %v2323, 2147483648
  %v2340 = vxor.u32 %v2324, 2147483648
  %v2341 = vxor.u32 %v2325, 2147483648
  %v2342 = vxor.u32 %v2326, 2147483648
  %v2343 = vmul.f32 %v2339, 1.442695
  %v2344 = vpow.pop %v2343
  %v2345 = vmul.f32 %v2340, 1.442695
  %v2346 = vpow.pop %v2345
  %v2347 = vmul.f32 %v2341, 1.442695
  %v2348 = vpow.pop %v2347
  %v2349 = vmul.f32 %v2342, 1.442695
  %v2350 = vpow.pop %v2349
  %v2351 = vadd.f32 %v2344, 1.0
  %v2352 = vadd.f32 %v2346, 1.0
  %v2353 = vadd.f32 %v2348, 1.0
  %v2354 = vadd.f32 %v2350, 1.0
  %v2355 = vrcp.pop %v2351
  %v2356 = vmul.f32 1.0, %v2355
  %v2357 = vrcp.pop %v2352
  %v2358 = vmul.f32 1.0, %v2357
  %v2359 = vrcp.pop %v2353
  %v2360 = vmul.f32 1.0, %v2359
  %v2361 = vrcp.pop %v2354
  %v2362 = vmul.f32 1.0, %v2361
  %v2363 = vxor.u32 %v2327, 2147483648
  %v2364 = vxor.u32 %v2328, 2147483648
  %v2365 = vxor.u32 %v2329, 2147483648
  %v2366 = vxor.u32 %v2330, 2147483648
  %v2367 = vmul.f32 %v2363, 1.442695
  %v2368 = vpow.pop %v2367
  %v2369 = vmul.f32 %v2364, 1.442695
  %v2370 = vpow.pop %v2369
  %v2371 = vmul.f32 %v2365, 1.442695
  %v2372 = vpow.pop %v2371
  %v2373 = vmul.f32 %v2366, 1.442695
  %v2374 = vpow.pop %v2373
  %v2375 = vadd.f32 %v2368, 1.0
  %v2376 = vadd.f32 %v2370, 1.0
  %v2377 = vadd.f32 %v2372, 1.0
  %v2378 = vadd.f32 %v2374, 1.0
  %v2379 = vrcp.pop %v2375
  %v2380 = vmul.f32 1.0, %v2379
  %v2381 = vrcp.pop %v2376
  %v2382 = vmul.f32 1.0, %v2381
  %v2383 = vrcp.pop %v2377
  %v2384 = vmul.f32 1.0, %v2383
  %v2385 = vrcp.pop %v2378
  %v2386 = vmul.f32 1.0, %v2385
  %v2387 = vtanh.pop %v2331
  %v2388 = vtanh.pop %v2332
  %v2389 = vtanh.pop %v2333
  %v2390 = vtanh.pop %v2334
  %v2391 = vxor.u32 %v2335, 2147483648
  %v2392 = vxor.u32 %v2336, 2147483648
  %v2393 = vxor.u32 %v2337, 2147483648
  %v2394 = vxor.u32 %v2338, 2147483648
  %v2395 = vmul.f32 %v2391, 1.442695
  %v2396 = vpow.pop %v2395
  %v2397 = vmul.f32 %v2392, 1.442695
  %v2398 = vpow.pop %v2397
  %v2399 = vmul.f32 %v2393, 1.442695
  %v2400 = vpow.pop %v2399
  %v2401 = vmul.f32 %v2394, 1.442695
  %v2402 = vpow.pop %v2401
  %v2403 = vadd.f32 %v2396, 1.0
  %v2404 = vadd.f32 %v2398, 1.0
  %v2405 = vadd.f32 %v2400, 1.0
  %v2406 = vadd.f32 %v2402, 1.0
  %v2407 = vrcp.pop %v2403
  %v2408 = vmul.f32 1.0, %v2407
  %v2409 = vrcp.pop %v2404
  %v2410 = vmul.f32 1.0, %v2409
  %v2411 = vrcp.pop %v2405
  %v2412 = vmul.f32 1.0, %v2411
  %v2413 = vrcp.pop %v2406
  %v2414 = vmul.f32 1.0, %v2413
  %v2415 = vmul.f32 %v2380, 0.0
  %v2416 = vmul.f32 %v2382, 0.0
  %v2417 = vmul.f32 %v2384, 0.0
  %v2418 = vmul.f32 %v2386, 0.0
  %v2419 = vmul.f32 %v2356, %v2387
  %v2420 = vmul.f32 %v2358, %v2388
  %v2421 = vmul.f32 %v2360, %v2389
  %v2422 = vmul.f32 %v2362, %v2390
  %v2423 = vadd.f32 %v2415, %v2419
  %v2424 = vadd.f32 %v2416, %v2420
  %v2425 = vadd.f32 %v2417, %v2421
  %v2426 = vadd.f32 %v2418, %v2422
  %v2427 = vtanh.pop %v2423
  %v2428 = vtanh.pop %v2424
  %v2429 = vtanh.pop %v2425
  %v2430 = vtanh.pop %v2426
  %v2431 = vmul.f32 %v2408, %v2427
  %v2432 = vmul.f32 %v2410, %v2428
  %v2433 = vmul.f32 %v2412, %v2429
  %v2434 = vmul.f32 %v2414, %v2430
  %2435 = vmatprep.subr.mxu0 0.0
  %2436 = vmatpush1.msra.mxu0 %v2431
  %2437 = vmatprep.subr.mxu0 0.0
  %2438 = vmatpush1.msra.mxu0 %v2432
  %2439 = vmatprep.subr.mxu0 0.0
  %2440 = vmatpush1.msra.mxu0 %v2433
  %2441 = vmatprep.subr.mxu0 0.0
  %2442 = vmatpush1.msra.mxu0 %v2434
  %2443 = vmatprep.subr.mxu0 0.0
  %2444 = vmatpush1.msra.mxu0 0.0
  %2445 = vmatprep.subr.mxu0 0.0
  %2446 = vmatpush1.msra.mxu0 0.0
  %2447 = vmatprep.subr.mxu0 0.0
  %2448 = vmatpush1.msra.mxu0 0.0
  %2449 = vmatprep.subr.mxu0 0.0
  %2450 = vmatpush1.msra.mxu0 0.0
  %2451 = vmatprep.subr.mxu0 0.0
  %2452 = vmatpush1.msra.mxu0 0.0
  %2453 = vmatprep.subr.mxu0 0.0
  %2454 = vmatpush1.msra.mxu0 0.0
  %2455 = vmatprep.subr.mxu0 0.0
  %2456 = vmatpush1.msra.mxu0 0.0
  %2457 = vmatprep.subr.mxu0 0.0
  %2458 = vmatpush1.msra.mxu0 0.0
  %2459 = vmatprep.subr.mxu0 0.0
  %2460 = vmatpush1.msra.mxu0 0.0
  %2461 = vmatprep.subr.mxu0 0.0
  %2462 = vmatpush1.msra.mxu0 0.0
  %2463 = vmatprep.subr.mxu0 0.0
  %2464 = vmatpush1.msra.mxu0 0.0
  %2465 = vmatprep.subr.mxu0 0.0
  %2466 = vmatpush1.msra.mxu0 0.0
  %2467 = vmatprep.subr.mxu0 0.0
  %2468 = vmatpush1.msra.mxu0 0.0
  %2469 = vmatprep.subr.mxu0 0.0
  %2470 = vmatpush1.msra.mxu0 0.0
  %2471 = vmatprep.subr.mxu0 0.0
  %2472 = vmatpush1.msra.mxu0 0.0
  %2473 = vmatprep.subr.mxu0 0.0
  %2474 = vmatpush1.msra.mxu0 0.0
  %2475 = vmatprep.subr.mxu0 0.0
  %2476 = vmatpush1.msra.mxu0 0.0
  %2477 = vmatprep.subr.mxu0 0.0
  %2478 = vmatpush1.msra.mxu0 0.0
  %2479 = vmatprep.subr.mxu0 0.0
  %2480 = vmatpush1.msra.mxu0 0.0
  %2481 = vmatprep.subr.mxu0 0.0
  %2482 = vmatpush1.msra.mxu0 0.0
  %2483 = vmatprep.subr.mxu0 0.0
  %2484 = vmatpush1.msra.mxu0 0.0
  %2485 = vmatprep.subr.mxu0 0.0
  %2486 = vmatpush1.msra.mxu0 0.0
  %2487 = vmatprep.subr.mxu0 0.0
  %2488 = vmatpush1.msra.mxu0 0.0
  %2489 = vmatprep.subr.mxu0 0.0
  %2490 = vmatpush1.msra.mxu0 0.0
  %2491 = vmatprep.subr.mxu0 0.0
  %2492 = vmatpush1.msra.mxu0 0.0
  %2493 = vmatprep.subr.mxu0 0.0
  %2494 = vmatpush1.msra.mxu0 0.0
  %2495 = vmatprep.subr.mxu0 0.0
  %2496 = vmatpush1.msra.mxu0 0.0
  %2497 = vmatprep.subr.mxu0 0.0
  %2498 = vmatpush1.msra.mxu0 0.0
  %2499 = vmatprep.mubr.f32.mxu0 0.0
  %2500 = vmatmul.mubr.f32.gmra.mrb[0].mxu0 %v2131
  %v2501 = vpop.f32.mrb[0].mxu0
  %v2502 = vadd.f32 0.0, %v2501
  %v2503 = vpop.f32.mrb[0].mxu0
  %2504 = vmatprep.mubr.f32.mxu0 0.0
  %2505 = vmatmul.mubr.f32.gmra.mrb[0].mxu0 %v2134
  %v2506 = vpop.f32.mrb[0].mxu0
  %v2507 = vadd.f32 0.0, %v2506
  %v2508 = vpop.f32.mrb[0].mxu0
  %2509 = vmatprep.mubr.f32.mxu0 0.0
  %2510 = vmatmul.mubr.f32.gmra.mrb[0].mxu0 %v2137
  %v2511 = vpop.f32.mrb[0].mxu0
  %v2512 = vadd.f32 0.0, %v2511
  %v2513 = vpop.f32.mrb[0].mxu0
  %2514 = vmatprep.mubr.f32.mxu0 0.0
  %2515 = vmatmul.mubr.f32.gmra.mrb[0].mxu0 %v2140
  %v2516 = vpop.f32.mrb[0].mxu0
  %v2517 = vadd.f32 0.0, %v2516
  %v2518 = vpop.f32.mrb[0].mxu0
  %2519 = vmatprep.mubr.f32.mxu0 0.0
  %2520 = vmatmul.mubr.f32.gmra.mrb[0].mxu0 %v2143
  %v2521 = vpop.f32.mrb[0].mxu0
  %v2522 = vadd.f32 0.0, %v2521
  %v2523 = vpop.f32.mrb[0].mxu0
  %2524 = vmatprep.mubr.f32.mxu0 0.0
  %2525 = vmatmul.mubr.f32.gmra.mrb[0].mxu0 %v2146
  %v2526 = vpop.f32.mrb[0].mxu0
  %v2527 = vadd.f32 0.0, %v2526
  %v2528 = vpop.f32.mrb[0].mxu0
  %2529 = vmatprep.mubr.f32.mxu0 0.0
  %2530 = vmatmul.mubr.f32.gmra.mrb[0].mxu0 %v2149
  %v2531 = vpop.f32.mrb[0].mxu0
  %v2532 = vadd.f32 0.0, %v2531
  %v2533 = vpop.f32.mrb[0].mxu0
  %2534 = vmatprep.mubr.f32.mxu0 0.0
  %2535 = vmatmul.mubr.f32.gmra.mrb[0].mxu0 %v2152
  %v2536 = vpop.f32.mrb[0].mxu0
  %v2537 = vadd.f32 0.0, %v2536
  %v2538 = vpop.f32.mrb[0].mxu0
  %2539 = vmatprep.mubr.f32.mxu0 0.0
  %2540 = vmatmul.mubr.f32.gmra.mrb[0].mxu0 %v2155
  %v2541 = vpop.f32.mrb[0].mxu0
  %v2542 = vadd.f32 0.0, %v2541
  %v2543 = vpop.f32.mrb[0].mxu0
  %2544 = vmatprep.mubr.f32.mxu0 0.0
  %2545 = vmatmul.mubr.f32.gmra.mrb[0].mxu0 %v2158
  %v2546 = vpop.f32.mrb[0].mxu0
  %v2547 = vadd.f32 0.0, %v2546
  %v2548 = vpop.f32.mrb[0].mxu0
  %2549 = vmatprep.mubr.f32.mxu0 0.0
  %2550 = vmatmul.mubr.f32.gmra.mrb[0].mxu0 %v2161
  %v2551 = vpop.f32.mrb[0].mxu0
  %v2552 = vadd.f32 0.0, %v2551
  %v2553 = vpop.f32.mrb[0].mxu0
  %2554 = vmatprep.mubr.f32.mxu0 0.0
  %2555 = vmatmul.mubr.f32.gmra.mrb[0].mxu0 %v2164
  %v2556 = vpop.f32.mrb[0].mxu0
  %v2557 = vadd.f32 0.0, %v2556
  %v2558 = vpop.f32.mrb[0].mxu0
  %2559 = vmatprep.mubr.f32.mxu0 0.0
  %2560 = vmatmul.mubr.f32.gmra.mrb[0].mxu0 %v2167
  %v2561 = vpop.f32.mrb[0].mxu0
  %v2562 = vadd.f32 0.0, %v2561
  %v2563 = vpop.f32.mrb[0].mxu0
  %2564 = vmatprep.mubr.f32.mxu0 0.0
  %2565 = vmatmul.mubr.f32.gmra.mrb[0].mxu0 %v2170
  %v2566 = vpop.f32.mrb[0].mxu0
  %v2567 = vadd.f32 0.0, %v2566
  %v2568 = vpop.f32.mrb[0].mxu0
  %2569 = vmatprep.mubr.f32.mxu0 0.0
  %2570 = vmatmul.mubr.f32.gmra.mrb[0].mxu0 %v2173
  %v2571 = vpop.f32.mrb[0].mxu0
  %v2572 = vadd.f32 0.0, %v2571
  %v2573 = vpop.f32.mrb[0].mxu0
  %2574 = vmatprep.mubr.f32.mxu0 0.0
  %2575 = vmatmul.mubr.f32.gmra.mrb[0].mxu0 %v2176
  %v2576 = vpop.f32.mrb[0].mxu0
  %v2577 = vadd.f32 0.0, %v2576
  %v2578 = vpop.f32.mrb[0].mxu0
  %2579 = vdwg.mxu0
  %2596 = vrot.lane.b32.xlu0 %v2502, 2
  %v2597 = vpop.permute.xlu0 %2596
  %2598 = vrot.lane.b32.xlu0 %v2507, 2
  %v2599 = vpop.permute.xlu0 %2598
  %2600 = vrot.lane.b32.xlu0 %v2512, 2
  %v2601 = vpop.permute.xlu0 %2600
  %2602 = vrot.lane.b32.xlu0 %v2517, 2
  %v2603 = vpop.permute.xlu0 %2602
  %2604 = vrot.lane.b32.xlu0 %v2522, 2
  %v2605 = vpop.permute.xlu0 %2604
  %2606 = vrot.lane.b32.xlu0 %v2527, 2
  %v2607 = vpop.permute.xlu0 %2606
  %2608 = vrot.lane.b32.xlu0 %v2532, 2
  %v2609 = vpop.permute.xlu0 %2608
  %2610 = vrot.lane.b32.xlu0 %v2537, 2
  %v2611 = vpop.permute.xlu0 %2610
  %2612 = vrot.lane.b32.xlu0 %v2542, 2
  %v2613 = vpop.permute.xlu0 %2612
  %2614 = vrot.lane.b32.xlu0 %v2547, 2
  %v2615 = vpop.permute.xlu0 %2614
  %2616 = vrot.lane.b32.xlu0 %v2552, 2
  %v2617 = vpop.permute.xlu0 %2616
  %2618 = vrot.lane.b32.xlu0 %v2557, 2
  %v2619 = vpop.permute.xlu0 %2618
  %2620 = vrot.lane.b32.xlu0 %v2562, 2
  %v2621 = vpop.permute.xlu0 %2620
  %2622 = vrot.lane.b32.xlu0 %v2567, 2
  %v2623 = vpop.permute.xlu0 %2622
  %2624 = vrot.lane.b32.xlu0 %v2572, 2
  %v2625 = vpop.permute.xlu0 %2624
  %2626 = vrot.lane.b32.xlu0 %v2577, 2
  %v2627 = vpop.permute.xlu0 %2626
  %v2644 = vadd.f32 %v2051, %v2597
  %v2645 = vadd.f32 %v2056, %v2599
  %v2646 = vadd.f32 %v2061, %v2601
  %v2647 = vadd.f32 %v2066, %v2603
  %v2648 = vadd.f32 %v2071, %v2605
  %v2649 = vadd.f32 %v2076, %v2607
  %v2650 = vadd.f32 %v2081, %v2609
  %v2651 = vadd.f32 %v2086, %v2611
  %v2652 = vadd.f32 %v2091, %v2613
  %v2653 = vadd.f32 %v2096, %v2615
  %v2654 = vadd.f32 %v2101, %v2617
  %v2655 = vadd.f32 %v2106, %v2619
  %v2656 = vadd.f32 %v2111, %v2621
  %v2657 = vadd.f32 %v2116, %v2623
  %v2658 = vadd.f32 %v2121, %v2625
  %v2659 = vadd.f32 %v2126, %v2627
  %v2660 = vxor.u32 %v2644, 2147483648
  %v2661 = vxor.u32 %v2645, 2147483648
  %v2662 = vxor.u32 %v2646, 2147483648
  %v2663 = vxor.u32 %v2647, 2147483648
  %v2664 = vmul.f32 %v2660, 1.442695
  %v2665 = vpow.pop %v2664
  %v2666 = vmul.f32 %v2661, 1.442695
  %v2667 = vpow.pop %v2666
  %v2668 = vmul.f32 %v2662, 1.442695
  %v2669 = vpow.pop %v2668
  %v2670 = vmul.f32 %v2663, 1.442695
  %v2671 = vpow.pop %v2670
  %v2672 = vadd.f32 %v2665, 1.0
  %v2673 = vadd.f32 %v2667, 1.0
  %v2674 = vadd.f32 %v2669, 1.0
  %v2675 = vadd.f32 %v2671, 1.0
  %v2676 = vrcp.pop %v2672
  %v2677 = vmul.f32 1.0, %v2676
  %v2678 = vrcp.pop %v2673
  %v2679 = vmul.f32 1.0, %v2678
  %v2680 = vrcp.pop %v2674
  %v2681 = vmul.f32 1.0, %v2680
  %v2682 = vrcp.pop %v2675
  %v2683 = vmul.f32 1.0, %v2682
  %v2684 = vxor.u32 %v2648, 2147483648
  %v2685 = vxor.u32 %v2649, 2147483648
  %v2686 = vxor.u32 %v2650, 2147483648
  %v2687 = vxor.u32 %v2651, 2147483648
  %v2688 = vmul.f32 %v2684, 1.442695
  %v2689 = vpow.pop %v2688
  %v2690 = vmul.f32 %v2685, 1.442695
  %v2691 = vpow.pop %v2690
  %v2692 = vmul.f32 %v2686, 1.442695
  %v2693 = vpow.pop %v2692
  %v2694 = vmul.f32 %v2687, 1.442695
  %v2695 = vpow.pop %v2694
  %v2696 = vadd.f32 %v2689, 1.0
  %v2697 = vadd.f32 %v2691, 1.0
  %v2698 = vadd.f32 %v2693, 1.0
  %v2699 = vadd.f32 %v2695, 1.0
  %v2700 = vrcp.pop %v2696
  %v2701 = vmul.f32 1.0, %v2700
  %v2702 = vrcp.pop %v2697
  %v2703 = vmul.f32 1.0, %v2702
  %v2704 = vrcp.pop %v2698
  %v2705 = vmul.f32 1.0, %v2704
  %v2706 = vrcp.pop %v2699
  %v2707 = vmul.f32 1.0, %v2706
  %v2708 = vtanh.pop %v2652
  %v2709 = vtanh.pop %v2653
  %v2710 = vtanh.pop %v2654
  %v2711 = vtanh.pop %v2655
  %v2712 = vxor.u32 %v2656, 2147483648
  %v2713 = vxor.u32 %v2657, 2147483648
  %v2714 = vxor.u32 %v2658, 2147483648
  %v2715 = vxor.u32 %v2659, 2147483648
  %v2716 = vmul.f32 %v2712, 1.442695
  %v2717 = vpow.pop %v2716
  %v2718 = vmul.f32 %v2713, 1.442695
  %v2719 = vpow.pop %v2718
  %v2720 = vmul.f32 %v2714, 1.442695
  %v2721 = vpow.pop %v2720
  %v2722 = vmul.f32 %v2715, 1.442695
  %v2723 = vpow.pop %v2722
  %v2724 = vadd.f32 %v2717, 1.0
  %v2725 = vadd.f32 %v2719, 1.0
  %v2726 = vadd.f32 %v2721, 1.0
  %v2727 = vadd.f32 %v2723, 1.0
  %v2728 = vrcp.pop %v2724
  %v2729 = vmul.f32 1.0, %v2728
  %v2730 = vrcp.pop %v2725
  %v2731 = vmul.f32 1.0, %v2730
  %v2732 = vrcp.pop %v2726
  %v2733 = vmul.f32 1.0, %v2732
  %v2734 = vrcp.pop %v2727
  %v2735 = vmul.f32 1.0, %v2734
  %2740 = vrot.lane.b32.xlu0 %v2423, 2
  %v2741 = vpop.permute.xlu0 %2740
  %2742 = vrot.lane.b32.xlu0 %v2424, 2
  %v2743 = vpop.permute.xlu0 %2742
  %2744 = vrot.lane.b32.xlu0 %v2425, 2
  %v2745 = vpop.permute.xlu0 %2744
  %2746 = vrot.lane.b32.xlu0 %v2426, 2
  %v2747 = vpop.permute.xlu0 %2746
  %v2752 = vmul.f32 %v2701, %v2741
  %v2753 = vmul.f32 %v2703, %v2743
  %v2754 = vmul.f32 %v2705, %v2745
  %v2755 = vmul.f32 %v2707, %v2747
  %v2756 = vmul.f32 %v2677, %v2708
  %v2757 = vmul.f32 %v2679, %v2709
  %v2758 = vmul.f32 %v2681, %v2710
  %v2759 = vmul.f32 %v2683, %v2711
  %v2760 = vadd.f32 %v2752, %v2756
  %v2761 = vadd.f32 %v2753, %v2757
  %v2762 = vadd.f32 %v2754, %v2758
  %v2763 = vadd.f32 %v2755, %v2759
  %v2764 = vtanh.pop %v2760
  %v2765 = vtanh.pop %v2761
  %v2766 = vtanh.pop %v2762
  %v2767 = vtanh.pop %v2763
  %v2768 = vmul.f32 %v2729, %v2764
  %v2769 = vmul.f32 %v2731, %v2765
  %v2770 = vmul.f32 %v2733, %v2766
  %v2771 = vmul.f32 %v2735, %v2767
  %2776 = vrot.lane.b32.xlu0 %v2768, 126
  %v2777 = vpop.permute.xlu0 %2776
  %2778 = vrot.lane.b32.xlu0 %v2769, 126
  %v2779 = vpop.permute.xlu0 %2778
  %2780 = vrot.lane.b32.xlu0 %v2770, 126
  %v2781 = vpop.permute.xlu0 %2780
  %2782 = vrot.lane.b32.xlu0 %v2771, 126
  %v2783 = vpop.permute.xlu0 %2782
  %2788 = vmatprep.subr.mxu0 0.0
  %2789 = vmatpush1.msra.mxu0 %v2777
  %2790 = vmatprep.subr.mxu0 0.0
  %2791 = vmatpush1.msra.mxu0 %v2779
  %2792 = vmatprep.subr.mxu0 0.0
  %2793 = vmatpush1.msra.mxu0 %v2781
  %2794 = vmatprep.subr.mxu0 0.0
  %2795 = vmatpush1.msra.mxu0 %v2783
  %2796 = vmatprep.subr.mxu0 0.0
  %2797 = vmatpush1.msra.mxu0 0.0
  %2798 = vmatprep.subr.mxu0 0.0
  %2799 = vmatpush1.msra.mxu0 0.0
  %2800 = vmatprep.subr.mxu0 0.0
  %2801 = vmatpush1.msra.mxu0 0.0
  %2802 = vmatprep.subr.mxu0 0.0
  %2803 = vmatpush1.msra.mxu0 0.0
  %2804 = vmatprep.subr.mxu0 0.0
  %2805 = vmatpush1.msra.mxu0 0.0
  %2806 = vmatprep.subr.mxu0 0.0
  %2807 = vmatpush1.msra.mxu0 0.0
  %2808 = vmatprep.subr.mxu0 0.0
  %2809 = vmatpush1.msra.mxu0 0.0
  %2810 = vmatprep.subr.mxu0 0.0
  %2811 = vmatpush1.msra.mxu0 0.0
  %2812 = vmatprep.subr.mxu0 0.0
  %2813 = vmatpush1.msra.mxu0 0.0
  %2814 = vmatprep.subr.mxu0 0.0
  %2815 = vmatpush1.msra.mxu0 0.0
  %2816 = vmatprep.subr.mxu0 0.0
  %2817 = vmatpush1.msra.mxu0 0.0
  %2818 = vmatprep.subr.mxu0 0.0
  %2819 = vmatpush1.msra.mxu0 0.0
  %2820 = vmatprep.subr.mxu0 0.0
  %2821 = vmatpush1.msra.mxu0 0.0
  %2822 = vmatprep.subr.mxu0 0.0
  %2823 = vmatpush1.msra.mxu0 0.0
  %2824 = vmatprep.subr.mxu0 0.0
  %2825 = vmatpush1.msra.mxu0 0.0
  %2826 = vmatprep.subr.mxu0 0.0
  %2827 = vmatpush1.msra.mxu0 0.0
  %2828 = vmatprep.subr.mxu0 0.0
  %2829 = vmatpush1.msra.mxu0 0.0
  %2830 = vmatprep.subr.mxu0 0.0
  %2831 = vmatpush1.msra.mxu0 0.0
  %2832 = vmatprep.subr.mxu0 0.0
  %2833 = vmatpush1.msra.mxu0 0.0
  %2834 = vmatprep.subr.mxu0 0.0
  %2835 = vmatpush1.msra.mxu0 0.0
  %2836 = vmatprep.subr.mxu0 0.0
  %2837 = vmatpush1.msra.mxu0 0.0
  %2838 = vmatprep.subr.mxu0 0.0
  %2839 = vmatpush1.msra.mxu0 0.0
  %2840 = vmatprep.subr.mxu0 0.0
  %2841 = vmatpush1.msra.mxu0 0.0
  %2842 = vmatprep.subr.mxu0 0.0
  %2843 = vmatpush1.msra.mxu0 0.0
  %2844 = vmatprep.subr.mxu0 0.0
  %2845 = vmatpush1.msra.mxu0 0.0
  %2846 = vmatprep.subr.mxu0 0.0
  %2847 = vmatpush1.msra.mxu0 0.0
  %2848 = vmatprep.subr.mxu0 0.0
  %2849 = vmatpush1.msra.mxu0 0.0
  %2850 = vmatprep.subr.mxu0 0.0
  %2851 = vmatpush1.msra.mxu0 0.0
  %2852 = vmatprep.mubr.f32.mxu0 0.0
  %2853 = vmatmul.mubr.f32.gmra.mrb[0].mxu0 %v2131
  %v2854 = vpop.f32.mrb[0].mxu0
  %v2855 = vadd.f32 0.0, %v2854
  %v2856 = vpop.f32.mrb[0].mxu0
  %2857 = vmatprep.mubr.f32.mxu0 0.0
  %2858 = vmatmul.mubr.f32.gmra.mrb[0].mxu0 %v2134
  %v2859 = vpop.f32.mrb[0].mxu0
  %v2860 = vadd.f32 0.0, %v2859
  %v2861 = vpop.f32.mrb[0].mxu0
  %2862 = vmatprep.mubr.f32.mxu0 0.0
  %2863 = vmatmul.mubr.f32.gmra.mrb[0].mxu0 %v2137
  %v2864 = vpop.f32.mrb[0].mxu0
  %v2865 = vadd.f32 0.0, %v2864
  %v2866 = vpop.f32.mrb[0].mxu0
  %2867 = vmatprep.mubr.f32.mxu0 0.0
  %2868 = vmatmul.mubr.f32.gmra.mrb[0].mxu0 %v2140
  %v2869 = vpop.f32.mrb[0].mxu0
  %v2870 = vadd.f32 0.0, %v2869
  %v2871 = vpop.f32.mrb[0].mxu0
  %2872 = vmatprep.mubr.f32.mxu0 0.0
  %2873 = vmatmul.mubr.f32.gmra.mrb[0].mxu0 %v2143
  %v2874 = vpop.f32.mrb[0].mxu0
  %v2875 = vadd.f32 0.0, %v2874
  %v2876 = vpop.f32.mrb[0].mxu0
  %2877 = vmatprep.mubr.f32.mxu0 0.0
  %2878 = vmatmul.mubr.f32.gmra.mrb[0].mxu0 %v2146
  %v2879 = vpop.f32.mrb[0].mxu0
  %v2880 = vadd.f32 0.0, %v2879
  %v2881 = vpop.f32.mrb[0].mxu0
  %2882 = vmatprep.mubr.f32.mxu0 0.0
  %2883 = vmatmul.mubr.f32.gmra.mrb[0].mxu0 %v2149
  %v2884 = vpop.f32.mrb[0].mxu0
  %v2885 = vadd.f32 0.0, %v2884
  %v2886 = vpop.f32.mrb[0].mxu0
  %2887 = vmatprep.mubr.f32.mxu0 0.0
  %2888 = vmatmul.mubr.f32.gmra.mrb[0].mxu0 %v2152
  %v2889 = vpop.f32.mrb[0].mxu0
  %v2890 = vadd.f32 0.0, %v2889
  %v2891 = vpop.f32.mrb[0].mxu0
  %2892 = vmatprep.mubr.f32.mxu0 0.0
  %2893 = vmatmul.mubr.f32.gmra.mrb[0].mxu0 %v2155
  %v2894 = vpop.f32.mrb[0].mxu0
  %v2895 = vadd.f32 0.0, %v2894
  %v2896 = vpop.f32.mrb[0].mxu0
  %2897 = vmatprep.mubr.f32.mxu0 0.0
  %2898 = vmatmul.mubr.f32.gmra.mrb[0].mxu0 %v2158
  %v2899 = vpop.f32.mrb[0].mxu0
  %v2900 = vadd.f32 0.0, %v2899
  %v2901 = vpop.f32.mrb[0].mxu0
  %2902 = vmatprep.mubr.f32.mxu0 0.0
  %2903 = vmatmul.mubr.f32.gmra.mrb[0].mxu0 %v2161
  %v2904 = vpop.f32.mrb[0].mxu0
  %v2905 = vadd.f32 0.0, %v2904
  %v2906 = vpop.f32.mrb[0].mxu0
  %2907 = vmatprep.mubr.f32.mxu0 0.0
  %2908 = vmatmul.mubr.f32.gmra.mrb[0].mxu0 %v2164
  %v2909 = vpop.f32.mrb[0].mxu0
  %v2910 = vadd.f32 0.0, %v2909
  %v2911 = vpop.f32.mrb[0].mxu0
  %2912 = vmatprep.mubr.f32.mxu0 0.0
  %2913 = vmatmul.mubr.f32.gmra.mrb[0].mxu0 %v2167
  %v2914 = vpop.f32.mrb[0].mxu0
  %v2915 = vadd.f32 0.0, %v2914
  %v2916 = vpop.f32.mrb[0].mxu0
  %2917 = vmatprep.mubr.f32.mxu0 0.0
  %2918 = vmatmul.mubr.f32.gmra.mrb[0].mxu0 %v2170
  %v2919 = vpop.f32.mrb[0].mxu0
  %v2920 = vadd.f32 0.0, %v2919
  %v2921 = vpop.f32.mrb[0].mxu0
  %2922 = vmatprep.mubr.f32.mxu0 0.0
  %2923 = vmatmul.mubr.f32.gmra.mrb[0].mxu0 %v2173
  %v2924 = vpop.f32.mrb[0].mxu0
  %v2925 = vadd.f32 0.0, %v2924
  %v2926 = vpop.f32.mrb[0].mxu0
  %2927 = vmatprep.mubr.f32.mxu0 0.0
  %2928 = vmatmul.mubr.f32.gmra.mrb[0].mxu0 %v2176
  %v2929 = vpop.f32.mrb[0].mxu0
  %v2930 = vadd.f32 0.0, %v2929
  %v2931 = vpop.f32.mrb[0].mxu0
  %2932 = vdwg.mxu0
  %2949 = vrot.lane.b32.xlu0 %v2855, 4
  %v2950 = vpop.permute.xlu0 %2949
  %2951 = vrot.lane.b32.xlu0 %v2860, 4
  %v2952 = vpop.permute.xlu0 %2951
  %2953 = vrot.lane.b32.xlu0 %v2865, 4
  %v2954 = vpop.permute.xlu0 %2953
  %2955 = vrot.lane.b32.xlu0 %v2870, 4
  %v2956 = vpop.permute.xlu0 %2955
  %2957 = vrot.lane.b32.xlu0 %v2875, 4
  %v2958 = vpop.permute.xlu0 %2957
  %2959 = vrot.lane.b32.xlu0 %v2880, 4
  %v2960 = vpop.permute.xlu0 %2959
  %2961 = vrot.lane.b32.xlu0 %v2885, 4
  %v2962 = vpop.permute.xlu0 %2961
  %2963 = vrot.lane.b32.xlu0 %v2890, 4
  %v2964 = vpop.permute.xlu0 %2963
  %2965 = vrot.lane.b32.xlu0 %v2895, 4
  %v2966 = vpop.permute.xlu0 %2965
  %2967 = vrot.lane.b32.xlu0 %v2900, 4
  %v2968 = vpop.permute.xlu0 %2967
  %2969 = vrot.lane.b32.xlu0 %v2905, 4
  %v2970 = vpop.permute.xlu0 %2969
  %2971 = vrot.lane.b32.xlu0 %v2910, 4
  %v2972 = vpop.permute.xlu0 %2971
  %2973 = vrot.lane.b32.xlu0 %v2915, 4
  %v2974 = vpop.permute.xlu0 %2973
  %2975 = vrot.lane.b32.xlu0 %v2920, 4
  %v2976 = vpop.permute.xlu0 %2975
  %2977 = vrot.lane.b32.xlu0 %v2925, 4
  %v2978 = vpop.permute.xlu0 %2977
  %2979 = vrot.lane.b32.xlu0 %v2930, 4
  %v2980 = vpop.permute.xlu0 %2979
  %v2997 = vadd.f32 %v2051, %v2950
  %v2998 = vadd.f32 %v2056, %v2952
  %v2999 = vadd.f32 %v2061, %v2954
  %v3000 = vadd.f32 %v2066, %v2956
  %v3001 = vadd.f32 %v2071, %v2958
  %v3002 = vadd.f32 %v2076, %v2960
  %v3003 = vadd.f32 %v2081, %v2962
  %v3004 = vadd.f32 %v2086, %v2964
  %v3005 = vadd.f32 %v2091, %v2966
  %v3006 = vadd.f32 %v2096, %v2968
  %v3007 = vadd.f32 %v2101, %v2970
  %v3008 = vadd.f32 %v2106, %v2972
  %v3009 = vadd.f32 %v2111, %v2974
  %v3010 = vadd.f32 %v2116, %v2976
  %v3011 = vadd.f32 %v2121, %v2978
  %v3012 = vadd.f32 %v2126, %v2980
  %v3013 = vxor.u32 %v2997, 2147483648
  %v3014 = vxor.u32 %v2998, 2147483648
  %v3015 = vxor.u32 %v2999, 2147483648
  %v3016 = vxor.u32 %v3000, 2147483648
  %v3017 = vmul.f32 %v3013, 1.442695
  %v3018 = vpow.pop %v3017
  %v3019 = vmul.f32 %v3014, 1.442695
  %v3020 = vpow.pop %v3019
  %v3021 = vmul.f32 %v3015, 1.442695
  %v3022 = vpow.pop %v3021
  %v3023 = vmul.f32 %v3016, 1.442695
  %v3024 = vpow.pop %v3023
  %v3025 = vadd.f32 %v3018, 1.0
  %v3026 = vadd.f32 %v3020, 1.0
  %v3027 = vadd.f32 %v3022, 1.0
  %v3028 = vadd.f32 %v3024, 1.0
  %v3029 = vrcp.pop %v3025
  %v3030 = vmul.f32 1.0, %v3029
  %v3031 = vrcp.pop %v3026
  %v3032 = vmul.f32 1.0, %v3031
  %v3033 = vrcp.pop %v3027
  %v3034 = vmul.f32 1.0, %v3033
  %v3035 = vrcp.pop %v3028
  %v3036 = vmul.f32 1.0, %v3035
  %v3037 = vxor.u32 %v3001, 2147483648
  %v3038 = vxor.u32 %v3002, 2147483648
  %v3039 = vxor.u32 %v3003, 2147483648
  %v3040 = vxor.u32 %v3004, 2147483648
  %v3041 = vmul.f32 %v3037, 1.442695
  %v3042 = vpow.pop %v3041
  %v3043 = vmul.f32 %v3038, 1.442695
  %v3044 = vpow.pop %v3043
  %v3045 = vmul.f32 %v3039, 1.442695
  %v3046 = vpow.pop %v3045
  %v3047 = vmul.f32 %v3040, 1.442695
  %v3048 = vpow.pop %v3047
  %v3049 = vadd.f32 %v3042, 1.0
  %v3050 = vadd.f32 %v3044, 1.0
  %v3051 = vadd.f32 %v3046, 1.0
  %v3052 = vadd.f32 %v3048, 1.0
  %v3053 = vrcp.pop %v3049
  %v3054 = vmul.f32 1.0, %v3053
  %v3055 = vrcp.pop %v3050
  %v3056 = vmul.f32 1.0, %v3055
  %v3057 = vrcp.pop %v3051
  %v3058 = vmul.f32 1.0, %v3057
  %v3059 = vrcp.pop %v3052
  %v3060 = vmul.f32 1.0, %v3059
  %v3061 = vtanh.pop %v3005
  %v3062 = vtanh.pop %v3006
  %v3063 = vtanh.pop %v3007
  %v3064 = vtanh.pop %v3008
  %v3065 = vxor.u32 %v3009, 2147483648
  %v3066 = vxor.u32 %v3010, 2147483648
  %v3067 = vxor.u32 %v3011, 2147483648
  %v3068 = vxor.u32 %v3012, 2147483648
  %v3069 = vmul.f32 %v3065, 1.442695
  %v3070 = vpow.pop %v3069
  %v3071 = vmul.f32 %v3066, 1.442695
  %v3072 = vpow.pop %v3071
  %v3073 = vmul.f32 %v3067, 1.442695
  %v3074 = vpow.pop %v3073
  %v3075 = vmul.f32 %v3068, 1.442695
  %v3076 = vpow.pop %v3075
  %v3077 = vadd.f32 %v3070, 1.0
  %v3078 = vadd.f32 %v3072, 1.0
  %v3079 = vadd.f32 %v3074, 1.0
  %v3080 = vadd.f32 %v3076, 1.0
  %v3081 = vrcp.pop %v3077
  %v3082 = vmul.f32 1.0, %v3081
  %v3083 = vrcp.pop %v3078
  %v3084 = vmul.f32 1.0, %v3083
  %v3085 = vrcp.pop %v3079
  %v3086 = vmul.f32 1.0, %v3085
  %v3087 = vrcp.pop %v3080
  %v3088 = vmul.f32 1.0, %v3087
  %3093 = vrot.lane.b32.xlu0 %v2760, 2
  %v3094 = vpop.permute.xlu0 %3093
  %3095 = vrot.lane.b32.xlu0 %v2761, 2
  %v3096 = vpop.permute.xlu0 %3095
  %3097 = vrot.lane.b32.xlu0 %v2762, 2
  %v3098 = vpop.permute.xlu0 %3097
  %3099 = vrot.lane.b32.xlu0 %v2763, 2
  %v3100 = vpop.permute.xlu0 %3099
  %v3105 = vmul.f32 %v3054, %v3094
  %v3106 = vmul.f32 %v3056, %v3096
  %v3107 = vmul.f32 %v3058, %v3098
  %v3108 = vmul.f32 %v3060, %v3100
  %v3109 = vmul.f32 %v3030, %v3061
  %v3110 = vmul.f32 %v3032, %v3062
  %v3111 = vmul.f32 %v3034, %v3063
  %v3112 = vmul.f32 %v3036, %v3064
  %v3113 = vadd.f32 %v3105, %v3109
  %v3114 = vadd.f32 %v3106, %v3110
  %v3115 = vadd.f32 %v3107, %v3111
  %v3116 = vadd.f32 %v3108, %v3112
  %v3117 = vtanh.pop %v3113
  %v3118 = vtanh.pop %v3114
  %v3119 = vtanh.pop %v3115
  %v3120 = vtanh.pop %v3116
  %v3121 = vmul.f32 %v3082, %v3117
  %v3122 = vmul.f32 %v3084, %v3118
  %v3123 = vmul.f32 %v3086, %v3119
  %v3124 = vmul.f32 %v3088, %v3120
  %v3125 = vld [vmem:[%s9] sm:$0xff]
  %v3126 = vld [vmem:[%s9 + $0x8] sm:$0xff]
  %v3127 = vld [vmem:[%s9 + $0x10] sm:$0xff]
  %v3128 = vld [vmem:[%s9 + $0x18] sm:$0xff]
  %3130 = vset.pattern.permute.xlu0 0
  %3131 = vperm.xlu0 %3130, %v3125
  %v3132 = vpop.permute.xlu0 %3131
  %3135 = vset.pattern.permute.xlu0 0
  %3136 = vperm.xlu0 %3135, %v3126
  %v3137 = vpop.permute.xlu0 %3136
  %3140 = vset.pattern.permute.xlu0 0
  %3141 = vperm.xlu0 %3140, %v3127
  %v3142 = vpop.permute.xlu0 %3141
  %3145 = vset.pattern.permute.xlu0 0
  %3146 = vperm.xlu0 %3145, %v3128
  %v3147 = vpop.permute.xlu0 %3146
  %v3149 = vmul.f32 %v3121, %v3132
  %v3150 = vmul.f32 %v3122, %v3137
  %v3151 = vmul.f32 %v3123, %v3142
  %v3152 = vmul.f32 %v3124, %v3147
  %v3153 = vld [vmem:[%s10] sm:$0xff]
  %v3154 = vld [vmem:[%s10 + $0x8] sm:$0xff]
  %v3155 = vld [vmem:[%s10 + $0x10] sm:$0xff]
  %v3156 = vld [vmem:[%s10 + $0x18] sm:$0xff]
  %3158 = vset.pattern.permute.xlu0 0
  %3159 = vperm.xlu0 %3158, %v3153
  %v3160 = vpop.permute.xlu0 %3159
  %3163 = vset.pattern.permute.xlu0 0
  %3164 = vperm.xlu0 %3163, %v3154
  %v3165 = vpop.permute.xlu0 %3164
  %3168 = vset.pattern.permute.xlu0 0
  %3169 = vperm.xlu0 %3168, %v3155
  %v3170 = vpop.permute.xlu0 %3169
  %3173 = vset.pattern.permute.xlu0 0
  %3174 = vperm.xlu0 %3173, %v3156
  %v3175 = vpop.permute.xlu0 %3174
  %v3177 = vadd.f32 %v3149, %v3160
  %v3178 = vadd.f32 %v3150, %v3165
  %v3179 = vadd.f32 %v3151, %v3170
  %v3180 = vadd.f32 %v3152, %v3175
  %vm3181 = vcmp.gt.f32.partialorder %v3177, 0.0
  %vm3182 = vcmp.gt.f32.partialorder %v3178, 0.0
  %vm3183 = vcmp.gt.f32.partialorder %v3179, 0.0
  %vm3184 = vcmp.gt.f32.partialorder %v3180, 0.0
  %v3185 = vmul.f32 %v3177, 0.1
  %v3186 = vmul.f32 %v3178, 0.1
  %v3187 = vmul.f32 %v3179, 0.1
  %v3188 = vmul.f32 %v3180, 0.1
  %v3189 = vsel %vm3181, %v3177, %v3185
  %v3190 = vsel %vm3182, %v3178, %v3186
  %v3191 = vsel %vm3183, %v3179, %v3187
  %v3192 = vsel %vm3184, %v3180, %v3188
  %v3193 = vld [vmem:[%s11] sm:$0x1f]
  %v3194 = vld [vmem:[%s12] sm:$0x1f]
  %3196 = vset.pattern.permute.xlu0 0
  %3197 = vperm.xlu0 %3196, %v3194
  %v3198 = vpop.permute.xlu0 %3197
  %3204 = vrot.lane.b32.xlu0 %v3189, 124
  %v3205 = vpop.permute.xlu0 %3204
  %3206 = vrot.lane.b32.xlu0 %v3190, 124
  %v3207 = vpop.permute.xlu0 %3206
  %3208 = vrot.lane.b32.xlu0 %v3191, 124
  %v3209 = vpop.permute.xlu0 %3208
  %3210 = vrot.lane.b32.xlu0 %v3192, 124
  %v3211 = vpop.permute.xlu0 %3210
  %v3217 = vsel %vm2129, %v3193, 0
  %3219 = vmatprep.subr.mxu0 0.0
  %3220 = vmatpush1.msra.mxu0 %v3205
  %3221 = vmatprep.subr.mxu0 0.0
  %3222 = vmatpush1.msra.mxu0 %v3207
  %3223 = vmatprep.subr.mxu0 0.0
  %3224 = vmatpush1.msra.mxu0 %v3209
  %3225 = vmatprep.subr.mxu0 0.0
  %3226 = vmatpush1.msra.mxu0 %v3211
  %3227 = vmatprep.subr.mxu0 0.0
  %3228 = vmatpush1.msra.mxu0 0.0
  %3229 = vmatprep.subr.mxu0 0.0
  %3230 = vmatpush1.msra.mxu0 0.0
  %3231 = vmatprep.subr.mxu0 0.0
  %3232 = vmatpush1.msra.mxu0 0.0
  %3233 = vmatprep.subr.mxu0 0.0
  %3234 = vmatpush1.msra.mxu0 0.0
  %3235 = vmatprep.subr.mxu0 0.0
  %3236 = vmatpush1.msra.mxu0 0.0
  %3237 = vmatprep.subr.mxu0 0.0
  %3238 = vmatpush1.msra.mxu0 0.0
  %3239 = vmatprep.subr.mxu0 0.0
  %3240 = vmatpush1.msra.mxu0 0.0
  %3241 = vmatprep.subr.mxu0 0.0
  %3242 = vmatpush1.msra.mxu0 0.0
  %3243 = vmatprep.subr.mxu0 0.0
  %3244 = vmatpush1.msra.mxu0 0.0
  %3245 = vmatprep.subr.mxu0 0.0
  %3246 = vmatpush1.msra.mxu0 0.0
  %3247 = vmatprep.subr.mxu0 0.0
  %3248 = vmatpush1.msra.mxu0 0.0
  %3249 = vmatprep.subr.mxu0 0.0
  %3250 = vmatpush1.msra.mxu0 0.0
  %3251 = vmatprep.subr.mxu0 0.0
  %3252 = vmatpush1.msra.mxu0 0.0
  %3253 = vmatprep.subr.mxu0 0.0
  %3254 = vmatpush1.msra.mxu0 0.0
  %3255 = vmatprep.subr.mxu0 0.0
  %3256 = vmatpush1.msra.mxu0 0.0
  %3257 = vmatprep.subr.mxu0 0.0
  %3258 = vmatpush1.msra.mxu0 0.0
  %3259 = vmatprep.subr.mxu0 0.0
  %3260 = vmatpush1.msra.mxu0 0.0
  %3261 = vmatprep.subr.mxu0 0.0
  %3262 = vmatpush1.msra.mxu0 0.0
  %3263 = vmatprep.subr.mxu0 0.0
  %3264 = vmatpush1.msra.mxu0 0.0
  %3265 = vmatprep.subr.mxu0 0.0
  %3266 = vmatpush1.msra.mxu0 0.0
  %3267 = vmatprep.subr.mxu0 0.0
  %3268 = vmatpush1.msra.mxu0 0.0
  %3269 = vmatprep.subr.mxu0 0.0
  %3270 = vmatpush1.msra.mxu0 0.0
  %3271 = vmatprep.subr.mxu0 0.0
  %3272 = vmatpush1.msra.mxu0 0.0
  %3273 = vmatprep.subr.mxu0 0.0
  %3274 = vmatpush1.msra.mxu0 0.0
  %3275 = vmatprep.subr.mxu0 0.0
  %3276 = vmatpush1.msra.mxu0 0.0
  %3277 = vmatprep.subr.mxu0 0.0
  %3278 = vmatpush1.msra.mxu0 0.0
  %3279 = vmatprep.subr.mxu0 0.0
  %3280 = vmatpush1.msra.mxu0 0.0
  %3281 = vmatprep.subr.mxu0 0.0
  %3282 = vmatpush1.msra.mxu0 0.0
  %3283 = vmatprep.mubr.f32.mxu0 0.0
  %3284 = vmatmul.mubr.f32.gmra.mrb[0].mxu0 %v3217
  %v3285 = vpop.f32.mrb[0].mxu0
  %v3286 = vadd.f32 %v3198, %v3285
  %v3287 = vpop.f32.mrb[0].mxu0
  %3288 = vdwg.mxu0
  %vm3289 = vcmask 12288
  %3290 = vst.msk [vmem:[%s13] sm:$0x1f] %vm3289, %v3286
  // Predicated region
  $region54: #{forward.1} parent=0 // pred_check
    _
  $region55: #{forward.1} parent=0 // pred_check_branch
    %3292 = sbr.rel (0) target = $region57
  $region56: #{forward.1} parent=0 // pred_region
    _
  $region57: #{forward.1} parent=0 // pred_fallthru
    _
  // Predicated region
  $region58: #{forward.1} parent=0 // pred_check
    _
  $region59: #{forward.1} parent=0 // pred_check_branch
    %3294 = sbr.rel (0) target = $region61
  $region60: #{forward.1} parent=0 // pred_region
    _
  $region61: #{forward.1} parent=0 // pred_fallthru
    _

</llo_original>
